<compile_context>
chip_gen: v7x
topology: tpu7x:2x2x1
jax: 0.10.0
libtpu: 0.0.40
codegen_flags: <defaults>
</compile_context>

<pallas_src>
from functools import partial

import numpy as np
import jax
import jax.numpy as jnp
from jax.experimental import pallas as pl
from jax.experimental.pallas import tpu as pltpu


# ----------------------------------------------------------------------------
# Parameter packing.
#   * All scalar-consumed parameters (Eunet conv weights/biases, BN gamma/beta)
#     go into one flat f32 vector living in SMEM.
#   * Chain-conv weights are packed as per-row weight columns in a small VMEM
#     array:  wc[co*N + b, base_l + ci*9 + t] = w_l[co, ci, ky, kx], t = ky*3+kx.
#   * Chain-conv biases are intentionally NOT packed (cancelled by BatchNorm).
# ----------------------------------------------------------------------------
_SMEM_ORDER = ("e1_w", "e1_b", "e2_w", "e2_b", "e3_w", "e3_b", "e4_w", "e4_b",
               "bn1_g", "bn1_b", "bn2_g", "bn2_b", "bn3_g", "bn3_b")


def _pack_smem(params):
    pieces, offs, cur = [], {}, 0
    for name in _SMEM_ORDER:
        v = jnp.asarray(params[name], jnp.float32).reshape(-1)
        offs[name] = cur
        cur += int(v.shape[0])
        pieces.append(v)
    return jnp.concatenate(pieces), offs


def _pack_chain_cols(params, n_batch):
    cols, bases, cur = [], {}, 0
    for name in ("c01_w", "c12_w", "c23_w"):
        w = jnp.asarray(params[name], jnp.float32)          # (3, cin, 3, 3)
        cout, cin = int(w.shape[0]), int(w.shape[1])
        flat = w.reshape(cout, cin * 9)                     # [co, ci*9 + t]
        cols.append(jnp.repeat(flat, n_batch, axis=0))      # row = co*N + b
        bases[name] = cur
        cur += cin * 9
    return jnp.concatenate(cols, axis=1), bases             # (3*N, 135)


# ----------------------------------------------------------------------------
# Fused forward kernel.
#   Layout: channel blocks of shape (N, HW) with the flattened spatial extent
#   on the lane axis (HW = 256 -> lane-dense, unmasked stores); chain-conv
#   accumulators stack the 3 output channels along sublanes -> (3*N, HW).
# ----------------------------------------------------------------------------
def _fused_kernel(theta_ref, x_ref, wc_ref, o_ref, tile_ref, *,
                  offs, bases, N, H, W):
    HW = H * W
    COUT = 3                      # chain-conv output channels
    f32 = jnp.float32

    # --- 8 boundary masks for the non-center 3x3 taps, built from a lane iota
    #     (no HBM constant, no DMA).  Column index avoids integer division when
    #     W is a power of two.
    lane = jax.lax.broadcasted_iota(jnp.int32, (1, HW), 1)
    if W & (W - 1) == 0:
        col = jnp.bitwise_and(lane, W - 1)
    else:
        col = lane % W  # TODO(synk): vector remainder path untested for odd W

    def tap_mask(dy, dx):
        cond = None

        def _and(c, new):
            return new if c is None else jnp.logical_and(c, new)

        if dy == -1:
            cond = _and(cond, lane >= W)
        if dy == +1:
            cond = _and(cond, lane < (H - 1) * W)
        if dx == -1:
            cond = _and(cond, col >= 1)
        if dx == +1:
            cond = _and(cond, col <= W - 2)
        return None if cond is None else cond.astype(f32)

    taps = []                                   # (flat lane offset, mask|None)
    for t in range(9):
        dy, dx = t // 3 - 1, t % 3 - 1
        taps.append((dy * W + dx, tap_mask(dy, dx)))

    def add_tap(acc, partial, off, mask):
        if mask is None:                        # center tap: no shift, all valid
            return acc + partial
        shifted = pltpu.roll(partial, shift=(-off) % HW, axis=1)   # XLU lane roll
        return acc + shifted * mask

    # --- Eunet stand-in: Conv2d(3->1, k=3, pad=1) + ReLU, weights from SMEM.
    def eunet_conv(blocks, w_off, b_off):
        acc = jnp.zeros((N, HW), f32) + theta_ref[b_off]
        for t, (off, mask) in enumerate(taps):
            p = None
            for ci in range(3):
                term = theta_ref[w_off + ci * 9 + t] * blocks[ci]
                p = term if p is None else p + term
            acc = add_tap(acc, p, off, mask)
        return jnp.maximum(acc, 0.0)

    # --- replicate an (N, HW) channel block COUT times along sublanes via the
    #     VMEM scratch (safe sublane "concatenate"); loaded value is immutable.
    def tile_rows(block):
        for r in range(COUT):
            tile_ref[pl.ds(r * N, N), :] = block
        return tile_ref[...]                    # (COUT*N, HW)

    # --- chain conv (cout=3).  Bias dropped: exactly cancelled by BatchNorm.
    def chain_conv(tiled_blocks, base):
        acc = jnp.zeros((COUT * N, HW), f32)
        for t, (off, mask) in enumerate(taps):
            p = None
            for ci, tb in enumerate(tiled_blocks):
                wcol = wc_ref[:, pl.ds(base + ci * 9 + t, 1)]    # (COUT*N, 1)
                term = wcol * tb
                p = term if p is None else p + term
            acc = add_tap(acc, p, off, mask)
        return acc                              # row co*N + b = (channel, batch)

    # --- one-pass training-mode BatchNorm (biased variance, eps=1e-5).
    def batchnorm(y, g_off, b_off, eps=1e-5):
        inv_cnt = 1.0 / float(N * HW)
        out = []
        for c in range(COUT):
            yc = y[c * N:(c + 1) * N, :]
            s1 = jnp.sum(jnp.sum(yc, axis=1, keepdims=True), axis=0, keepdims=True)
            s2 = jnp.sum(jnp.sum(yc * yc, axis=1, keepdims=True), axis=0,
                         keepdims=True)
            mean = s1 * inv_cnt
            var = s2 * inv_cnt - mean * mean
            scale = theta_ref[g_off + c] * jax.lax.rsqrt(var + eps)   # (1,1)
            shift = theta_ref[b_off + c] - mean * scale               # (1,1)
            out.append(yc * scale + shift)
        return out                              # 3 x (N, HW) channel blocks

    # ------------------------------ forward ---------------------------------
    x_blocks = [x_ref[c] for c in range(3)]                 # 3 x (N, HW)
    tiled = [tile_rows(b) for b in x_blocks]                # grows with o1..o3

    o1 = eunet_conv(x_blocks, offs["e1_w"], offs["e1_b"])
    tiled.append(tile_rows(o1))
    in2 = batchnorm(chain_conv(tiled, bases["c01_w"]), offs["bn1_g"], offs["bn1_b"])

    o2 = eunet_conv(in2, offs["e2_w"], offs["e2_b"])
    tiled.append(tile_rows(o2))
    in3 = batchnorm(chain_conv(tiled, bases["c12_w"]), offs["bn2_g"], offs["bn2_b"])

    o3 = eunet_conv(in3, offs["e3_w"], offs["e3_b"])
    tiled.append(tile_rows(o3))
    in4 = batchnorm(chain_conv(tiled, bases["c23_w"]), offs["bn3_g"], offs["bn3_b"])

    o4 = eunet_conv(in4, offs["e4_w"], offs["e4_b"])
    o_ref[...] = o4


# ----------------------------------------------------------------------------
# Host-side wrapper: only cheap (tiny) relayout around a single pallas_call.
# ----------------------------------------------------------------------------
def chain_eunet_4_forward(x_nchw, params):
    N, C, H, W = x_nchw.shape
    assert C == 3, "chain_eunet_4 expects 3 input channels"
    HW = H * W
    # Lane-dense layout: HW sits on the lane axis.  HW % 128 == 0 (true for
    # 16x16) gives unmasked stores; other sizes are still correct, just padded.

    theta, offs = _pack_smem(params)
    wc, bases = _pack_chain_cols(params, N)
    x_cnhw = x_nchw.astype(jnp.float32).reshape(N, C, HW).transpose(1, 0, 2)

    kernel = partial(_fused_kernel, offs=offs, bases=bases, N=N, H=H, W=W)
    out = pl.pallas_call(
        kernel,
        out_shape=jax.ShapeDtypeStruct((N, HW), jnp.float32),
        in_specs=[
            pl.BlockSpec(memory_space=pltpu.MemorySpace.SMEM),   # packed scalars
            pl.BlockSpec(memory_space=pltpu.MemorySpace.VMEM),   # x  (C, N, HW)
            pl.BlockSpec(memory_space=pltpu.MemorySpace.VMEM),   # chain weight cols
        ],
        out_specs=pl.BlockSpec(memory_space=pltpu.MemorySpace.VMEM),
        scratch_shapes=[pltpu.VMEM((3 * N, HW), jnp.float32)],   # sublane-tile buf
    )(theta, x_cnhw, wc)
    return out.reshape(N, 1, H, W)


# ----------------------------------------------------------------------------
# Deterministic PyTorch-like parameter init.
# ----------------------------------------------------------------------------
def _conv_init(key, cin, cout):
    kw, kb = jax.random.split(key)
    bound = 1.0 / np.sqrt(cin * 9)
    w = jax.random.uniform(kw, (cout, cin, 3, 3), jnp.float32, -bound, bound)
    b = jax.random.uniform(kb, (cout,), jnp.float32, -bound, bound)
    return w, b


def make_params(key):
    keys = jax.random.split(key, 7)
    p = {}
    for i in range(4):   # Eunet stand-ins: Conv2d(3 -> 1, k=3, pad=1) + ReLU
        p[f"e{i+1}_w"], p[f"e{i+1}_b"] = _conv_init(keys[i], 3, 1)
    p["c01_w"], p["c01_b"] = _conv_init(keys[4], 4, 3)
    p["c12_w"], p["c12_b"] = _conv_init(keys[5], 5, 3)
    p["c23_w"], p["c23_b"] = _conv_init(keys[6], 6, 3)
    for i in range(1, 4):   # BatchNorm affine params at PyTorch init
        p[f"bn{i}_g"] = jnp.ones((3,), jnp.float32)
        p[f"bn{i}_b"] = jnp.zeros((3,), jnp.float32)
    return p


# ----------------------------------------------------------------------------
# Pure-JAX reference (uses the chain-conv biases, so it also validates the
# bias-cancellation-by-BN simplification inside the kernel).
# ----------------------------------------------------------------------------
def _reference_forward(x, p):
    def conv(v, w, b):
        out = jax.lax.conv_general_dilated(
            v, w, window_strides=(1, 1), padding=((1, 1), (1, 1)),
            dimension_numbers=("NCHW", "OIHW", "NCHW"))
        return out + b.reshape(1, -1, 1, 1)

    def bn(v, g, b, eps=1e-5):
        mean = jnp.mean(v, axis=(0, 2, 3), keepdims=True)
        var = jnp.mean((v - mean) ** 2, axis=(0, 2, 3), keepdims=True)
        return (v - mean) * jax.lax.rsqrt(var + eps) * g.reshape(1, -1, 1, 1) \
               + b.reshape(1, -1, 1, 1)

    relu = lambda v: jnp.maximum(v, 0.0)
    o1 = relu(conv(x, p["e1_w"], p["e1_b"]))
    in2 = bn(conv(jnp.concatenate([x, o1], 1), p["c01_w"], p["c01_b"]),
             p["bn1_g"], p["bn1_b"])
    o2 = relu(conv(in2, p["e2_w"], p["e2_b"]))
    in3 = bn(conv(jnp.concatenate([x, o1, o2], 1), p["c12_w"], p["c12_b"]),
             p["bn2_g"], p["bn2_b"])
    o3 = relu(conv(in3, p["e3_w"], p["e3_b"]))
    in4 = bn(conv(jnp.concatenate([x, o1, o2, o3], 1), p["c23_w"], p["c23_b"]),
             p["bn3_g"], p["bn3_b"])
    return relu(conv(in4, p["e4_w"], p["e4_b"]))


if __name__ == "__main__":
    key = jax.random.PRNGKey(0)
    kx, kp = jax.random.split(key)
    # Input channels = 3 (implied by conv01 in_channels = 4 = 3 + 1)
    x = jax.random.normal(kx, (2, 3, 16, 16), dtype=jnp.float32)
    params = make_params(kp)

    out = jax.block_until_ready(jax.jit(chain_eunet_4_forward)(x, params))
    assert out.shape == (2, 1, 16, 16), out.shape

    ref = jax.block_until_ready(jax.jit(_reference_forward)(x, params))
    np.testing.assert_allclose(np.asarray(out), np.asarray(ref),
                               rtol=2e-3, atol=2e-3)
    print("KERNEL_OK")
</pallas_src>

<mosaic_0001>
module attributes {stable_mosaic.version = 11 : i64} {
  func.func @_fused_kernel(%arg0: memref<130xf32, #tpu.memory_space<smem>>, %arg1: memref<3x2x256xf32, #tpu.memory_space<vmem>>, %arg2: memref<6x135xf32, #tpu.memory_space<vmem>>, %arg3: memref<2x256xf32, #tpu.memory_space<vmem>>, %arg4: memref<6x256xf32, #tpu.memory_space<vmem>>) attributes {dimension_semantics = [], scalar_prefetch = 0 : i64, scratch_operands = 1 : i64, tpu.core_type = #tpu.core_type<tc>} {
    %0 = tpu.iota {dimensions = array<i32: 1>} : vector<1x256xi32>
    %c15_i32 = arith.constant 15 : i32
    %1 = vector.broadcast %c15_i32 : i32 to vector<1x256xi32>
    %2 = arith.andi %0, %1 : vector<1x256xi32>
    %c16_i32 = arith.constant 16 : i32
    %3 = vector.broadcast %c16_i32 : i32 to vector<1x256xi32>
    %4 = arith.cmpi sge, %0, %3 : vector<1x256xi32>
    %c1_i32 = arith.constant 1 : i32
    %5 = vector.broadcast %c1_i32 : i32 to vector<1x256xi32>
    %6 = arith.cmpi sge, %2, %5 : vector<1x256xi32>
    %7 = arith.andi %4, %6 : vector<1x256xi1>
    %8 = arith.extui %7 : vector<1x256xi1> to vector<1x256xi32>
    %9 = arith.sitofp %8 : vector<1x256xi32> to vector<1x256xf32>
    %c16_i32_0 = arith.constant 16 : i32
    %10 = vector.broadcast %c16_i32_0 : i32 to vector<1x256xi32>
    %11 = arith.cmpi sge, %0, %10 : vector<1x256xi32>
    %12 = arith.extui %11 : vector<1x256xi1> to vector<1x256xi32>
    %13 = arith.sitofp %12 : vector<1x256xi32> to vector<1x256xf32>
    %c16_i32_1 = arith.constant 16 : i32
    %14 = vector.broadcast %c16_i32_1 : i32 to vector<1x256xi32>
    %15 = arith.cmpi sge, %0, %14 : vector<1x256xi32>
    %c14_i32 = arith.constant 14 : i32
    %16 = vector.broadcast %c14_i32 : i32 to vector<1x256xi32>
    %17 = arith.cmpi sle, %2, %16 : vector<1x256xi32>
    %18 = arith.andi %15, %17 : vector<1x256xi1>
    %19 = arith.extui %18 : vector<1x256xi1> to vector<1x256xi32>
    %20 = arith.sitofp %19 : vector<1x256xi32> to vector<1x256xf32>
    %c1_i32_2 = arith.constant 1 : i32
    %21 = vector.broadcast %c1_i32_2 : i32 to vector<1x256xi32>
    %22 = arith.cmpi sge, %2, %21 : vector<1x256xi32>
    %23 = arith.extui %22 : vector<1x256xi1> to vector<1x256xi32>
    %24 = arith.sitofp %23 : vector<1x256xi32> to vector<1x256xf32>
    %c14_i32_3 = arith.constant 14 : i32
    %25 = vector.broadcast %c14_i32_3 : i32 to vector<1x256xi32>
    %26 = arith.cmpi sle, %2, %25 : vector<1x256xi32>
    %27 = arith.extui %26 : vector<1x256xi1> to vector<1x256xi32>
    %28 = arith.sitofp %27 : vector<1x256xi32> to vector<1x256xf32>
    %c240_i32 = arith.constant 240 : i32
    %29 = vector.broadcast %c240_i32 : i32 to vector<1x256xi32>
    %30 = arith.cmpi slt, %0, %29 : vector<1x256xi32>
    %c1_i32_4 = arith.constant 1 : i32
    %31 = vector.broadcast %c1_i32_4 : i32 to vector<1x256xi32>
    %32 = arith.cmpi sge, %2, %31 : vector<1x256xi32>
    %33 = arith.andi %30, %32 : vector<1x256xi1>
    %34 = arith.extui %33 : vector<1x256xi1> to vector<1x256xi32>
    %35 = arith.sitofp %34 : vector<1x256xi32> to vector<1x256xf32>
    %c240_i32_5 = arith.constant 240 : i32
    %36 = vector.broadcast %c240_i32_5 : i32 to vector<1x256xi32>
    %37 = arith.cmpi slt, %0, %36 : vector<1x256xi32>
    %38 = arith.extui %37 : vector<1x256xi1> to vector<1x256xi32>
    %39 = arith.sitofp %38 : vector<1x256xi32> to vector<1x256xf32>
    %c240_i32_6 = arith.constant 240 : i32
    %40 = vector.broadcast %c240_i32_6 : i32 to vector<1x256xi32>
    %41 = arith.cmpi slt, %0, %40 : vector<1x256xi32>
    %c14_i32_7 = arith.constant 14 : i32
    %42 = vector.broadcast %c14_i32_7 : i32 to vector<1x256xi32>
    %43 = arith.cmpi sle, %2, %42 : vector<1x256xi32>
    %44 = arith.andi %41, %43 : vector<1x256xi1>
    %45 = arith.extui %44 : vector<1x256xi1> to vector<1x256xi32>
    %46 = arith.sitofp %45 : vector<1x256xi32> to vector<1x256xf32>
    %c0 = arith.constant 0 : index
    %c0_8 = arith.constant 0 : index
    %c0_9 = arith.constant 0 : index
    %47 = vector.load %arg1[%c0, %c0_8, %c0_9] : memref<3x2x256xf32, #tpu.memory_space<vmem>>, vector<1x2x256xf32>
    %48 = vector.shape_cast %47 : vector<1x2x256xf32> to vector<2x256xf32>
    %c1 = arith.constant 1 : index
    %c0_10 = arith.constant 0 : index
    %c0_11 = arith.constant 0 : index
    %49 = vector.load %arg1[%c1, %c0_10, %c0_11] : memref<3x2x256xf32, #tpu.memory_space<vmem>>, vector<1x2x256xf32>
    %50 = vector.shape_cast %49 : vector<1x2x256xf32> to vector<2x256xf32>
    %c2 = arith.constant 2 : index
    %c0_12 = arith.constant 0 : index
    %c0_13 = arith.constant 0 : index
    %51 = vector.load %arg1[%c2, %c0_12, %c0_13] : memref<3x2x256xf32, #tpu.memory_space<vmem>>, vector<1x2x256xf32>
    %52 = vector.shape_cast %51 : vector<1x2x256xf32> to vector<2x256xf32>
    %c0_14 = arith.constant 0 : index
    %c0_15 = arith.constant 0 : index
    %53 = vector.load %arg4[%c0_14, %c0_15] : memref<6x256xf32, #tpu.memory_space<vmem>>, vector<2x256xf32>
    tpu.vector_store %arg4[%c0_14, %c0_15], %48 {strides = array<i32>} : memref<6x256xf32, #tpu.memory_space<vmem>>, vector<2x256xf32>,
    %c2_16 = arith.constant 2 : index
    %c0_17 = arith.constant 0 : index
    %54 = vector.load %arg4[%c2_16, %c0_17] : memref<6x256xf32, #tpu.memory_space<vmem>>, vector<2x256xf32>
    tpu.vector_store %arg4[%c2_16, %c0_17], %48 {strides = array<i32>} : memref<6x256xf32, #tpu.memory_space<vmem>>, vector<2x256xf32>,
    %c4 = arith.constant 4 : index
    %c0_18 = arith.constant 0 : index
    %55 = vector.load %arg4[%c4, %c0_18] : memref<6x256xf32, #tpu.memory_space<vmem>>, vector<2x256xf32>
    tpu.vector_store %arg4[%c4, %c0_18], %48 {strides = array<i32>} : memref<6x256xf32, #tpu.memory_space<vmem>>, vector<2x256xf32>,
    %c0_19 = arith.constant 0 : index
    %c0_20 = arith.constant 0 : index
    %56 = vector.load %arg4[%c0_19, %c0_20] : memref<6x256xf32, #tpu.memory_space<vmem>>, vector<6x256xf32>
    %c0_21 = arith.constant 0 : index
    %c0_22 = arith.constant 0 : index
    %57 = vector.load %arg4[%c0_21, %c0_22] : memref<6x256xf32, #tpu.memory_space<vmem>>, vector<2x256xf32>
    tpu.vector_store %arg4[%c0_21, %c0_22], %50 {strides = array<i32>} : memref<6x256xf32, #tpu.memory_space<vmem>>, vector<2x256xf32>,
    %c2_23 = arith.constant 2 : index
    %c0_24 = arith.constant 0 : index
    %58 = vector.load %arg4[%c2_23, %c0_24] : memref<6x256xf32, #tpu.memory_space<vmem>>, vector<2x256xf32>
    tpu.vector_store %arg4[%c2_23, %c0_24], %50 {strides = array<i32>} : memref<6x256xf32, #tpu.memory_space<vmem>>, vector<2x256xf32>,
    %c4_25 = arith.constant 4 : index
    %c0_26 = arith.constant 0 : index
    %59 = vector.load %arg4[%c4_25, %c0_26] : memref<6x256xf32, #tpu.memory_space<vmem>>, vector<2x256xf32>
    tpu.vector_store %arg4[%c4_25, %c0_26], %50 {strides = array<i32>} : memref<6x256xf32, #tpu.memory_space<vmem>>, vector<2x256xf32>,
    %c0_27 = arith.constant 0 : index
    %c0_28 = arith.constant 0 : index
    %60 = vector.load %arg4[%c0_27, %c0_28] : memref<6x256xf32, #tpu.memory_space<vmem>>, vector<6x256xf32>
    %c0_29 = arith.constant 0 : index
    %c0_30 = arith.constant 0 : index
    %61 = vector.load %arg4[%c0_29, %c0_30] : memref<6x256xf32, #tpu.memory_space<vmem>>, vector<2x256xf32>
    tpu.vector_store %arg4[%c0_29, %c0_30], %52 {strides = array<i32>} : memref<6x256xf32, #tpu.memory_space<vmem>>, vector<2x256xf32>,
    %c2_31 = arith.constant 2 : index
    %c0_32 = arith.constant 0 : index
    %62 = vector.load %arg4[%c2_31, %c0_32] : memref<6x256xf32, #tpu.memory_space<vmem>>, vector<2x256xf32>
    tpu.vector_store %arg4[%c2_31, %c0_32], %52 {strides = array<i32>} : memref<6x256xf32, #tpu.memory_space<vmem>>, vector<2x256xf32>,
    %c4_33 = arith.constant 4 : index
    %c0_34 = arith.constant 0 : index
    %63 = vector.load %arg4[%c4_33, %c0_34] : memref<6x256xf32, #tpu.memory_space<vmem>>, vector<2x256xf32>
    tpu.vector_store %arg4[%c4_33, %c0_34], %52 {strides = array<i32>} : memref<6x256xf32, #tpu.memory_space<vmem>>, vector<2x256xf32>,
    %c0_35 = arith.constant 0 : index
    %c0_36 = arith.constant 0 : index
    %64 = vector.load %arg4[%c0_35, %c0_36] : memref<6x256xf32, #tpu.memory_space<vmem>>, vector<6x256xf32>
    %cst = arith.constant 0.000000e+00 : f32
    %65 = vector.broadcast %cst : f32 to vector<2x256xf32>
    %c27 = arith.constant 27 : index
    %66 = memref.load %arg0[%c27] : memref<130xf32, #tpu.memory_space<smem>>
    %67 = vector.broadcast %66 : f32 to vector<2x256xf32>
    %68 = arith.addf %65, %67 : vector<2x256xf32>
    %c0_37 = arith.constant 0 : index
    %69 = memref.load %arg0[%c0_37] : memref<130xf32, #tpu.memory_space<smem>>
    %70 = vector.broadcast %69 : f32 to vector<2x256xf32>
    %71 = arith.mulf %70, %48 : vector<2x256xf32>
    %c9 = arith.constant 9 : index
    %72 = memref.load %arg0[%c9] : memref<130xf32, #tpu.memory_space<smem>>
    %73 = vector.broadcast %72 : f32 to vector<2x256xf32>
    %74 = arith.mulf %73, %50 : vector<2x256xf32>
    %75 = arith.addf %71, %74 : vector<2x256xf32>
    %c18 = arith.constant 18 : index
    %76 = memref.load %arg0[%c18] : memref<130xf32, #tpu.memory_space<smem>>
    %77 = vector.broadcast %76 : f32 to vector<2x256xf32>
    %78 = arith.mulf %77, %52 : vector<2x256xf32>
    %79 = arith.addf %75, %78 : vector<2x256xf32>
    %c17_i32 = arith.constant 17 : i32
    %80 = tpu.dynamic_rotate %79 by %c17_i32 dim 1 : vector<2x256xf32>, i32 -> vector<2x256xf32>
    %81 = vector.broadcast %9 : vector<1x256xf32> to vector<2x256xf32>
    %82 = arith.mulf %80, %81 : vector<2x256xf32>
    %83 = arith.addf %68, %82 : vector<2x256xf32>
    %c1_38 = arith.constant 1 : index
    %84 = memref.load %arg0[%c1_38] : memref<130xf32, #tpu.memory_space<smem>>
    %85 = vector.broadcast %84 : f32 to vector<2x256xf32>
    %86 = arith.mulf %85, %48 : vector<2x256xf32>
    %c10 = arith.constant 10 : index
    %87 = memref.load %arg0[%c10] : memref<130xf32, #tpu.memory_space<smem>>
    %88 = vector.broadcast %87 : f32 to vector<2x256xf32>
    %89 = arith.mulf %88, %50 : vector<2x256xf32>
    %90 = arith.addf %86, %89 : vector<2x256xf32>
    %c19 = arith.constant 19 : index
    %91 = memref.load %arg0[%c19] : memref<130xf32, #tpu.memory_space<smem>>
    %92 = vector.broadcast %91 : f32 to vector<2x256xf32>
    %93 = arith.mulf %92, %52 : vector<2x256xf32>
    %94 = arith.addf %90, %93 : vector<2x256xf32>
    %c16_i32_39 = arith.constant 16 : i32
    %95 = tpu.dynamic_rotate %94 by %c16_i32_39 dim 1 : vector<2x256xf32>, i32 -> vector<2x256xf32>
    %96 = vector.broadcast %13 : vector<1x256xf32> to vector<2x256xf32>
    %97 = arith.mulf %95, %96 : vector<2x256xf32>
    %98 = arith.addf %83, %97 : vector<2x256xf32>
    %c2_40 = arith.constant 2 : index
    %99 = memref.load %arg0[%c2_40] : memref<130xf32, #tpu.memory_space<smem>>
    %100 = vector.broadcast %99 : f32 to vector<2x256xf32>
    %101 = arith.mulf %100, %48 : vector<2x256xf32>
    %c11 = arith.constant 11 : index
    %102 = memref.load %arg0[%c11] : memref<130xf32, #tpu.memory_space<smem>>
    %103 = vector.broadcast %102 : f32 to vector<2x256xf32>
    %104 = arith.mulf %103, %50 : vector<2x256xf32>
    %105 = arith.addf %101, %104 : vector<2x256xf32>
    %c20 = arith.constant 20 : index
    %106 = memref.load %arg0[%c20] : memref<130xf32, #tpu.memory_space<smem>>
    %107 = vector.broadcast %106 : f32 to vector<2x256xf32>
    %108 = arith.mulf %107, %52 : vector<2x256xf32>
    %109 = arith.addf %105, %108 : vector<2x256xf32>
    %c15_i32_41 = arith.constant 15 : i32
    %110 = tpu.dynamic_rotate %109 by %c15_i32_41 dim 1 : vector<2x256xf32>, i32 -> vector<2x256xf32>
    %111 = vector.broadcast %20 : vector<1x256xf32> to vector<2x256xf32>
    %112 = arith.mulf %110, %111 : vector<2x256xf32>
    %113 = arith.addf %98, %112 : vector<2x256xf32>
    %c3 = arith.constant 3 : index
    %114 = memref.load %arg0[%c3] : memref<130xf32, #tpu.memory_space<smem>>
    %115 = vector.broadcast %114 : f32 to vector<2x256xf32>
    %116 = arith.mulf %115, %48 : vector<2x256xf32>
    %c12 = arith.constant 12 : index
    %117 = memref.load %arg0[%c12] : memref<130xf32, #tpu.memory_space<smem>>
    %118 = vector.broadcast %117 : f32 to vector<2x256xf32>
    %119 = arith.mulf %118, %50 : vector<2x256xf32>
    %120 = arith.addf %116, %119 : vector<2x256xf32>
    %c21 = arith.constant 21 : index
    %121 = memref.load %arg0[%c21] : memref<130xf32, #tpu.memory_space<smem>>
    %122 = vector.broadcast %121 : f32 to vector<2x256xf32>
    %123 = arith.mulf %122, %52 : vector<2x256xf32>
    %124 = arith.addf %120, %123 : vector<2x256xf32>
    %c1_i32_42 = arith.constant 1 : i32
    %125 = tpu.dynamic_rotate %124 by %c1_i32_42 dim 1 : vector<2x256xf32>, i32 -> vector<2x256xf32>
    %126 = vector.broadcast %24 : vector<1x256xf32> to vector<2x256xf32>
    %127 = arith.mulf %125, %126 : vector<2x256xf32>
    %128 = arith.addf %113, %127 : vector<2x256xf32>
    %c4_43 = arith.constant 4 : index
    %129 = memref.load %arg0[%c4_43] : memref<130xf32, #tpu.memory_space<smem>>
    %130 = vector.broadcast %129 : f32 to vector<2x256xf32>
    %131 = arith.mulf %130, %48 : vector<2x256xf32>
    %c13 = arith.constant 13 : index
    %132 = memref.load %arg0[%c13] : memref<130xf32, #tpu.memory_space<smem>>
    %133 = vector.broadcast %132 : f32 to vector<2x256xf32>
    %134 = arith.mulf %133, %50 : vector<2x256xf32>
    %135 = arith.addf %131, %134 : vector<2x256xf32>
    %c22 = arith.constant 22 : index
    %136 = memref.load %arg0[%c22] : memref<130xf32, #tpu.memory_space<smem>>
    %137 = vector.broadcast %136 : f32 to vector<2x256xf32>
    %138 = arith.mulf %137, %52 : vector<2x256xf32>
    %139 = arith.addf %135, %138 : vector<2x256xf32>
    %140 = arith.addf %128, %139 : vector<2x256xf32>
    %c5 = arith.constant 5 : index
    %141 = memref.load %arg0[%c5] : memref<130xf32, #tpu.memory_space<smem>>
    %142 = vector.broadcast %141 : f32 to vector<2x256xf32>
    %143 = arith.mulf %142, %48 : vector<2x256xf32>
    %c14 = arith.constant 14 : index
    %144 = memref.load %arg0[%c14] : memref<130xf32, #tpu.memory_space<smem>>
    %145 = vector.broadcast %144 : f32 to vector<2x256xf32>
    %146 = arith.mulf %145, %50 : vector<2x256xf32>
    %147 = arith.addf %143, %146 : vector<2x256xf32>
    %c23 = arith.constant 23 : index
    %148 = memref.load %arg0[%c23] : memref<130xf32, #tpu.memory_space<smem>>
    %149 = vector.broadcast %148 : f32 to vector<2x256xf32>
    %150 = arith.mulf %149, %52 : vector<2x256xf32>
    %151 = arith.addf %147, %150 : vector<2x256xf32>
    %c255_i32 = arith.constant 255 : i32
    %152 = tpu.dynamic_rotate %151 by %c255_i32 dim 1 : vector<2x256xf32>, i32 -> vector<2x256xf32>
    %153 = vector.broadcast %28 : vector<1x256xf32> to vector<2x256xf32>
    %154 = arith.mulf %152, %153 : vector<2x256xf32>
    %155 = arith.addf %140, %154 : vector<2x256xf32>
    %c6 = arith.constant 6 : index
    %156 = memref.load %arg0[%c6] : memref<130xf32, #tpu.memory_space<smem>>
    %157 = vector.broadcast %156 : f32 to vector<2x256xf32>
    %158 = arith.mulf %157, %48 : vector<2x256xf32>
    %c15 = arith.constant 15 : index
    %159 = memref.load %arg0[%c15] : memref<130xf32, #tpu.memory_space<smem>>
    %160 = vector.broadcast %159 : f32 to vector<2x256xf32>
    %161 = arith.mulf %160, %50 : vector<2x256xf32>
    %162 = arith.addf %158, %161 : vector<2x256xf32>
    %c24 = arith.constant 24 : index
    %163 = memref.load %arg0[%c24] : memref<130xf32, #tpu.memory_space<smem>>
    %164 = vector.broadcast %163 : f32 to vector<2x256xf32>
    %165 = arith.mulf %164, %52 : vector<2x256xf32>
    %166 = arith.addf %162, %165 : vector<2x256xf32>
    %c241_i32 = arith.constant 241 : i32
    %167 = tpu.dynamic_rotate %166 by %c241_i32 dim 1 : vector<2x256xf32>, i32 -> vector<2x256xf32>
    %168 = vector.broadcast %35 : vector<1x256xf32> to vector<2x256xf32>
    %169 = arith.mulf %167, %168 : vector<2x256xf32>
    %170 = arith.addf %155, %169 : vector<2x256xf32>
    %c7 = arith.constant 7 : index
    %171 = memref.load %arg0[%c7] : memref<130xf32, #tpu.memory_space<smem>>
    %172 = vector.broadcast %171 : f32 to vector<2x256xf32>
    %173 = arith.mulf %172, %48 : vector<2x256xf32>
    %c16 = arith.constant 16 : index
    %174 = memref.load %arg0[%c16] : memref<130xf32, #tpu.memory_space<smem>>
    %175 = vector.broadcast %174 : f32 to vector<2x256xf32>
    %176 = arith.mulf %175, %50 : vector<2x256xf32>
    %177 = arith.addf %173, %176 : vector<2x256xf32>
    %c25 = arith.constant 25 : index
    %178 = memref.load %arg0[%c25] : memref<130xf32, #tpu.memory_space<smem>>
    %179 = vector.broadcast %178 : f32 to vector<2x256xf32>
    %180 = arith.mulf %179, %52 : vector<2x256xf32>
    %181 = arith.addf %177, %180 : vector<2x256xf32>
    %c240_i32_44 = arith.constant 240 : i32
    %182 = tpu.dynamic_rotate %181 by %c240_i32_44 dim 1 : vector<2x256xf32>, i32 -> vector<2x256xf32>
    %183 = vector.broadcast %39 : vector<1x256xf32> to vector<2x256xf32>
    %184 = arith.mulf %182, %183 : vector<2x256xf32>
    %185 = arith.addf %170, %184 : vector<2x256xf32>
    %c8 = arith.constant 8 : index
    %186 = memref.load %arg0[%c8] : memref<130xf32, #tpu.memory_space<smem>>
    %187 = vector.broadcast %186 : f32 to vector<2x256xf32>
    %188 = arith.mulf %187, %48 : vector<2x256xf32>
    %c17 = arith.constant 17 : index
    %189 = memref.load %arg0[%c17] : memref<130xf32, #tpu.memory_space<smem>>
    %190 = vector.broadcast %189 : f32 to vector<2x256xf32>
    %191 = arith.mulf %190, %50 : vector<2x256xf32>
    %192 = arith.addf %188, %191 : vector<2x256xf32>
    %c26 = arith.constant 26 : index
    %193 = memref.load %arg0[%c26] : memref<130xf32, #tpu.memory_space<smem>>
    %194 = vector.broadcast %193 : f32 to vector<2x256xf32>
    %195 = arith.mulf %194, %52 : vector<2x256xf32>
    %196 = arith.addf %192, %195 : vector<2x256xf32>
    %c239_i32 = arith.constant 239 : i32
    %197 = tpu.dynamic_rotate %196 by %c239_i32 dim 1 : vector<2x256xf32>, i32 -> vector<2x256xf32>
    %198 = vector.broadcast %46 : vector<1x256xf32> to vector<2x256xf32>
    %199 = arith.mulf %197, %198 : vector<2x256xf32>
    %200 = arith.addf %185, %199 : vector<2x256xf32>
    %cst_45 = arith.constant 0.000000e+00 : f32
    %201 = vector.broadcast %cst_45 : f32 to vector<2x256xf32>
    %202 = arith.maximumf %200, %201 : vector<2x256xf32>
    %c0_46 = arith.constant 0 : index
    %c0_47 = arith.constant 0 : index
    %203 = vector.load %arg4[%c0_46, %c0_47] : memref<6x256xf32, #tpu.memory_space<vmem>>, vector<2x256xf32>
    tpu.vector_store %arg4[%c0_46, %c0_47], %202 {strides = array<i32>} : memref<6x256xf32, #tpu.memory_space<vmem>>, vector<2x256xf32>,
    %c2_48 = arith.constant 2 : index
    %c0_49 = arith.constant 0 : index
    %204 = vector.load %arg4[%c2_48, %c0_49] : memref<6x256xf32, #tpu.memory_space<vmem>>, vector<2x256xf32>
    tpu.vector_store %arg4[%c2_48, %c0_49], %202 {strides = array<i32>} : memref<6x256xf32, #tpu.memory_space<vmem>>, vector<2x256xf32>,
    %c4_50 = arith.constant 4 : index
    %c0_51 = arith.constant 0 : index
    %205 = vector.load %arg4[%c4_50, %c0_51] : memref<6x256xf32, #tpu.memory_space<vmem>>, vector<2x256xf32>
    tpu.vector_store %arg4[%c4_50, %c0_51], %202 {strides = array<i32>} : memref<6x256xf32, #tpu.memory_space<vmem>>, vector<2x256xf32>,
    %c0_52 = arith.constant 0 : index
    %c0_53 = arith.constant 0 : index
    %206 = vector.load %arg4[%c0_52, %c0_53] : memref<6x256xf32, #tpu.memory_space<vmem>>, vector<6x256xf32>
    %cst_54 = arith.constant 0.000000e+00 : f32
    %207 = vector.broadcast %cst_54 : f32 to vector<6x256xf32>
    %c0_55 = arith.constant 0 : index
    %c0_56 = arith.constant 0 : index
    %208 = vector.load %arg2[%c0_55, %c0_56] : memref<6x135xf32, #tpu.memory_space<vmem>>, vector<6x1xf32>
    %209 = vector.broadcast %208 : vector<6x1xf32> to vector<6x256xf32>
    %210 = arith.mulf %209, %56 : vector<6x256xf32>
    %c0_57 = arith.constant 0 : index
    %c9_58 = arith.constant 9 : index
    %211 = vector.load %arg2[%c0_57, %c9_58] : memref<6x135xf32, #tpu.memory_space<vmem>>, vector<6x1xf32>
    %212 = vector.broadcast %211 : vector<6x1xf32> to vector<6x256xf32>
    %213 = arith.mulf %212, %60 : vector<6x256xf32>
    %214 = arith.addf %210, %213 : vector<6x256xf32>
    %c0_59 = arith.constant 0 : index
    %c18_60 = arith.constant 18 : index
    %215 = vector.load %arg2[%c0_59, %c18_60] : memref<6x135xf32, #tpu.memory_space<vmem>>, vector<6x1xf32>
    %216 = vector.broadcast %215 : vector<6x1xf32> to vector<6x256xf32>
    %217 = arith.mulf %216, %64 : vector<6x256xf32>
    %218 = arith.addf %214, %217 : vector<6x256xf32>
    %c0_61 = arith.constant 0 : index
    %c27_62 = arith.constant 27 : index
    %219 = vector.load %arg2[%c0_61, %c27_62] : memref<6x135xf32, #tpu.memory_space<vmem>>, vector<6x1xf32>
    %220 = vector.broadcast %219 : vector<6x1xf32> to vector<6x256xf32>
    %221 = arith.mulf %220, %206 : vector<6x256xf32>
    %222 = arith.addf %218, %221 : vector<6x256xf32>
    %c17_i32_63 = arith.constant 17 : i32
    %223 = tpu.dynamic_rotate %222 by %c17_i32_63 dim 1 : vector<6x256xf32>, i32 -> vector<6x256xf32>
    %224 = vector.broadcast %9 : vector<1x256xf32> to vector<6x256xf32>
    %225 = arith.mulf %223, %224 : vector<6x256xf32>
    %226 = arith.addf %207, %225 : vector<6x256xf32>
    %c0_64 = arith.constant 0 : index
    %c1_65 = arith.constant 1 : index
    %227 = vector.load %arg2[%c0_64, %c1_65] : memref<6x135xf32, #tpu.memory_space<vmem>>, vector<6x1xf32>
    %228 = vector.broadcast %227 : vector<6x1xf32> to vector<6x256xf32>
    %229 = arith.mulf %228, %56 : vector<6x256xf32>
    %c0_66 = arith.constant 0 : index
    %c10_67 = arith.constant 10 : index
    %230 = vector.load %arg2[%c0_66, %c10_67] : memref<6x135xf32, #tpu.memory_space<vmem>>, vector<6x1xf32>
    %231 = vector.broadcast %230 : vector<6x1xf32> to vector<6x256xf32>
    %232 = arith.mulf %231, %60 : vector<6x256xf32>
    %233 = arith.addf %229, %232 : vector<6x256xf32>
    %c0_68 = arith.constant 0 : index
    %c19_69 = arith.constant 19 : index
    %234 = vector.load %arg2[%c0_68, %c19_69] : memref<6x135xf32, #tpu.memory_space<vmem>>, vector<6x1xf32>
    %235 = vector.broadcast %234 : vector<6x1xf32> to vector<6x256xf32>
    %236 = arith.mulf %235, %64 : vector<6x256xf32>
    %237 = arith.addf %233, %236 : vector<6x256xf32>
    %c0_70 = arith.constant 0 : index
    %c28 = arith.constant 28 : index
    %238 = vector.load %arg2[%c0_70, %c28] : memref<6x135xf32, #tpu.memory_space<vmem>>, vector<6x1xf32>
    %239 = vector.broadcast %238 : vector<6x1xf32> to vector<6x256xf32>
    %240 = arith.mulf %239, %206 : vector<6x256xf32>
    %241 = arith.addf %237, %240 : vector<6x256xf32>
    %c16_i32_71 = arith.constant 16 : i32
    %242 = tpu.dynamic_rotate %241 by %c16_i32_71 dim 1 : vector<6x256xf32>, i32 -> vector<6x256xf32>
    %243 = vector.broadcast %13 : vector<1x256xf32> to vector<6x256xf32>
    %244 = arith.mulf %242, %243 : vector<6x256xf32>
    %245 = arith.addf %226, %244 : vector<6x256xf32>
    %c0_72 = arith.constant 0 : index
    %c2_73 = arith.constant 2 : index
    %246 = vector.load %arg2[%c0_72, %c2_73] : memref<6x135xf32, #tpu.memory_space<vmem>>, vector<6x1xf32>
    %247 = vector.broadcast %246 : vector<6x1xf32> to vector<6x256xf32>
    %248 = arith.mulf %247, %56 : vector<6x256xf32>
    %c0_74 = arith.constant 0 : index
    %c11_75 = arith.constant 11 : index
    %249 = vector.load %arg2[%c0_74, %c11_75] : memref<6x135xf32, #tpu.memory_space<vmem>>, vector<6x1xf32>
    %250 = vector.broadcast %249 : vector<6x1xf32> to vector<6x256xf32>
    %251 = arith.mulf %250, %60 : vector<6x256xf32>
    %252 = arith.addf %248, %251 : vector<6x256xf32>
    %c0_76 = arith.constant 0 : index
    %c20_77 = arith.constant 20 : index
    %253 = vector.load %arg2[%c0_76, %c20_77] : memref<6x135xf32, #tpu.memory_space<vmem>>, vector<6x1xf32>
    %254 = vector.broadcast %253 : vector<6x1xf32> to vector<6x256xf32>
    %255 = arith.mulf %254, %64 : vector<6x256xf32>
    %256 = arith.addf %252, %255 : vector<6x256xf32>
    %c0_78 = arith.constant 0 : index
    %c29 = arith.constant 29 : index
    %257 = vector.load %arg2[%c0_78, %c29] : memref<6x135xf32, #tpu.memory_space<vmem>>, vector<6x1xf32>
    %258 = vector.broadcast %257 : vector<6x1xf32> to vector<6x256xf32>
    %259 = arith.mulf %258, %206 : vector<6x256xf32>
    %260 = arith.addf %256, %259 : vector<6x256xf32>
    %c15_i32_79 = arith.constant 15 : i32
    %261 = tpu.dynamic_rotate %260 by %c15_i32_79 dim 1 : vector<6x256xf32>, i32 -> vector<6x256xf32>
    %262 = vector.broadcast %20 : vector<1x256xf32> to vector<6x256xf32>
    %263 = arith.mulf %261, %262 : vector<6x256xf32>
    %264 = arith.addf %245, %263 : vector<6x256xf32>
    %c0_80 = arith.constant 0 : index
    %c3_81 = arith.constant 3 : index
    %265 = vector.load %arg2[%c0_80, %c3_81] : memref<6x135xf32, #tpu.memory_space<vmem>>, vector<6x1xf32>
    %266 = vector.broadcast %265 : vector<6x1xf32> to vector<6x256xf32>
    %267 = arith.mulf %266, %56 : vector<6x256xf32>
    %c0_82 = arith.constant 0 : index
    %c12_83 = arith.constant 12 : index
    %268 = vector.load %arg2[%c0_82, %c12_83] : memref<6x135xf32, #tpu.memory_space<vmem>>, vector<6x1xf32>
    %269 = vector.broadcast %268 : vector<6x1xf32> to vector<6x256xf32>
    %270 = arith.mulf %269, %60 : vector<6x256xf32>
    %271 = arith.addf %267, %270 : vector<6x256xf32>
    %c0_84 = arith.constant 0 : index
    %c21_85 = arith.constant 21 : index
    %272 = vector.load %arg2[%c0_84, %c21_85] : memref<6x135xf32, #tpu.memory_space<vmem>>, vector<6x1xf32>
    %273 = vector.broadcast %272 : vector<6x1xf32> to vector<6x256xf32>
    %274 = arith.mulf %273, %64 : vector<6x256xf32>
    %275 = arith.addf %271, %274 : vector<6x256xf32>
    %c0_86 = arith.constant 0 : index
    %c30 = arith.constant 30 : index
    %276 = vector.load %arg2[%c0_86, %c30] : memref<6x135xf32, #tpu.memory_space<vmem>>, vector<6x1xf32>
    %277 = vector.broadcast %276 : vector<6x1xf32> to vector<6x256xf32>
    %278 = arith.mulf %277, %206 : vector<6x256xf32>
    %279 = arith.addf %275, %278 : vector<6x256xf32>
    %c1_i32_87 = arith.constant 1 : i32
    %280 = tpu.dynamic_rotate %279 by %c1_i32_87 dim 1 : vector<6x256xf32>, i32 -> vector<6x256xf32>
    %281 = vector.broadcast %24 : vector<1x256xf32> to vector<6x256xf32>
    %282 = arith.mulf %280, %281 : vector<6x256xf32>
    %283 = arith.addf %264, %282 : vector<6x256xf32>
    %c0_88 = arith.constant 0 : index
    %c4_89 = arith.constant 4 : index
    %284 = vector.load %arg2[%c0_88, %c4_89] : memref<6x135xf32, #tpu.memory_space<vmem>>, vector<6x1xf32>
    %285 = vector.broadcast %284 : vector<6x1xf32> to vector<6x256xf32>
    %286 = arith.mulf %285, %56 : vector<6x256xf32>
    %c0_90 = arith.constant 0 : index
    %c13_91 = arith.constant 13 : index
    %287 = vector.load %arg2[%c0_90, %c13_91] : memref<6x135xf32, #tpu.memory_space<vmem>>, vector<6x1xf32>
    %288 = vector.broadcast %287 : vector<6x1xf32> to vector<6x256xf32>
    %289 = arith.mulf %288, %60 : vector<6x256xf32>
    %290 = arith.addf %286, %289 : vector<6x256xf32>
    %c0_92 = arith.constant 0 : index
    %c22_93 = arith.constant 22 : index
    %291 = vector.load %arg2[%c0_92, %c22_93] : memref<6x135xf32, #tpu.memory_space<vmem>>, vector<6x1xf32>
    %292 = vector.broadcast %291 : vector<6x1xf32> to vector<6x256xf32>
    %293 = arith.mulf %292, %64 : vector<6x256xf32>
    %294 = arith.addf %290, %293 : vector<6x256xf32>
    %c0_94 = arith.constant 0 : index
    %c31 = arith.constant 31 : index
    %295 = vector.load %arg2[%c0_94, %c31] : memref<6x135xf32, #tpu.memory_space<vmem>>, vector<6x1xf32>
    %296 = vector.broadcast %295 : vector<6x1xf32> to vector<6x256xf32>
    %297 = arith.mulf %296, %206 : vector<6x256xf32>
    %298 = arith.addf %294, %297 : vector<6x256xf32>
    %299 = arith.addf %283, %298 : vector<6x256xf32>
    %c0_95 = arith.constant 0 : index
    %c5_96 = arith.constant 5 : index
    %300 = vector.load %arg2[%c0_95, %c5_96] : memref<6x135xf32, #tpu.memory_space<vmem>>, vector<6x1xf32>
    %301 = vector.broadcast %300 : vector<6x1xf32> to vector<6x256xf32>
    %302 = arith.mulf %301, %56 : vector<6x256xf32>
    %c0_97 = arith.constant 0 : index
    %c14_98 = arith.constant 14 : index
    %303 = vector.load %arg2[%c0_97, %c14_98] : memref<6x135xf32, #tpu.memory_space<vmem>>, vector<6x1xf32>
    %304 = vector.broadcast %303 : vector<6x1xf32> to vector<6x256xf32>
    %305 = arith.mulf %304, %60 : vector<6x256xf32>
    %306 = arith.addf %302, %305 : vector<6x256xf32>
    %c0_99 = arith.constant 0 : index
    %c23_100 = arith.constant 23 : index
    %307 = vector.load %arg2[%c0_99, %c23_100] : memref<6x135xf32, #tpu.memory_space<vmem>>, vector<6x1xf32>
    %308 = vector.broadcast %307 : vector<6x1xf32> to vector<6x256xf32>
    %309 = arith.mulf %308, %64 : vector<6x256xf32>
    %310 = arith.addf %306, %309 : vector<6x256xf32>
    %c0_101 = arith.constant 0 : index
    %c32 = arith.constant 32 : index
    %311 = vector.load %arg2[%c0_101, %c32] : memref<6x135xf32, #tpu.memory_space<vmem>>, vector<6x1xf32>
    %312 = vector.broadcast %311 : vector<6x1xf32> to vector<6x256xf32>
    %313 = arith.mulf %312, %206 : vector<6x256xf32>
    %314 = arith.addf %310, %313 : vector<6x256xf32>
    %c255_i32_102 = arith.constant 255 : i32
    %315 = tpu.dynamic_rotate %314 by %c255_i32_102 dim 1 : vector<6x256xf32>, i32 -> vector<6x256xf32>
    %316 = vector.broadcast %28 : vector<1x256xf32> to vector<6x256xf32>
    %317 = arith.mulf %315, %316 : vector<6x256xf32>
    %318 = arith.addf %299, %317 : vector<6x256xf32>
    %c0_103 = arith.constant 0 : index
    %c6_104 = arith.constant 6 : index
    %319 = vector.load %arg2[%c0_103, %c6_104] : memref<6x135xf32, #tpu.memory_space<vmem>>, vector<6x1xf32>
    %320 = vector.broadcast %319 : vector<6x1xf32> to vector<6x256xf32>
    %321 = arith.mulf %320, %56 : vector<6x256xf32>
    %c0_105 = arith.constant 0 : index
    %c15_106 = arith.constant 15 : index
    %322 = vector.load %arg2[%c0_105, %c15_106] : memref<6x135xf32, #tpu.memory_space<vmem>>, vector<6x1xf32>
    %323 = vector.broadcast %322 : vector<6x1xf32> to vector<6x256xf32>
    %324 = arith.mulf %323, %60 : vector<6x256xf32>
    %325 = arith.addf %321, %324 : vector<6x256xf32>
    %c0_107 = arith.constant 0 : index
    %c24_108 = arith.constant 24 : index
    %326 = vector.load %arg2[%c0_107, %c24_108] : memref<6x135xf32, #tpu.memory_space<vmem>>, vector<6x1xf32>
    %327 = vector.broadcast %326 : vector<6x1xf32> to vector<6x256xf32>
    %328 = arith.mulf %327, %64 : vector<6x256xf32>
    %329 = arith.addf %325, %328 : vector<6x256xf32>
    %c0_109 = arith.constant 0 : index
    %c33 = arith.constant 33 : index
    %330 = vector.load %arg2[%c0_109, %c33] : memref<6x135xf32, #tpu.memory_space<vmem>>, vector<6x1xf32>
    %331 = vector.broadcast %330 : vector<6x1xf32> to vector<6x256xf32>
    %332 = arith.mulf %331, %206 : vector<6x256xf32>
    %333 = arith.addf %329, %332 : vector<6x256xf32>
    %c241_i32_110 = arith.constant 241 : i32
    %334 = tpu.dynamic_rotate %333 by %c241_i32_110 dim 1 : vector<6x256xf32>, i32 -> vector<6x256xf32>
    %335 = vector.broadcast %35 : vector<1x256xf32> to vector<6x256xf32>
    %336 = arith.mulf %334, %335 : vector<6x256xf32>
    %337 = arith.addf %318, %336 : vector<6x256xf32>
    %c0_111 = arith.constant 0 : index
    %c7_112 = arith.constant 7 : index
    %338 = vector.load %arg2[%c0_111, %c7_112] : memref<6x135xf32, #tpu.memory_space<vmem>>, vector<6x1xf32>
    %339 = vector.broadcast %338 : vector<6x1xf32> to vector<6x256xf32>
    %340 = arith.mulf %339, %56 : vector<6x256xf32>
    %c0_113 = arith.constant 0 : index
    %c16_114 = arith.constant 16 : index
    %341 = vector.load %arg2[%c0_113, %c16_114] : memref<6x135xf32, #tpu.memory_space<vmem>>, vector<6x1xf32>
    %342 = vector.broadcast %341 : vector<6x1xf32> to vector<6x256xf32>
    %343 = arith.mulf %342, %60 : vector<6x256xf32>
    %344 = arith.addf %340, %343 : vector<6x256xf32>
    %c0_115 = arith.constant 0 : index
    %c25_116 = arith.constant 25 : index
    %345 = vector.load %arg2[%c0_115, %c25_116] : memref<6x135xf32, #tpu.memory_space<vmem>>, vector<6x1xf32>
    %346 = vector.broadcast %345 : vector<6x1xf32> to vector<6x256xf32>
    %347 = arith.mulf %346, %64 : vector<6x256xf32>
    %348 = arith.addf %344, %347 : vector<6x256xf32>
    %c0_117 = arith.constant 0 : index
    %c34 = arith.constant 34 : index
    %349 = vector.load %arg2[%c0_117, %c34] : memref<6x135xf32, #tpu.memory_space<vmem>>, vector<6x1xf32>
    %350 = vector.broadcast %349 : vector<6x1xf32> to vector<6x256xf32>
    %351 = arith.mulf %350, %206 : vector<6x256xf32>
    %352 = arith.addf %348, %351 : vector<6x256xf32>
    %c240_i32_118 = arith.constant 240 : i32
    %353 = tpu.dynamic_rotate %352 by %c240_i32_118 dim 1 : vector<6x256xf32>, i32 -> vector<6x256xf32>
    %354 = vector.broadcast %39 : vector<1x256xf32> to vector<6x256xf32>
    %355 = arith.mulf %353, %354 : vector<6x256xf32>
    %356 = arith.addf %337, %355 : vector<6x256xf32>
    %c0_119 = arith.constant 0 : index
    %c8_120 = arith.constant 8 : index
    %357 = vector.load %arg2[%c0_119, %c8_120] : memref<6x135xf32, #tpu.memory_space<vmem>>, vector<6x1xf32>
    %358 = vector.broadcast %357 : vector<6x1xf32> to vector<6x256xf32>
    %359 = arith.mulf %358, %56 : vector<6x256xf32>
    %c0_121 = arith.constant 0 : index
    %c17_122 = arith.constant 17 : index
    %360 = vector.load %arg2[%c0_121, %c17_122] : memref<6x135xf32, #tpu.memory_space<vmem>>, vector<6x1xf32>
    %361 = vector.broadcast %360 : vector<6x1xf32> to vector<6x256xf32>
    %362 = arith.mulf %361, %60 : vector<6x256xf32>
    %363 = arith.addf %359, %362 : vector<6x256xf32>
    %c0_123 = arith.constant 0 : index
    %c26_124 = arith.constant 26 : index
    %364 = vector.load %arg2[%c0_123, %c26_124] : memref<6x135xf32, #tpu.memory_space<vmem>>, vector<6x1xf32>
    %365 = vector.broadcast %364 : vector<6x1xf32> to vector<6x256xf32>
    %366 = arith.mulf %365, %64 : vector<6x256xf32>
    %367 = arith.addf %363, %366 : vector<6x256xf32>
    %c0_125 = arith.constant 0 : index
    %c35 = arith.constant 35 : index
    %368 = vector.load %arg2[%c0_125, %c35] : memref<6x135xf32, #tpu.memory_space<vmem>>, vector<6x1xf32>
    %369 = vector.broadcast %368 : vector<6x1xf32> to vector<6x256xf32>
    %370 = arith.mulf %369, %206 : vector<6x256xf32>
    %371 = arith.addf %367, %370 : vector<6x256xf32>
    %c239_i32_126 = arith.constant 239 : i32
    %372 = tpu.dynamic_rotate %371 by %c239_i32_126 dim 1 : vector<6x256xf32>, i32 -> vector<6x256xf32>
    %373 = vector.broadcast %46 : vector<1x256xf32> to vector<6x256xf32>
    %374 = arith.mulf %372, %373 : vector<6x256xf32>
    %375 = arith.addf %356, %374 : vector<6x256xf32>
    %376 = vector.extract_strided_slice %375 {offsets = [0, 0], sizes = [2, 256], strides = [1, 1]} : vector<6x256xf32> to vector<2x256xf32>
    %cst_127 = arith.constant dense<0.000000e+00> : vector<2xf32>
    %377 = vector.multi_reduction <add>, %376, %cst_127 [1] : vector<2x256xf32> to vector<2xf32>
    %378 = vector.shape_cast %377 : vector<2xf32> to vector<2x1xf32>
    %cst_128 = arith.constant dense<0.000000e+00> : vector<1xf32>
    %379 = vector.multi_reduction <add>, %378, %cst_128 [0] : vector<2x1xf32> to vector<1xf32>
    %380 = vector.shape_cast %379 : vector<1xf32> to vector<1x1xf32>
    %381 = arith.mulf %376, %376 : vector<2x256xf32>
    %cst_129 = arith.constant dense<0.000000e+00> : vector<2xf32>
    %382 = vector.multi_reduction <add>, %381, %cst_129 [1] : vector<2x256xf32> to vector<2xf32>
    %383 = vector.shape_cast %382 : vector<2xf32> to vector<2x1xf32>
    %cst_130 = arith.constant dense<0.000000e+00> : vector<1xf32>
    %384 = vector.multi_reduction <add>, %383, %cst_130 [0] : vector<2x1xf32> to vector<1xf32>
    %385 = vector.shape_cast %384 : vector<1xf32> to vector<1x1xf32>
    %cst_131 = arith.constant 0.001953125 : f32
    %386 = vector.broadcast %cst_131 : f32 to vector<1x1xf32>
    %387 = arith.mulf %380, %386 : vector<1x1xf32>
    %cst_132 = arith.constant 0.001953125 : f32
    %388 = vector.broadcast %cst_132 : f32 to vector<1x1xf32>
    %389 = arith.mulf %385, %388 : vector<1x1xf32>
    %390 = arith.mulf %387, %387 : vector<1x1xf32>
    %391 = arith.subf %389, %390 : vector<1x1xf32>
    %c112 = arith.constant 112 : index
    %392 = memref.load %arg0[%c112] : memref<130xf32, #tpu.memory_space<smem>>
    %cst_133 = arith.constant 9.99999974E-6 : f32
    %393 = vector.broadcast %cst_133 : f32 to vector<1x1xf32>
    %394 = arith.addf %391, %393 : vector<1x1xf32>
    %395 = math.rsqrt %394 : vector<1x1xf32>
    %396 = vector.broadcast %392 : f32 to vector<1x1xf32>
    %397 = arith.mulf %396, %395 : vector<1x1xf32>
    %c115 = arith.constant 115 : index
    %398 = memref.load %arg0[%c115] : memref<130xf32, #tpu.memory_space<smem>>
    %399 = arith.mulf %387, %397 : vector<1x1xf32>
    %400 = vector.broadcast %398 : f32 to vector<1x1xf32>
    %401 = arith.subf %400, %399 : vector<1x1xf32>
    %402 = vector.broadcast %397 : vector<1x1xf32> to vector<2x256xf32>
    %403 = arith.mulf %376, %402 : vector<2x256xf32>
    %404 = vector.broadcast %401 : vector<1x1xf32> to vector<2x256xf32>
    %405 = arith.addf %403, %404 : vector<2x256xf32>
    %406 = vector.extract_strided_slice %375 {offsets = [2, 0], sizes = [2, 256], strides = [1, 1]} : vector<6x256xf32> to vector<2x256xf32>
    %cst_134 = arith.constant dense<0.000000e+00> : vector<2xf32>
    %407 = vector.multi_reduction <add>, %406, %cst_134 [1] : vector<2x256xf32> to vector<2xf32>
    %408 = vector.shape_cast %407 : vector<2xf32> to vector<2x1xf32>
    %cst_135 = arith.constant dense<0.000000e+00> : vector<1xf32>
    %409 = vector.multi_reduction <add>, %408, %cst_135 [0] : vector<2x1xf32> to vector<1xf32>
    %410 = vector.shape_cast %409 : vector<1xf32> to vector<1x1xf32>
    %411 = arith.mulf %406, %406 : vector<2x256xf32>
    %cst_136 = arith.constant dense<0.000000e+00> : vector<2xf32>
    %412 = vector.multi_reduction <add>, %411, %cst_136 [1] : vector<2x256xf32> to vector<2xf32>
    %413 = vector.shape_cast %412 : vector<2xf32> to vector<2x1xf32>
    %cst_137 = arith.constant dense<0.000000e+00> : vector<1xf32>
    %414 = vector.multi_reduction <add>, %413, %cst_137 [0] : vector<2x1xf32> to vector<1xf32>
    %415 = vector.shape_cast %414 : vector<1xf32> to vector<1x1xf32>
    %cst_138 = arith.constant 0.001953125 : f32
    %416 = vector.broadcast %cst_138 : f32 to vector<1x1xf32>
    %417 = arith.mulf %410, %416 : vector<1x1xf32>
    %cst_139 = arith.constant 0.001953125 : f32
    %418 = vector.broadcast %cst_139 : f32 to vector<1x1xf32>
    %419 = arith.mulf %415, %418 : vector<1x1xf32>
    %420 = arith.mulf %417, %417 : vector<1x1xf32>
    %421 = arith.subf %419, %420 : vector<1x1xf32>
    %c113 = arith.constant 113 : index
    %422 = memref.load %arg0[%c113] : memref<130xf32, #tpu.memory_space<smem>>
    %cst_140 = arith.constant 9.99999974E-6 : f32
    %423 = vector.broadcast %cst_140 : f32 to vector<1x1xf32>
    %424 = arith.addf %421, %423 : vector<1x1xf32>
    %425 = math.rsqrt %424 : vector<1x1xf32>
    %426 = vector.broadcast %422 : f32 to vector<1x1xf32>
    %427 = arith.mulf %426, %425 : vector<1x1xf32>
    %c116 = arith.constant 116 : index
    %428 = memref.load %arg0[%c116] : memref<130xf32, #tpu.memory_space<smem>>
    %429 = arith.mulf %417, %427 : vector<1x1xf32>
    %430 = vector.broadcast %428 : f32 to vector<1x1xf32>
    %431 = arith.subf %430, %429 : vector<1x1xf32>
    %432 = vector.broadcast %427 : vector<1x1xf32> to vector<2x256xf32>
    %433 = arith.mulf %406, %432 : vector<2x256xf32>
    %434 = vector.broadcast %431 : vector<1x1xf32> to vector<2x256xf32>
    %435 = arith.addf %433, %434 : vector<2x256xf32>
    %436 = vector.extract_strided_slice %375 {offsets = [4, 0], sizes = [2, 256], strides = [1, 1]} : vector<6x256xf32> to vector<2x256xf32>
    %cst_141 = arith.constant dense<0.000000e+00> : vector<2xf32>
    %437 = vector.multi_reduction <add>, %436, %cst_141 [1] : vector<2x256xf32> to vector<2xf32>
    %438 = vector.shape_cast %437 : vector<2xf32> to vector<2x1xf32>
    %cst_142 = arith.constant dense<0.000000e+00> : vector<1xf32>
    %439 = vector.multi_reduction <add>, %438, %cst_142 [0] : vector<2x1xf32> to vector<1xf32>
    %440 = vector.shape_cast %439 : vector<1xf32> to vector<1x1xf32>
    %441 = arith.mulf %436, %436 : vector<2x256xf32>
    %cst_143 = arith.constant dense<0.000000e+00> : vector<2xf32>
    %442 = vector.multi_reduction <add>, %441, %cst_143 [1] : vector<2x256xf32> to vector<2xf32>
    %443 = vector.shape_cast %442 : vector<2xf32> to vector<2x1xf32>
    %cst_144 = arith.constant dense<0.000000e+00> : vector<1xf32>
    %444 = vector.multi_reduction <add>, %443, %cst_144 [0] : vector<2x1xf32> to vector<1xf32>
    %445 = vector.shape_cast %444 : vector<1xf32> to vector<1x1xf32>
    %cst_145 = arith.constant 0.001953125 : f32
    %446 = vector.broadcast %cst_145 : f32 to vector<1x1xf32>
    %447 = arith.mulf %440, %446 : vector<1x1xf32>
    %cst_146 = arith.constant 0.001953125 : f32
    %448 = vector.broadcast %cst_146 : f32 to vector<1x1xf32>
    %449 = arith.mulf %445, %448 : vector<1x1xf32>
    %450 = arith.mulf %447, %447 : vector<1x1xf32>
    %451 = arith.subf %449, %450 : vector<1x1xf32>
    %c114 = arith.constant 114 : index
    %452 = memref.load %arg0[%c114] : memref<130xf32, #tpu.memory_space<smem>>
    %cst_147 = arith.constant 9.99999974E-6 : f32
    %453 = vector.broadcast %cst_147 : f32 to vector<1x1xf32>
    %454 = arith.addf %451, %453 : vector<1x1xf32>
    %455 = math.rsqrt %454 : vector<1x1xf32>
    %456 = vector.broadcast %452 : f32 to vector<1x1xf32>
    %457 = arith.mulf %456, %455 : vector<1x1xf32>
    %c117 = arith.constant 117 : index
    %458 = memref.load %arg0[%c117] : memref<130xf32, #tpu.memory_space<smem>>
    %459 = arith.mulf %447, %457 : vector<1x1xf32>
    %460 = vector.broadcast %458 : f32 to vector<1x1xf32>
    %461 = arith.subf %460, %459 : vector<1x1xf32>
    %462 = vector.broadcast %457 : vector<1x1xf32> to vector<2x256xf32>
    %463 = arith.mulf %436, %462 : vector<2x256xf32>
    %464 = vector.broadcast %461 : vector<1x1xf32> to vector<2x256xf32>
    %465 = arith.addf %463, %464 : vector<2x256xf32>
    %cst_148 = arith.constant 0.000000e+00 : f32
    %466 = vector.broadcast %cst_148 : f32 to vector<2x256xf32>
    %c55 = arith.constant 55 : index
    %467 = memref.load %arg0[%c55] : memref<130xf32, #tpu.memory_space<smem>>
    %468 = vector.broadcast %467 : f32 to vector<2x256xf32>
    %469 = arith.addf %466, %468 : vector<2x256xf32>
    %c28_149 = arith.constant 28 : index
    %470 = memref.load %arg0[%c28_149] : memref<130xf32, #tpu.memory_space<smem>>
    %471 = vector.broadcast %470 : f32 to vector<2x256xf32>
    %472 = arith.mulf %471, %405 : vector<2x256xf32>
    %c37 = arith.constant 37 : index
    %473 = memref.load %arg0[%c37] : memref<130xf32, #tpu.memory_space<smem>>
    %474 = vector.broadcast %473 : f32 to vector<2x256xf32>
    %475 = arith.mulf %474, %435 : vector<2x256xf32>
    %476 = arith.addf %472, %475 : vector<2x256xf32>
    %c46 = arith.constant 46 : index
    %477 = memref.load %arg0[%c46] : memref<130xf32, #tpu.memory_space<smem>>
    %478 = vector.broadcast %477 : f32 to vector<2x256xf32>
    %479 = arith.mulf %478, %465 : vector<2x256xf32>
    %480 = arith.addf %476, %479 : vector<2x256xf32>
    %c17_i32_150 = arith.constant 17 : i32
    %481 = tpu.dynamic_rotate %480 by %c17_i32_150 dim 1 : vector<2x256xf32>, i32 -> vector<2x256xf32>
    %482 = vector.broadcast %9 : vector<1x256xf32> to vector<2x256xf32>
    %483 = arith.mulf %481, %482 : vector<2x256xf32>
    %484 = arith.addf %469, %483 : vector<2x256xf32>
    %c29_151 = arith.constant 29 : index
    %485 = memref.load %arg0[%c29_151] : memref<130xf32, #tpu.memory_space<smem>>
    %486 = vector.broadcast %485 : f32 to vector<2x256xf32>
    %487 = arith.mulf %486, %405 : vector<2x256xf32>
    %c38 = arith.constant 38 : index
    %488 = memref.load %arg0[%c38] : memref<130xf32, #tpu.memory_space<smem>>
    %489 = vector.broadcast %488 : f32 to vector<2x256xf32>
    %490 = arith.mulf %489, %435 : vector<2x256xf32>
    %491 = arith.addf %487, %490 : vector<2x256xf32>
    %c47 = arith.constant 47 : index
    %492 = memref.load %arg0[%c47] : memref<130xf32, #tpu.memory_space<smem>>
    %493 = vector.broadcast %492 : f32 to vector<2x256xf32>
    %494 = arith.mulf %493, %465 : vector<2x256xf32>
    %495 = arith.addf %491, %494 : vector<2x256xf32>
    %c16_i32_152 = arith.constant 16 : i32
    %496 = tpu.dynamic_rotate %495 by %c16_i32_152 dim 1 : vector<2x256xf32>, i32 -> vector<2x256xf32>
    %497 = vector.broadcast %13 : vector<1x256xf32> to vector<2x256xf32>
    %498 = arith.mulf %496, %497 : vector<2x256xf32>
    %499 = arith.addf %484, %498 : vector<2x256xf32>
    %c30_153 = arith.constant 30 : index
    %500 = memref.load %arg0[%c30_153] : memref<130xf32, #tpu.memory_space<smem>>
    %501 = vector.broadcast %500 : f32 to vector<2x256xf32>
    %502 = arith.mulf %501, %405 : vector<2x256xf32>
    %c39 = arith.constant 39 : index
    %503 = memref.load %arg0[%c39] : memref<130xf32, #tpu.memory_space<smem>>
    %504 = vector.broadcast %503 : f32 to vector<2x256xf32>
    %505 = arith.mulf %504, %435 : vector<2x256xf32>
    %506 = arith.addf %502, %505 : vector<2x256xf32>
    %c48 = arith.constant 48 : index
    %507 = memref.load %arg0[%c48] : memref<130xf32, #tpu.memory_space<smem>>
    %508 = vector.broadcast %507 : f32 to vector<2x256xf32>
    %509 = arith.mulf %508, %465 : vector<2x256xf32>
    %510 = arith.addf %506, %509 : vector<2x256xf32>
    %c15_i32_154 = arith.constant 15 : i32
    %511 = tpu.dynamic_rotate %510 by %c15_i32_154 dim 1 : vector<2x256xf32>, i32 -> vector<2x256xf32>
    %512 = vector.broadcast %20 : vector<1x256xf32> to vector<2x256xf32>
    %513 = arith.mulf %511, %512 : vector<2x256xf32>
    %514 = arith.addf %499, %513 : vector<2x256xf32>
    %c31_155 = arith.constant 31 : index
    %515 = memref.load %arg0[%c31_155] : memref<130xf32, #tpu.memory_space<smem>>
    %516 = vector.broadcast %515 : f32 to vector<2x256xf32>
    %517 = arith.mulf %516, %405 : vector<2x256xf32>
    %c40 = arith.constant 40 : index
    %518 = memref.load %arg0[%c40] : memref<130xf32, #tpu.memory_space<smem>>
    %519 = vector.broadcast %518 : f32 to vector<2x256xf32>
    %520 = arith.mulf %519, %435 : vector<2x256xf32>
    %521 = arith.addf %517, %520 : vector<2x256xf32>
    %c49 = arith.constant 49 : index
    %522 = memref.load %arg0[%c49] : memref<130xf32, #tpu.memory_space<smem>>
    %523 = vector.broadcast %522 : f32 to vector<2x256xf32>
    %524 = arith.mulf %523, %465 : vector<2x256xf32>
    %525 = arith.addf %521, %524 : vector<2x256xf32>
    %c1_i32_156 = arith.constant 1 : i32
    %526 = tpu.dynamic_rotate %525 by %c1_i32_156 dim 1 : vector<2x256xf32>, i32 -> vector<2x256xf32>
    %527 = vector.broadcast %24 : vector<1x256xf32> to vector<2x256xf32>
    %528 = arith.mulf %526, %527 : vector<2x256xf32>
    %529 = arith.addf %514, %528 : vector<2x256xf32>
    %c32_157 = arith.constant 32 : index
    %530 = memref.load %arg0[%c32_157] : memref<130xf32, #tpu.memory_space<smem>>
    %531 = vector.broadcast %530 : f32 to vector<2x256xf32>
    %532 = arith.mulf %531, %405 : vector<2x256xf32>
    %c41 = arith.constant 41 : index
    %533 = memref.load %arg0[%c41] : memref<130xf32, #tpu.memory_space<smem>>
    %534 = vector.broadcast %533 : f32 to vector<2x256xf32>
    %535 = arith.mulf %534, %435 : vector<2x256xf32>
    %536 = arith.addf %532, %535 : vector<2x256xf32>
    %c50 = arith.constant 50 : index
    %537 = memref.load %arg0[%c50] : memref<130xf32, #tpu.memory_space<smem>>
    %538 = vector.broadcast %537 : f32 to vector<2x256xf32>
    %539 = arith.mulf %538, %465 : vector<2x256xf32>
    %540 = arith.addf %536, %539 : vector<2x256xf32>
    %541 = arith.addf %529, %540 : vector<2x256xf32>
    %c33_158 = arith.constant 33 : index
    %542 = memref.load %arg0[%c33_158] : memref<130xf32, #tpu.memory_space<smem>>
    %543 = vector.broadcast %542 : f32 to vector<2x256xf32>
    %544 = arith.mulf %543, %405 : vector<2x256xf32>
    %c42 = arith.constant 42 : index
    %545 = memref.load %arg0[%c42] : memref<130xf32, #tpu.memory_space<smem>>
    %546 = vector.broadcast %545 : f32 to vector<2x256xf32>
    %547 = arith.mulf %546, %435 : vector<2x256xf32>
    %548 = arith.addf %544, %547 : vector<2x256xf32>
    %c51 = arith.constant 51 : index
    %549 = memref.load %arg0[%c51] : memref<130xf32, #tpu.memory_space<smem>>
    %550 = vector.broadcast %549 : f32 to vector<2x256xf32>
    %551 = arith.mulf %550, %465 : vector<2x256xf32>
    %552 = arith.addf %548, %551 : vector<2x256xf32>
    %c255_i32_159 = arith.constant 255 : i32
    %553 = tpu.dynamic_rotate %552 by %c255_i32_159 dim 1 : vector<2x256xf32>, i32 -> vector<2x256xf32>
    %554 = vector.broadcast %28 : vector<1x256xf32> to vector<2x256xf32>
    %555 = arith.mulf %553, %554 : vector<2x256xf32>
    %556 = arith.addf %541, %555 : vector<2x256xf32>
    %c34_160 = arith.constant 34 : index
    %557 = memref.load %arg0[%c34_160] : memref<130xf32, #tpu.memory_space<smem>>
    %558 = vector.broadcast %557 : f32 to vector<2x256xf32>
    %559 = arith.mulf %558, %405 : vector<2x256xf32>
    %c43 = arith.constant 43 : index
    %560 = memref.load %arg0[%c43] : memref<130xf32, #tpu.memory_space<smem>>
    %561 = vector.broadcast %560 : f32 to vector<2x256xf32>
    %562 = arith.mulf %561, %435 : vector<2x256xf32>
    %563 = arith.addf %559, %562 : vector<2x256xf32>
    %c52 = arith.constant 52 : index
    %564 = memref.load %arg0[%c52] : memref<130xf32, #tpu.memory_space<smem>>
    %565 = vector.broadcast %564 : f32 to vector<2x256xf32>
    %566 = arith.mulf %565, %465 : vector<2x256xf32>
    %567 = arith.addf %563, %566 : vector<2x256xf32>
    %c241_i32_161 = arith.constant 241 : i32
    %568 = tpu.dynamic_rotate %567 by %c241_i32_161 dim 1 : vector<2x256xf32>, i32 -> vector<2x256xf32>
    %569 = vector.broadcast %35 : vector<1x256xf32> to vector<2x256xf32>
    %570 = arith.mulf %568, %569 : vector<2x256xf32>
    %571 = arith.addf %556, %570 : vector<2x256xf32>
    %c35_162 = arith.constant 35 : index
    %572 = memref.load %arg0[%c35_162] : memref<130xf32, #tpu.memory_space<smem>>
    %573 = vector.broadcast %572 : f32 to vector<2x256xf32>
    %574 = arith.mulf %573, %405 : vector<2x256xf32>
    %c44 = arith.constant 44 : index
    %575 = memref.load %arg0[%c44] : memref<130xf32, #tpu.memory_space<smem>>
    %576 = vector.broadcast %575 : f32 to vector<2x256xf32>
    %577 = arith.mulf %576, %435 : vector<2x256xf32>
    %578 = arith.addf %574, %577 : vector<2x256xf32>
    %c53 = arith.constant 53 : index
    %579 = memref.load %arg0[%c53] : memref<130xf32, #tpu.memory_space<smem>>
    %580 = vector.broadcast %579 : f32 to vector<2x256xf32>
    %581 = arith.mulf %580, %465 : vector<2x256xf32>
    %582 = arith.addf %578, %581 : vector<2x256xf32>
    %c240_i32_163 = arith.constant 240 : i32
    %583 = tpu.dynamic_rotate %582 by %c240_i32_163 dim 1 : vector<2x256xf32>, i32 -> vector<2x256xf32>
    %584 = vector.broadcast %39 : vector<1x256xf32> to vector<2x256xf32>
    %585 = arith.mulf %583, %584 : vector<2x256xf32>
    %586 = arith.addf %571, %585 : vector<2x256xf32>
    %c36 = arith.constant 36 : index
    %587 = memref.load %arg0[%c36] : memref<130xf32, #tpu.memory_space<smem>>
    %588 = vector.broadcast %587 : f32 to vector<2x256xf32>
    %589 = arith.mulf %588, %405 : vector<2x256xf32>
    %c45 = arith.constant 45 : index
    %590 = memref.load %arg0[%c45] : memref<130xf32, #tpu.memory_space<smem>>
    %591 = vector.broadcast %590 : f32 to vector<2x256xf32>
    %592 = arith.mulf %591, %435 : vector<2x256xf32>
    %593 = arith.addf %589, %592 : vector<2x256xf32>
    %c54 = arith.constant 54 : index
    %594 = memref.load %arg0[%c54] : memref<130xf32, #tpu.memory_space<smem>>
    %595 = vector.broadcast %594 : f32 to vector<2x256xf32>
    %596 = arith.mulf %595, %465 : vector<2x256xf32>
    %597 = arith.addf %593, %596 : vector<2x256xf32>
    %c239_i32_164 = arith.constant 239 : i32
    %598 = tpu.dynamic_rotate %597 by %c239_i32_164 dim 1 : vector<2x256xf32>, i32 -> vector<2x256xf32>
    %599 = vector.broadcast %46 : vector<1x256xf32> to vector<2x256xf32>
    %600 = arith.mulf %598, %599 : vector<2x256xf32>
    %601 = arith.addf %586, %600 : vector<2x256xf32>
    %cst_165 = arith.constant 0.000000e+00 : f32
    %602 = vector.broadcast %cst_165 : f32 to vector<2x256xf32>
    %603 = arith.maximumf %601, %602 : vector<2x256xf32>
    %c0_166 = arith.constant 0 : index
    %c0_167 = arith.constant 0 : index
    %604 = vector.load %arg4[%c0_166, %c0_167] : memref<6x256xf32, #tpu.memory_space<vmem>>, vector<2x256xf32>
    tpu.vector_store %arg4[%c0_166, %c0_167], %603 {strides = array<i32>} : memref<6x256xf32, #tpu.memory_space<vmem>>, vector<2x256xf32>,
    %c2_168 = arith.constant 2 : index
    %c0_169 = arith.constant 0 : index
    %605 = vector.load %arg4[%c2_168, %c0_169] : memref<6x256xf32, #tpu.memory_space<vmem>>, vector<2x256xf32>
    tpu.vector_store %arg4[%c2_168, %c0_169], %603 {strides = array<i32>} : memref<6x256xf32, #tpu.memory_space<vmem>>, vector<2x256xf32>,
    %c4_170 = arith.constant 4 : index
    %c0_171 = arith.constant 0 : index
    %606 = vector.load %arg4[%c4_170, %c0_171] : memref<6x256xf32, #tpu.memory_space<vmem>>, vector<2x256xf32>
    tpu.vector_store %arg4[%c4_170, %c0_171], %603 {strides = array<i32>} : memref<6x256xf32, #tpu.memory_space<vmem>>, vector<2x256xf32>,
    %c0_172 = arith.constant 0 : index
    %c0_173 = arith.constant 0 : index
    %607 = vector.load %arg4[%c0_172, %c0_173] : memref<6x256xf32, #tpu.memory_space<vmem>>, vector<6x256xf32>
    %cst_174 = arith.constant 0.000000e+00 : f32
    %608 = vector.broadcast %cst_174 : f32 to vector<6x256xf32>
    %c0_175 = arith.constant 0 : index
    %c36_176 = arith.constant 36 : index
    %609 = vector.load %arg2[%c0_175, %c36_176] : memref<6x135xf32, #tpu.memory_space<vmem>>, vector<6x1xf32>
    %610 = vector.broadcast %609 : vector<6x1xf32> to vector<6x256xf32>
    %611 = arith.mulf %610, %56 : vector<6x256xf32>
    %c0_177 = arith.constant 0 : index
    %c45_178 = arith.constant 45 : index
    %612 = vector.load %arg2[%c0_177, %c45_178] : memref<6x135xf32, #tpu.memory_space<vmem>>, vector<6x1xf32>
    %613 = vector.broadcast %612 : vector<6x1xf32> to vector<6x256xf32>
    %614 = arith.mulf %613, %60 : vector<6x256xf32>
    %615 = arith.addf %611, %614 : vector<6x256xf32>
    %c0_179 = arith.constant 0 : index
    %c54_180 = arith.constant 54 : index
    %616 = vector.load %arg2[%c0_179, %c54_180] : memref<6x135xf32, #tpu.memory_space<vmem>>, vector<6x1xf32>
    %617 = vector.broadcast %616 : vector<6x1xf32> to vector<6x256xf32>
    %618 = arith.mulf %617, %64 : vector<6x256xf32>
    %619 = arith.addf %615, %618 : vector<6x256xf32>
    %c0_181 = arith.constant 0 : index
    %c63 = arith.constant 63 : index
    %620 = vector.load %arg2[%c0_181, %c63] : memref<6x135xf32, #tpu.memory_space<vmem>>, vector<6x1xf32>
    %621 = vector.broadcast %620 : vector<6x1xf32> to vector<6x256xf32>
    %622 = arith.mulf %621, %206 : vector<6x256xf32>
    %623 = arith.addf %619, %622 : vector<6x256xf32>
    %c0_182 = arith.constant 0 : index
    %c72 = arith.constant 72 : index
    %624 = vector.load %arg2[%c0_182, %c72] : memref<6x135xf32, #tpu.memory_space<vmem>>, vector<6x1xf32>
    %625 = vector.broadcast %624 : vector<6x1xf32> to vector<6x256xf32>
    %626 = arith.mulf %625, %607 : vector<6x256xf32>
    %627 = arith.addf %623, %626 : vector<6x256xf32>
    %c17_i32_183 = arith.constant 17 : i32
    %628 = tpu.dynamic_rotate %627 by %c17_i32_183 dim 1 : vector<6x256xf32>, i32 -> vector<6x256xf32>
    %629 = vector.broadcast %9 : vector<1x256xf32> to vector<6x256xf32>
    %630 = arith.mulf %628, %629 : vector<6x256xf32>
    %631 = arith.addf %608, %630 : vector<6x256xf32>
    %c0_184 = arith.constant 0 : index
    %c37_185 = arith.constant 37 : index
    %632 = vector.load %arg2[%c0_184, %c37_185] : memref<6x135xf32, #tpu.memory_space<vmem>>, vector<6x1xf32>
    %633 = vector.broadcast %632 : vector<6x1xf32> to vector<6x256xf32>
    %634 = arith.mulf %633, %56 : vector<6x256xf32>
    %c0_186 = arith.constant 0 : index
    %c46_187 = arith.constant 46 : index
    %635 = vector.load %arg2[%c0_186, %c46_187] : memref<6x135xf32, #tpu.memory_space<vmem>>, vector<6x1xf32>
    %636 = vector.broadcast %635 : vector<6x1xf32> to vector<6x256xf32>
    %637 = arith.mulf %636, %60 : vector<6x256xf32>
    %638 = arith.addf %634, %637 : vector<6x256xf32>
    %c0_188 = arith.constant 0 : index
    %c55_189 = arith.constant 55 : index
    %639 = vector.load %arg2[%c0_188, %c55_189] : memref<6x135xf32, #tpu.memory_space<vmem>>, vector<6x1xf32>
    %640 = vector.broadcast %639 : vector<6x1xf32> to vector<6x256xf32>
    %641 = arith.mulf %640, %64 : vector<6x256xf32>
    %642 = arith.addf %638, %641 : vector<6x256xf32>
    %c0_190 = arith.constant 0 : index
    %c64 = arith.constant 64 : index
    %643 = vector.load %arg2[%c0_190, %c64] : memref<6x135xf32, #tpu.memory_space<vmem>>, vector<6x1xf32>
    %644 = vector.broadcast %643 : vector<6x1xf32> to vector<6x256xf32>
    %645 = arith.mulf %644, %206 : vector<6x256xf32>
    %646 = arith.addf %642, %645 : vector<6x256xf32>
    %c0_191 = arith.constant 0 : index
    %c73 = arith.constant 73 : index
    %647 = vector.load %arg2[%c0_191, %c73] : memref<6x135xf32, #tpu.memory_space<vmem>>, vector<6x1xf32>
    %648 = vector.broadcast %647 : vector<6x1xf32> to vector<6x256xf32>
    %649 = arith.mulf %648, %607 : vector<6x256xf32>
    %650 = arith.addf %646, %649 : vector<6x256xf32>
    %c16_i32_192 = arith.constant 16 : i32
    %651 = tpu.dynamic_rotate %650 by %c16_i32_192 dim 1 : vector<6x256xf32>, i32 -> vector<6x256xf32>
    %652 = vector.broadcast %13 : vector<1x256xf32> to vector<6x256xf32>
    %653 = arith.mulf %651, %652 : vector<6x256xf32>
    %654 = arith.addf %631, %653 : vector<6x256xf32>
    %c0_193 = arith.constant 0 : index
    %c38_194 = arith.constant 38 : index
    %655 = vector.load %arg2[%c0_193, %c38_194] : memref<6x135xf32, #tpu.memory_space<vmem>>, vector<6x1xf32>
    %656 = vector.broadcast %655 : vector<6x1xf32> to vector<6x256xf32>
    %657 = arith.mulf %656, %56 : vector<6x256xf32>
    %c0_195 = arith.constant 0 : index
    %c47_196 = arith.constant 47 : index
    %658 = vector.load %arg2[%c0_195, %c47_196] : memref<6x135xf32, #tpu.memory_space<vmem>>, vector<6x1xf32>
    %659 = vector.broadcast %658 : vector<6x1xf32> to vector<6x256xf32>
    %660 = arith.mulf %659, %60 : vector<6x256xf32>
    %661 = arith.addf %657, %660 : vector<6x256xf32>
    %c0_197 = arith.constant 0 : index
    %c56 = arith.constant 56 : index
    %662 = vector.load %arg2[%c0_197, %c56] : memref<6x135xf32, #tpu.memory_space<vmem>>, vector<6x1xf32>
    %663 = vector.broadcast %662 : vector<6x1xf32> to vector<6x256xf32>
    %664 = arith.mulf %663, %64 : vector<6x256xf32>
    %665 = arith.addf %661, %664 : vector<6x256xf32>
    %c0_198 = arith.constant 0 : index
    %c65 = arith.constant 65 : index
    %666 = vector.load %arg2[%c0_198, %c65] : memref<6x135xf32, #tpu.memory_space<vmem>>, vector<6x1xf32>
    %667 = vector.broadcast %666 : vector<6x1xf32> to vector<6x256xf32>
    %668 = arith.mulf %667, %206 : vector<6x256xf32>
    %669 = arith.addf %665, %668 : vector<6x256xf32>
    %c0_199 = arith.constant 0 : index
    %c74 = arith.constant 74 : index
    %670 = vector.load %arg2[%c0_199, %c74] : memref<6x135xf32, #tpu.memory_space<vmem>>, vector<6x1xf32>
    %671 = vector.broadcast %670 : vector<6x1xf32> to vector<6x256xf32>
    %672 = arith.mulf %671, %607 : vector<6x256xf32>
    %673 = arith.addf %669, %672 : vector<6x256xf32>
    %c15_i32_200 = arith.constant 15 : i32
    %674 = tpu.dynamic_rotate %673 by %c15_i32_200 dim 1 : vector<6x256xf32>, i32 -> vector<6x256xf32>
    %675 = vector.broadcast %20 : vector<1x256xf32> to vector<6x256xf32>
    %676 = arith.mulf %674, %675 : vector<6x256xf32>
    %677 = arith.addf %654, %676 : vector<6x256xf32>
    %c0_201 = arith.constant 0 : index
    %c39_202 = arith.constant 39 : index
    %678 = vector.load %arg2[%c0_201, %c39_202] : memref<6x135xf32, #tpu.memory_space<vmem>>, vector<6x1xf32>
    %679 = vector.broadcast %678 : vector<6x1xf32> to vector<6x256xf32>
    %680 = arith.mulf %679, %56 : vector<6x256xf32>
    %c0_203 = arith.constant 0 : index
    %c48_204 = arith.constant 48 : index
    %681 = vector.load %arg2[%c0_203, %c48_204] : memref<6x135xf32, #tpu.memory_space<vmem>>, vector<6x1xf32>
    %682 = vector.broadcast %681 : vector<6x1xf32> to vector<6x256xf32>
    %683 = arith.mulf %682, %60 : vector<6x256xf32>
    %684 = arith.addf %680, %683 : vector<6x256xf32>
    %c0_205 = arith.constant 0 : index
    %c57 = arith.constant 57 : index
    %685 = vector.load %arg2[%c0_205, %c57] : memref<6x135xf32, #tpu.memory_space<vmem>>, vector<6x1xf32>
    %686 = vector.broadcast %685 : vector<6x1xf32> to vector<6x256xf32>
    %687 = arith.mulf %686, %64 : vector<6x256xf32>
    %688 = arith.addf %684, %687 : vector<6x256xf32>
    %c0_206 = arith.constant 0 : index
    %c66 = arith.constant 66 : index
    %689 = vector.load %arg2[%c0_206, %c66] : memref<6x135xf32, #tpu.memory_space<vmem>>, vector<6x1xf32>
    %690 = vector.broadcast %689 : vector<6x1xf32> to vector<6x256xf32>
    %691 = arith.mulf %690, %206 : vector<6x256xf32>
    %692 = arith.addf %688, %691 : vector<6x256xf32>
    %c0_207 = arith.constant 0 : index
    %c75 = arith.constant 75 : index
    %693 = vector.load %arg2[%c0_207, %c75] : memref<6x135xf32, #tpu.memory_space<vmem>>, vector<6x1xf32>
    %694 = vector.broadcast %693 : vector<6x1xf32> to vector<6x256xf32>
    %695 = arith.mulf %694, %607 : vector<6x256xf32>
    %696 = arith.addf %692, %695 : vector<6x256xf32>
    %c1_i32_208 = arith.constant 1 : i32
    %697 = tpu.dynamic_rotate %696 by %c1_i32_208 dim 1 : vector<6x256xf32>, i32 -> vector<6x256xf32>
    %698 = vector.broadcast %24 : vector<1x256xf32> to vector<6x256xf32>
    %699 = arith.mulf %697, %698 : vector<6x256xf32>
    %700 = arith.addf %677, %699 : vector<6x256xf32>
    %c0_209 = arith.constant 0 : index
    %c40_210 = arith.constant 40 : index
    %701 = vector.load %arg2[%c0_209, %c40_210] : memref<6x135xf32, #tpu.memory_space<vmem>>, vector<6x1xf32>
    %702 = vector.broadcast %701 : vector<6x1xf32> to vector<6x256xf32>
    %703 = arith.mulf %702, %56 : vector<6x256xf32>
    %c0_211 = arith.constant 0 : index
    %c49_212 = arith.constant 49 : index
    %704 = vector.load %arg2[%c0_211, %c49_212] : memref<6x135xf32, #tpu.memory_space<vmem>>, vector<6x1xf32>
    %705 = vector.broadcast %704 : vector<6x1xf32> to vector<6x256xf32>
    %706 = arith.mulf %705, %60 : vector<6x256xf32>
    %707 = arith.addf %703, %706 : vector<6x256xf32>
    %c0_213 = arith.constant 0 : index
    %c58 = arith.constant 58 : index
    %708 = vector.load %arg2[%c0_213, %c58] : memref<6x135xf32, #tpu.memory_space<vmem>>, vector<6x1xf32>
    %709 = vector.broadcast %708 : vector<6x1xf32> to vector<6x256xf32>
    %710 = arith.mulf %709, %64 : vector<6x256xf32>
    %711 = arith.addf %707, %710 : vector<6x256xf32>
    %c0_214 = arith.constant 0 : index
    %c67 = arith.constant 67 : index
    %712 = vector.load %arg2[%c0_214, %c67] : memref<6x135xf32, #tpu.memory_space<vmem>>, vector<6x1xf32>
    %713 = vector.broadcast %712 : vector<6x1xf32> to vector<6x256xf32>
    %714 = arith.mulf %713, %206 : vector<6x256xf32>
    %715 = arith.addf %711, %714 : vector<6x256xf32>
    %c0_215 = arith.constant 0 : index
    %c76 = arith.constant 76 : index
    %716 = vector.load %arg2[%c0_215, %c76] : memref<6x135xf32, #tpu.memory_space<vmem>>, vector<6x1xf32>
    %717 = vector.broadcast %716 : vector<6x1xf32> to vector<6x256xf32>
    %718 = arith.mulf %717, %607 : vector<6x256xf32>
    %719 = arith.addf %715, %718 : vector<6x256xf32>
    %720 = arith.addf %700, %719 : vector<6x256xf32>
    %c0_216 = arith.constant 0 : index
    %c41_217 = arith.constant 41 : index
    %721 = vector.load %arg2[%c0_216, %c41_217] : memref<6x135xf32, #tpu.memory_space<vmem>>, vector<6x1xf32>
    %722 = vector.broadcast %721 : vector<6x1xf32> to vector<6x256xf32>
    %723 = arith.mulf %722, %56 : vector<6x256xf32>
    %c0_218 = arith.constant 0 : index
    %c50_219 = arith.constant 50 : index
    %724 = vector.load %arg2[%c0_218, %c50_219] : memref<6x135xf32, #tpu.memory_space<vmem>>, vector<6x1xf32>
    %725 = vector.broadcast %724 : vector<6x1xf32> to vector<6x256xf32>
    %726 = arith.mulf %725, %60 : vector<6x256xf32>
    %727 = arith.addf %723, %726 : vector<6x256xf32>
    %c0_220 = arith.constant 0 : index
    %c59 = arith.constant 59 : index
    %728 = vector.load %arg2[%c0_220, %c59] : memref<6x135xf32, #tpu.memory_space<vmem>>, vector<6x1xf32>
    %729 = vector.broadcast %728 : vector<6x1xf32> to vector<6x256xf32>
    %730 = arith.mulf %729, %64 : vector<6x256xf32>
    %731 = arith.addf %727, %730 : vector<6x256xf32>
    %c0_221 = arith.constant 0 : index
    %c68 = arith.constant 68 : index
    %732 = vector.load %arg2[%c0_221, %c68] : memref<6x135xf32, #tpu.memory_space<vmem>>, vector<6x1xf32>
    %733 = vector.broadcast %732 : vector<6x1xf32> to vector<6x256xf32>
    %734 = arith.mulf %733, %206 : vector<6x256xf32>
    %735 = arith.addf %731, %734 : vector<6x256xf32>
    %c0_222 = arith.constant 0 : index
    %c77 = arith.constant 77 : index
    %736 = vector.load %arg2[%c0_222, %c77] : memref<6x135xf32, #tpu.memory_space<vmem>>, vector<6x1xf32>
    %737 = vector.broadcast %736 : vector<6x1xf32> to vector<6x256xf32>
    %738 = arith.mulf %737, %607 : vector<6x256xf32>
    %739 = arith.addf %735, %738 : vector<6x256xf32>
    %c255_i32_223 = arith.constant 255 : i32
    %740 = tpu.dynamic_rotate %739 by %c255_i32_223 dim 1 : vector<6x256xf32>, i32 -> vector<6x256xf32>
    %741 = vector.broadcast %28 : vector<1x256xf32> to vector<6x256xf32>
    %742 = arith.mulf %740, %741 : vector<6x256xf32>
    %743 = arith.addf %720, %742 : vector<6x256xf32>
    %c0_224 = arith.constant 0 : index
    %c42_225 = arith.constant 42 : index
    %744 = vector.load %arg2[%c0_224, %c42_225] : memref<6x135xf32, #tpu.memory_space<vmem>>, vector<6x1xf32>
    %745 = vector.broadcast %744 : vector<6x1xf32> to vector<6x256xf32>
    %746 = arith.mulf %745, %56 : vector<6x256xf32>
    %c0_226 = arith.constant 0 : index
    %c51_227 = arith.constant 51 : index
    %747 = vector.load %arg2[%c0_226, %c51_227] : memref<6x135xf32, #tpu.memory_space<vmem>>, vector<6x1xf32>
    %748 = vector.broadcast %747 : vector<6x1xf32> to vector<6x256xf32>
    %749 = arith.mulf %748, %60 : vector<6x256xf32>
    %750 = arith.addf %746, %749 : vector<6x256xf32>
    %c0_228 = arith.constant 0 : index
    %c60 = arith.constant 60 : index
    %751 = vector.load %arg2[%c0_228, %c60] : memref<6x135xf32, #tpu.memory_space<vmem>>, vector<6x1xf32>
    %752 = vector.broadcast %751 : vector<6x1xf32> to vector<6x256xf32>
    %753 = arith.mulf %752, %64 : vector<6x256xf32>
    %754 = arith.addf %750, %753 : vector<6x256xf32>
    %c0_229 = arith.constant 0 : index
    %c69 = arith.constant 69 : index
    %755 = vector.load %arg2[%c0_229, %c69] : memref<6x135xf32, #tpu.memory_space<vmem>>, vector<6x1xf32>
    %756 = vector.broadcast %755 : vector<6x1xf32> to vector<6x256xf32>
    %757 = arith.mulf %756, %206 : vector<6x256xf32>
    %758 = arith.addf %754, %757 : vector<6x256xf32>
    %c0_230 = arith.constant 0 : index
    %c78 = arith.constant 78 : index
    %759 = vector.load %arg2[%c0_230, %c78] : memref<6x135xf32, #tpu.memory_space<vmem>>, vector<6x1xf32>
    %760 = vector.broadcast %759 : vector<6x1xf32> to vector<6x256xf32>
    %761 = arith.mulf %760, %607 : vector<6x256xf32>
    %762 = arith.addf %758, %761 : vector<6x256xf32>
    %c241_i32_231 = arith.constant 241 : i32
    %763 = tpu.dynamic_rotate %762 by %c241_i32_231 dim 1 : vector<6x256xf32>, i32 -> vector<6x256xf32>
    %764 = vector.broadcast %35 : vector<1x256xf32> to vector<6x256xf32>
    %765 = arith.mulf %763, %764 : vector<6x256xf32>
    %766 = arith.addf %743, %765 : vector<6x256xf32>
    %c0_232 = arith.constant 0 : index
    %c43_233 = arith.constant 43 : index
    %767 = vector.load %arg2[%c0_232, %c43_233] : memref<6x135xf32, #tpu.memory_space<vmem>>, vector<6x1xf32>
    %768 = vector.broadcast %767 : vector<6x1xf32> to vector<6x256xf32>
    %769 = arith.mulf %768, %56 : vector<6x256xf32>
    %c0_234 = arith.constant 0 : index
    %c52_235 = arith.constant 52 : index
    %770 = vector.load %arg2[%c0_234, %c52_235] : memref<6x135xf32, #tpu.memory_space<vmem>>, vector<6x1xf32>
    %771 = vector.broadcast %770 : vector<6x1xf32> to vector<6x256xf32>
    %772 = arith.mulf %771, %60 : vector<6x256xf32>
    %773 = arith.addf %769, %772 : vector<6x256xf32>
    %c0_236 = arith.constant 0 : index
    %c61 = arith.constant 61 : index
    %774 = vector.load %arg2[%c0_236, %c61] : memref<6x135xf32, #tpu.memory_space<vmem>>, vector<6x1xf32>
    %775 = vector.broadcast %774 : vector<6x1xf32> to vector<6x256xf32>
    %776 = arith.mulf %775, %64 : vector<6x256xf32>
    %777 = arith.addf %773, %776 : vector<6x256xf32>
    %c0_237 = arith.constant 0 : index
    %c70 = arith.constant 70 : index
    %778 = vector.load %arg2[%c0_237, %c70] : memref<6x135xf32, #tpu.memory_space<vmem>>, vector<6x1xf32>
    %779 = vector.broadcast %778 : vector<6x1xf32> to vector<6x256xf32>
    %780 = arith.mulf %779, %206 : vector<6x256xf32>
    %781 = arith.addf %777, %780 : vector<6x256xf32>
    %c0_238 = arith.constant 0 : index
    %c79 = arith.constant 79 : index
    %782 = vector.load %arg2[%c0_238, %c79] : memref<6x135xf32, #tpu.memory_space<vmem>>, vector<6x1xf32>
    %783 = vector.broadcast %782 : vector<6x1xf32> to vector<6x256xf32>
    %784 = arith.mulf %783, %607 : vector<6x256xf32>
    %785 = arith.addf %781, %784 : vector<6x256xf32>
    %c240_i32_239 = arith.constant 240 : i32
    %786 = tpu.dynamic_rotate %785 by %c240_i32_239 dim 1 : vector<6x256xf32>, i32 -> vector<6x256xf32>
    %787 = vector.broadcast %39 : vector<1x256xf32> to vector<6x256xf32>
    %788 = arith.mulf %786, %787 : vector<6x256xf32>
    %789 = arith.addf %766, %788 : vector<6x256xf32>
    %c0_240 = arith.constant 0 : index
    %c44_241 = arith.constant 44 : index
    %790 = vector.load %arg2[%c0_240, %c44_241] : memref<6x135xf32, #tpu.memory_space<vmem>>, vector<6x1xf32>
    %791 = vector.broadcast %790 : vector<6x1xf32> to vector<6x256xf32>
    %792 = arith.mulf %791, %56 : vector<6x256xf32>
    %c0_242 = arith.constant 0 : index
    %c53_243 = arith.constant 53 : index
    %793 = vector.load %arg2[%c0_242, %c53_243] : memref<6x135xf32, #tpu.memory_space<vmem>>, vector<6x1xf32>
    %794 = vector.broadcast %793 : vector<6x1xf32> to vector<6x256xf32>
    %795 = arith.mulf %794, %60 : vector<6x256xf32>
    %796 = arith.addf %792, %795 : vector<6x256xf32>
    %c0_244 = arith.constant 0 : index
    %c62 = arith.constant 62 : index
    %797 = vector.load %arg2[%c0_244, %c62] : memref<6x135xf32, #tpu.memory_space<vmem>>, vector<6x1xf32>
    %798 = vector.broadcast %797 : vector<6x1xf32> to vector<6x256xf32>
    %799 = arith.mulf %798, %64 : vector<6x256xf32>
    %800 = arith.addf %796, %799 : vector<6x256xf32>
    %c0_245 = arith.constant 0 : index
    %c71 = arith.constant 71 : index
    %801 = vector.load %arg2[%c0_245, %c71] : memref<6x135xf32, #tpu.memory_space<vmem>>, vector<6x1xf32>
    %802 = vector.broadcast %801 : vector<6x1xf32> to vector<6x256xf32>
    %803 = arith.mulf %802, %206 : vector<6x256xf32>
    %804 = arith.addf %800, %803 : vector<6x256xf32>
    %c0_246 = arith.constant 0 : index
    %c80 = arith.constant 80 : index
    %805 = vector.load %arg2[%c0_246, %c80] : memref<6x135xf32, #tpu.memory_space<vmem>>, vector<6x1xf32>
    %806 = vector.broadcast %805 : vector<6x1xf32> to vector<6x256xf32>
    %807 = arith.mulf %806, %607 : vector<6x256xf32>
    %808 = arith.addf %804, %807 : vector<6x256xf32>
    %c239_i32_247 = arith.constant 239 : i32
    %809 = tpu.dynamic_rotate %808 by %c239_i32_247 dim 1 : vector<6x256xf32>, i32 -> vector<6x256xf32>
    %810 = vector.broadcast %46 : vector<1x256xf32> to vector<6x256xf32>
    %811 = arith.mulf %809, %810 : vector<6x256xf32>
    %812 = arith.addf %789, %811 : vector<6x256xf32>
    %813 = vector.extract_strided_slice %812 {offsets = [0, 0], sizes = [2, 256], strides = [1, 1]} : vector<6x256xf32> to vector<2x256xf32>
    %cst_248 = arith.constant dense<0.000000e+00> : vector<2xf32>
    %814 = vector.multi_reduction <add>, %813, %cst_248 [1] : vector<2x256xf32> to vector<2xf32>
    %815 = vector.shape_cast %814 : vector<2xf32> to vector<2x1xf32>
    %cst_249 = arith.constant dense<0.000000e+00> : vector<1xf32>
    %816 = vector.multi_reduction <add>, %815, %cst_249 [0] : vector<2x1xf32> to vector<1xf32>
    %817 = vector.shape_cast %816 : vector<1xf32> to vector<1x1xf32>
    %818 = arith.mulf %813, %813 : vector<2x256xf32>
    %cst_250 = arith.constant dense<0.000000e+00> : vector<2xf32>
    %819 = vector.multi_reduction <add>, %818, %cst_250 [1] : vector<2x256xf32> to vector<2xf32>
    %820 = vector.shape_cast %819 : vector<2xf32> to vector<2x1xf32>
    %cst_251 = arith.constant dense<0.000000e+00> : vector<1xf32>
    %821 = vector.multi_reduction <add>, %820, %cst_251 [0] : vector<2x1xf32> to vector<1xf32>
    %822 = vector.shape_cast %821 : vector<1xf32> to vector<1x1xf32>
    %cst_252 = arith.constant 0.001953125 : f32
    %823 = vector.broadcast %cst_252 : f32 to vector<1x1xf32>
    %824 = arith.mulf %817, %823 : vector<1x1xf32>
    %cst_253 = arith.constant 0.001953125 : f32
    %825 = vector.broadcast %cst_253 : f32 to vector<1x1xf32>
    %826 = arith.mulf %822, %825 : vector<1x1xf32>
    %827 = arith.mulf %824, %824 : vector<1x1xf32>
    %828 = arith.subf %826, %827 : vector<1x1xf32>
    %c118 = arith.constant 118 : index
    %829 = memref.load %arg0[%c118] : memref<130xf32, #tpu.memory_space<smem>>
    %cst_254 = arith.constant 9.99999974E-6 : f32
    %830 = vector.broadcast %cst_254 : f32 to vector<1x1xf32>
    %831 = arith.addf %828, %830 : vector<1x1xf32>
    %832 = math.rsqrt %831 : vector<1x1xf32>
    %833 = vector.broadcast %829 : f32 to vector<1x1xf32>
    %834 = arith.mulf %833, %832 : vector<1x1xf32>
    %c121 = arith.constant 121 : index
    %835 = memref.load %arg0[%c121] : memref<130xf32, #tpu.memory_space<smem>>
    %836 = arith.mulf %824, %834 : vector<1x1xf32>
    %837 = vector.broadcast %835 : f32 to vector<1x1xf32>
    %838 = arith.subf %837, %836 : vector<1x1xf32>
    %839 = vector.broadcast %834 : vector<1x1xf32> to vector<2x256xf32>
    %840 = arith.mulf %813, %839 : vector<2x256xf32>
    %841 = vector.broadcast %838 : vector<1x1xf32> to vector<2x256xf32>
    %842 = arith.addf %840, %841 : vector<2x256xf32>
    %843 = vector.extract_strided_slice %812 {offsets = [2, 0], sizes = [2, 256], strides = [1, 1]} : vector<6x256xf32> to vector<2x256xf32>
    %cst_255 = arith.constant dense<0.000000e+00> : vector<2xf32>
    %844 = vector.multi_reduction <add>, %843, %cst_255 [1] : vector<2x256xf32> to vector<2xf32>
    %845 = vector.shape_cast %844 : vector<2xf32> to vector<2x1xf32>
    %cst_256 = arith.constant dense<0.000000e+00> : vector<1xf32>
    %846 = vector.multi_reduction <add>, %845, %cst_256 [0] : vector<2x1xf32> to vector<1xf32>
    %847 = vector.shape_cast %846 : vector<1xf32> to vector<1x1xf32>
    %848 = arith.mulf %843, %843 : vector<2x256xf32>
    %cst_257 = arith.constant dense<0.000000e+00> : vector<2xf32>
    %849 = vector.multi_reduction <add>, %848, %cst_257 [1] : vector<2x256xf32> to vector<2xf32>
    %850 = vector.shape_cast %849 : vector<2xf32> to vector<2x1xf32>
    %cst_258 = arith.constant dense<0.000000e+00> : vector<1xf32>
    %851 = vector.multi_reduction <add>, %850, %cst_258 [0] : vector<2x1xf32> to vector<1xf32>
    %852 = vector.shape_cast %851 : vector<1xf32> to vector<1x1xf32>
    %cst_259 = arith.constant 0.001953125 : f32
    %853 = vector.broadcast %cst_259 : f32 to vector<1x1xf32>
    %854 = arith.mulf %847, %853 : vector<1x1xf32>
    %cst_260 = arith.constant 0.001953125 : f32
    %855 = vector.broadcast %cst_260 : f32 to vector<1x1xf32>
    %856 = arith.mulf %852, %855 : vector<1x1xf32>
    %857 = arith.mulf %854, %854 : vector<1x1xf32>
    %858 = arith.subf %856, %857 : vector<1x1xf32>
    %c119 = arith.constant 119 : index
    %859 = memref.load %arg0[%c119] : memref<130xf32, #tpu.memory_space<smem>>
    %cst_261 = arith.constant 9.99999974E-6 : f32
    %860 = vector.broadcast %cst_261 : f32 to vector<1x1xf32>
    %861 = arith.addf %858, %860 : vector<1x1xf32>
    %862 = math.rsqrt %861 : vector<1x1xf32>
    %863 = vector.broadcast %859 : f32 to vector<1x1xf32>
    %864 = arith.mulf %863, %862 : vector<1x1xf32>
    %c122 = arith.constant 122 : index
    %865 = memref.load %arg0[%c122] : memref<130xf32, #tpu.memory_space<smem>>
    %866 = arith.mulf %854, %864 : vector<1x1xf32>
    %867 = vector.broadcast %865 : f32 to vector<1x1xf32>
    %868 = arith.subf %867, %866 : vector<1x1xf32>
    %869 = vector.broadcast %864 : vector<1x1xf32> to vector<2x256xf32>
    %870 = arith.mulf %843, %869 : vector<2x256xf32>
    %871 = vector.broadcast %868 : vector<1x1xf32> to vector<2x256xf32>
    %872 = arith.addf %870, %871 : vector<2x256xf32>
    %873 = vector.extract_strided_slice %812 {offsets = [4, 0], sizes = [2, 256], strides = [1, 1]} : vector<6x256xf32> to vector<2x256xf32>
    %cst_262 = arith.constant dense<0.000000e+00> : vector<2xf32>
    %874 = vector.multi_reduction <add>, %873, %cst_262 [1] : vector<2x256xf32> to vector<2xf32>
    %875 = vector.shape_cast %874 : vector<2xf32> to vector<2x1xf32>
    %cst_263 = arith.constant dense<0.000000e+00> : vector<1xf32>
    %876 = vector.multi_reduction <add>, %875, %cst_263 [0] : vector<2x1xf32> to vector<1xf32>
    %877 = vector.shape_cast %876 : vector<1xf32> to vector<1x1xf32>
    %878 = arith.mulf %873, %873 : vector<2x256xf32>
    %cst_264 = arith.constant dense<0.000000e+00> : vector<2xf32>
    %879 = vector.multi_reduction <add>, %878, %cst_264 [1] : vector<2x256xf32> to vector<2xf32>
    %880 = vector.shape_cast %879 : vector<2xf32> to vector<2x1xf32>
    %cst_265 = arith.constant dense<0.000000e+00> : vector<1xf32>
    %881 = vector.multi_reduction <add>, %880, %cst_265 [0] : vector<2x1xf32> to vector<1xf32>
    %882 = vector.shape_cast %881 : vector<1xf32> to vector<1x1xf32>
    %cst_266 = arith.constant 0.001953125 : f32
    %883 = vector.broadcast %cst_266 : f32 to vector<1x1xf32>
    %884 = arith.mulf %877, %883 : vector<1x1xf32>
    %cst_267 = arith.constant 0.001953125 : f32
    %885 = vector.broadcast %cst_267 : f32 to vector<1x1xf32>
    %886 = arith.mulf %882, %885 : vector<1x1xf32>
    %887 = arith.mulf %884, %884 : vector<1x1xf32>
    %888 = arith.subf %886, %887 : vector<1x1xf32>
    %c120 = arith.constant 120 : index
    %889 = memref.load %arg0[%c120] : memref<130xf32, #tpu.memory_space<smem>>
    %cst_268 = arith.constant 9.99999974E-6 : f32
    %890 = vector.broadcast %cst_268 : f32 to vector<1x1xf32>
    %891 = arith.addf %888, %890 : vector<1x1xf32>
    %892 = math.rsqrt %891 : vector<1x1xf32>
    %893 = vector.broadcast %889 : f32 to vector<1x1xf32>
    %894 = arith.mulf %893, %892 : vector<1x1xf32>
    %c123 = arith.constant 123 : index
    %895 = memref.load %arg0[%c123] : memref<130xf32, #tpu.memory_space<smem>>
    %896 = arith.mulf %884, %894 : vector<1x1xf32>
    %897 = vector.broadcast %895 : f32 to vector<1x1xf32>
    %898 = arith.subf %897, %896 : vector<1x1xf32>
    %899 = vector.broadcast %894 : vector<1x1xf32> to vector<2x256xf32>
    %900 = arith.mulf %873, %899 : vector<2x256xf32>
    %901 = vector.broadcast %898 : vector<1x1xf32> to vector<2x256xf32>
    %902 = arith.addf %900, %901 : vector<2x256xf32>
    %cst_269 = arith.constant 0.000000e+00 : f32
    %903 = vector.broadcast %cst_269 : f32 to vector<2x256xf32>
    %c83 = arith.constant 83 : index
    %904 = memref.load %arg0[%c83] : memref<130xf32, #tpu.memory_space<smem>>
    %905 = vector.broadcast %904 : f32 to vector<2x256xf32>
    %906 = arith.addf %903, %905 : vector<2x256xf32>
    %c56_270 = arith.constant 56 : index
    %907 = memref.load %arg0[%c56_270] : memref<130xf32, #tpu.memory_space<smem>>
    %908 = vector.broadcast %907 : f32 to vector<2x256xf32>
    %909 = arith.mulf %908, %842 : vector<2x256xf32>
    %c65_271 = arith.constant 65 : index
    %910 = memref.load %arg0[%c65_271] : memref<130xf32, #tpu.memory_space<smem>>
    %911 = vector.broadcast %910 : f32 to vector<2x256xf32>
    %912 = arith.mulf %911, %872 : vector<2x256xf32>
    %913 = arith.addf %909, %912 : vector<2x256xf32>
    %c74_272 = arith.constant 74 : index
    %914 = memref.load %arg0[%c74_272] : memref<130xf32, #tpu.memory_space<smem>>
    %915 = vector.broadcast %914 : f32 to vector<2x256xf32>
    %916 = arith.mulf %915, %902 : vector<2x256xf32>
    %917 = arith.addf %913, %916 : vector<2x256xf32>
    %c17_i32_273 = arith.constant 17 : i32
    %918 = tpu.dynamic_rotate %917 by %c17_i32_273 dim 1 : vector<2x256xf32>, i32 -> vector<2x256xf32>
    %919 = vector.broadcast %9 : vector<1x256xf32> to vector<2x256xf32>
    %920 = arith.mulf %918, %919 : vector<2x256xf32>
    %921 = arith.addf %906, %920 : vector<2x256xf32>
    %c57_274 = arith.constant 57 : index
    %922 = memref.load %arg0[%c57_274] : memref<130xf32, #tpu.memory_space<smem>>
    %923 = vector.broadcast %922 : f32 to vector<2x256xf32>
    %924 = arith.mulf %923, %842 : vector<2x256xf32>
    %c66_275 = arith.constant 66 : index
    %925 = memref.load %arg0[%c66_275] : memref<130xf32, #tpu.memory_space<smem>>
    %926 = vector.broadcast %925 : f32 to vector<2x256xf32>
    %927 = arith.mulf %926, %872 : vector<2x256xf32>
    %928 = arith.addf %924, %927 : vector<2x256xf32>
    %c75_276 = arith.constant 75 : index
    %929 = memref.load %arg0[%c75_276] : memref<130xf32, #tpu.memory_space<smem>>
    %930 = vector.broadcast %929 : f32 to vector<2x256xf32>
    %931 = arith.mulf %930, %902 : vector<2x256xf32>
    %932 = arith.addf %928, %931 : vector<2x256xf32>
    %c16_i32_277 = arith.constant 16 : i32
    %933 = tpu.dynamic_rotate %932 by %c16_i32_277 dim 1 : vector<2x256xf32>, i32 -> vector<2x256xf32>
    %934 = vector.broadcast %13 : vector<1x256xf32> to vector<2x256xf32>
    %935 = arith.mulf %933, %934 : vector<2x256xf32>
    %936 = arith.addf %921, %935 : vector<2x256xf32>
    %c58_278 = arith.constant 58 : index
    %937 = memref.load %arg0[%c58_278] : memref<130xf32, #tpu.memory_space<smem>>
    %938 = vector.broadcast %937 : f32 to vector<2x256xf32>
    %939 = arith.mulf %938, %842 : vector<2x256xf32>
    %c67_279 = arith.constant 67 : index
    %940 = memref.load %arg0[%c67_279] : memref<130xf32, #tpu.memory_space<smem>>
    %941 = vector.broadcast %940 : f32 to vector<2x256xf32>
    %942 = arith.mulf %941, %872 : vector<2x256xf32>
    %943 = arith.addf %939, %942 : vector<2x256xf32>
    %c76_280 = arith.constant 76 : index
    %944 = memref.load %arg0[%c76_280] : memref<130xf32, #tpu.memory_space<smem>>
    %945 = vector.broadcast %944 : f32 to vector<2x256xf32>
    %946 = arith.mulf %945, %902 : vector<2x256xf32>
    %947 = arith.addf %943, %946 : vector<2x256xf32>
    %c15_i32_281 = arith.constant 15 : i32
    %948 = tpu.dynamic_rotate %947 by %c15_i32_281 dim 1 : vector<2x256xf32>, i32 -> vector<2x256xf32>
    %949 = vector.broadcast %20 : vector<1x256xf32> to vector<2x256xf32>
    %950 = arith.mulf %948, %949 : vector<2x256xf32>
    %951 = arith.addf %936, %950 : vector<2x256xf32>
    %c59_282 = arith.constant 59 : index
    %952 = memref.load %arg0[%c59_282] : memref<130xf32, #tpu.memory_space<smem>>
    %953 = vector.broadcast %952 : f32 to vector<2x256xf32>
    %954 = arith.mulf %953, %842 : vector<2x256xf32>
    %c68_283 = arith.constant 68 : index
    %955 = memref.load %arg0[%c68_283] : memref<130xf32, #tpu.memory_space<smem>>
    %956 = vector.broadcast %955 : f32 to vector<2x256xf32>
    %957 = arith.mulf %956, %872 : vector<2x256xf32>
    %958 = arith.addf %954, %957 : vector<2x256xf32>
    %c77_284 = arith.constant 77 : index
    %959 = memref.load %arg0[%c77_284] : memref<130xf32, #tpu.memory_space<smem>>
    %960 = vector.broadcast %959 : f32 to vector<2x256xf32>
    %961 = arith.mulf %960, %902 : vector<2x256xf32>
    %962 = arith.addf %958, %961 : vector<2x256xf32>
    %c1_i32_285 = arith.constant 1 : i32
    %963 = tpu.dynamic_rotate %962 by %c1_i32_285 dim 1 : vector<2x256xf32>, i32 -> vector<2x256xf32>
    %964 = vector.broadcast %24 : vector<1x256xf32> to vector<2x256xf32>
    %965 = arith.mulf %963, %964 : vector<2x256xf32>
    %966 = arith.addf %951, %965 : vector<2x256xf32>
    %c60_286 = arith.constant 60 : index
    %967 = memref.load %arg0[%c60_286] : memref<130xf32, #tpu.memory_space<smem>>
    %968 = vector.broadcast %967 : f32 to vector<2x256xf32>
    %969 = arith.mulf %968, %842 : vector<2x256xf32>
    %c69_287 = arith.constant 69 : index
    %970 = memref.load %arg0[%c69_287] : memref<130xf32, #tpu.memory_space<smem>>
    %971 = vector.broadcast %970 : f32 to vector<2x256xf32>
    %972 = arith.mulf %971, %872 : vector<2x256xf32>
    %973 = arith.addf %969, %972 : vector<2x256xf32>
    %c78_288 = arith.constant 78 : index
    %974 = memref.load %arg0[%c78_288] : memref<130xf32, #tpu.memory_space<smem>>
    %975 = vector.broadcast %974 : f32 to vector<2x256xf32>
    %976 = arith.mulf %975, %902 : vector<2x256xf32>
    %977 = arith.addf %973, %976 : vector<2x256xf32>
    %978 = arith.addf %966, %977 : vector<2x256xf32>
    %c61_289 = arith.constant 61 : index
    %979 = memref.load %arg0[%c61_289] : memref<130xf32, #tpu.memory_space<smem>>
    %980 = vector.broadcast %979 : f32 to vector<2x256xf32>
    %981 = arith.mulf %980, %842 : vector<2x256xf32>
    %c70_290 = arith.constant 70 : index
    %982 = memref.load %arg0[%c70_290] : memref<130xf32, #tpu.memory_space<smem>>
    %983 = vector.broadcast %982 : f32 to vector<2x256xf32>
    %984 = arith.mulf %983, %872 : vector<2x256xf32>
    %985 = arith.addf %981, %984 : vector<2x256xf32>
    %c79_291 = arith.constant 79 : index
    %986 = memref.load %arg0[%c79_291] : memref<130xf32, #tpu.memory_space<smem>>
    %987 = vector.broadcast %986 : f32 to vector<2x256xf32>
    %988 = arith.mulf %987, %902 : vector<2x256xf32>
    %989 = arith.addf %985, %988 : vector<2x256xf32>
    %c255_i32_292 = arith.constant 255 : i32
    %990 = tpu.dynamic_rotate %989 by %c255_i32_292 dim 1 : vector<2x256xf32>, i32 -> vector<2x256xf32>
    %991 = vector.broadcast %28 : vector<1x256xf32> to vector<2x256xf32>
    %992 = arith.mulf %990, %991 : vector<2x256xf32>
    %993 = arith.addf %978, %992 : vector<2x256xf32>
    %c62_293 = arith.constant 62 : index
    %994 = memref.load %arg0[%c62_293] : memref<130xf32, #tpu.memory_space<smem>>
    %995 = vector.broadcast %994 : f32 to vector<2x256xf32>
    %996 = arith.mulf %995, %842 : vector<2x256xf32>
    %c71_294 = arith.constant 71 : index
    %997 = memref.load %arg0[%c71_294] : memref<130xf32, #tpu.memory_space<smem>>
    %998 = vector.broadcast %997 : f32 to vector<2x256xf32>
    %999 = arith.mulf %998, %872 : vector<2x256xf32>
    %1000 = arith.addf %996, %999 : vector<2x256xf32>
    %c80_295 = arith.constant 80 : index
    %1001 = memref.load %arg0[%c80_295] : memref<130xf32, #tpu.memory_space<smem>>
    %1002 = vector.broadcast %1001 : f32 to vector<2x256xf32>
    %1003 = arith.mulf %1002, %902 : vector<2x256xf32>
    %1004 = arith.addf %1000, %1003 : vector<2x256xf32>
    %c241_i32_296 = arith.constant 241 : i32
    %1005 = tpu.dynamic_rotate %1004 by %c241_i32_296 dim 1 : vector<2x256xf32>, i32 -> vector<2x256xf32>
    %1006 = vector.broadcast %35 : vector<1x256xf32> to vector<2x256xf32>
    %1007 = arith.mulf %1005, %1006 : vector<2x256xf32>
    %1008 = arith.addf %993, %1007 : vector<2x256xf32>
    %c63_297 = arith.constant 63 : index
    %1009 = memref.load %arg0[%c63_297] : memref<130xf32, #tpu.memory_space<smem>>
    %1010 = vector.broadcast %1009 : f32 to vector<2x256xf32>
    %1011 = arith.mulf %1010, %842 : vector<2x256xf32>
    %c72_298 = arith.constant 72 : index
    %1012 = memref.load %arg0[%c72_298] : memref<130xf32, #tpu.memory_space<smem>>
    %1013 = vector.broadcast %1012 : f32 to vector<2x256xf32>
    %1014 = arith.mulf %1013, %872 : vector<2x256xf32>
    %1015 = arith.addf %1011, %1014 : vector<2x256xf32>
    %c81 = arith.constant 81 : index
    %1016 = memref.load %arg0[%c81] : memref<130xf32, #tpu.memory_space<smem>>
    %1017 = vector.broadcast %1016 : f32 to vector<2x256xf32>
    %1018 = arith.mulf %1017, %902 : vector<2x256xf32>
    %1019 = arith.addf %1015, %1018 : vector<2x256xf32>
    %c240_i32_299 = arith.constant 240 : i32
    %1020 = tpu.dynamic_rotate %1019 by %c240_i32_299 dim 1 : vector<2x256xf32>, i32 -> vector<2x256xf32>
    %1021 = vector.broadcast %39 : vector<1x256xf32> to vector<2x256xf32>
    %1022 = arith.mulf %1020, %1021 : vector<2x256xf32>
    %1023 = arith.addf %1008, %1022 : vector<2x256xf32>
    %c64_300 = arith.constant 64 : index
    %1024 = memref.load %arg0[%c64_300] : memref<130xf32, #tpu.memory_space<smem>>
    %1025 = vector.broadcast %1024 : f32 to vector<2x256xf32>
    %1026 = arith.mulf %1025, %842 : vector<2x256xf32>
    %c73_301 = arith.constant 73 : index
    %1027 = memref.load %arg0[%c73_301] : memref<130xf32, #tpu.memory_space<smem>>
    %1028 = vector.broadcast %1027 : f32 to vector<2x256xf32>
    %1029 = arith.mulf %1028, %872 : vector<2x256xf32>
    %1030 = arith.addf %1026, %1029 : vector<2x256xf32>
    %c82 = arith.constant 82 : index
    %1031 = memref.load %arg0[%c82] : memref<130xf32, #tpu.memory_space<smem>>
    %1032 = vector.broadcast %1031 : f32 to vector<2x256xf32>
    %1033 = arith.mulf %1032, %902 : vector<2x256xf32>
    %1034 = arith.addf %1030, %1033 : vector<2x256xf32>
    %c239_i32_302 = arith.constant 239 : i32
    %1035 = tpu.dynamic_rotate %1034 by %c239_i32_302 dim 1 : vector<2x256xf32>, i32 -> vector<2x256xf32>
    %1036 = vector.broadcast %46 : vector<1x256xf32> to vector<2x256xf32>
    %1037 = arith.mulf %1035, %1036 : vector<2x256xf32>
    %1038 = arith.addf %1023, %1037 : vector<2x256xf32>
    %cst_303 = arith.constant 0.000000e+00 : f32
    %1039 = vector.broadcast %cst_303 : f32 to vector<2x256xf32>
    %1040 = arith.maximumf %1038, %1039 : vector<2x256xf32>
    %c0_304 = arith.constant 0 : index
    %c0_305 = arith.constant 0 : index
    %1041 = vector.load %arg4[%c0_304, %c0_305] : memref<6x256xf32, #tpu.memory_space<vmem>>, vector<2x256xf32>
    tpu.vector_store %arg4[%c0_304, %c0_305], %1040 {strides = array<i32>} : memref<6x256xf32, #tpu.memory_space<vmem>>, vector<2x256xf32>,
    %c2_306 = arith.constant 2 : index
    %c0_307 = arith.constant 0 : index
    %1042 = vector.load %arg4[%c2_306, %c0_307] : memref<6x256xf32, #tpu.memory_space<vmem>>, vector<2x256xf32>
    tpu.vector_store %arg4[%c2_306, %c0_307], %1040 {strides = array<i32>} : memref<6x256xf32, #tpu.memory_space<vmem>>, vector<2x256xf32>,
    %c4_308 = arith.constant 4 : index
    %c0_309 = arith.constant 0 : index
    %1043 = vector.load %arg4[%c4_308, %c0_309] : memref<6x256xf32, #tpu.memory_space<vmem>>, vector<2x256xf32>
    tpu.vector_store %arg4[%c4_308, %c0_309], %1040 {strides = array<i32>} : memref<6x256xf32, #tpu.memory_space<vmem>>, vector<2x256xf32>,
    %c0_310 = arith.constant 0 : index
    %c0_311 = arith.constant 0 : index
    %1044 = vector.load %arg4[%c0_310, %c0_311] : memref<6x256xf32, #tpu.memory_space<vmem>>, vector<6x256xf32>
    %cst_312 = arith.constant 0.000000e+00 : f32
    %1045 = vector.broadcast %cst_312 : f32 to vector<6x256xf32>
    %c0_313 = arith.constant 0 : index
    %c81_314 = arith.constant 81 : index
    %1046 = vector.load %arg2[%c0_313, %c81_314] : memref<6x135xf32, #tpu.memory_space<vmem>>, vector<6x1xf32>
    %1047 = vector.broadcast %1046 : vector<6x1xf32> to vector<6x256xf32>
    %1048 = arith.mulf %1047, %56 : vector<6x256xf32>
    %c0_315 = arith.constant 0 : index
    %c90 = arith.constant 90 : index
    %1049 = vector.load %arg2[%c0_315, %c90] : memref<6x135xf32, #tpu.memory_space<vmem>>, vector<6x1xf32>
    %1050 = vector.broadcast %1049 : vector<6x1xf32> to vector<6x256xf32>
    %1051 = arith.mulf %1050, %60 : vector<6x256xf32>
    %1052 = arith.addf %1048, %1051 : vector<6x256xf32>
    %c0_316 = arith.constant 0 : index
    %c99 = arith.constant 99 : index
    %1053 = vector.load %arg2[%c0_316, %c99] : memref<6x135xf32, #tpu.memory_space<vmem>>, vector<6x1xf32>
    %1054 = vector.broadcast %1053 : vector<6x1xf32> to vector<6x256xf32>
    %1055 = arith.mulf %1054, %64 : vector<6x256xf32>
    %1056 = arith.addf %1052, %1055 : vector<6x256xf32>
    %c0_317 = arith.constant 0 : index
    %c108 = arith.constant 108 : index
    %1057 = vector.load %arg2[%c0_317, %c108] : memref<6x135xf32, #tpu.memory_space<vmem>>, vector<6x1xf32>
    %1058 = vector.broadcast %1057 : vector<6x1xf32> to vector<6x256xf32>
    %1059 = arith.mulf %1058, %206 : vector<6x256xf32>
    %1060 = arith.addf %1056, %1059 : vector<6x256xf32>
    %c0_318 = arith.constant 0 : index
    %c117_319 = arith.constant 117 : index
    %1061 = vector.load %arg2[%c0_318, %c117_319] : memref<6x135xf32, #tpu.memory_space<vmem>>, vector<6x1xf32>
    %1062 = vector.broadcast %1061 : vector<6x1xf32> to vector<6x256xf32>
    %1063 = arith.mulf %1062, %607 : vector<6x256xf32>
    %1064 = arith.addf %1060, %1063 : vector<6x256xf32>
    %c0_320 = arith.constant 0 : index
    %c126 = arith.constant 126 : index
    %1065 = vector.load %arg2[%c0_320, %c126] : memref<6x135xf32, #tpu.memory_space<vmem>>, vector<6x1xf32>
    %1066 = vector.broadcast %1065 : vector<6x1xf32> to vector<6x256xf32>
    %1067 = arith.mulf %1066, %1044 : vector<6x256xf32>
    %1068 = arith.addf %1064, %1067 : vector<6x256xf32>
    %c17_i32_321 = arith.constant 17 : i32
    %1069 = tpu.dynamic_rotate %1068 by %c17_i32_321 dim 1 : vector<6x256xf32>, i32 -> vector<6x256xf32>
    %1070 = vector.broadcast %9 : vector<1x256xf32> to vector<6x256xf32>
    %1071 = arith.mulf %1069, %1070 : vector<6x256xf32>
    %1072 = arith.addf %1045, %1071 : vector<6x256xf32>
    %c0_322 = arith.constant 0 : index
    %c82_323 = arith.constant 82 : index
    %1073 = vector.load %arg2[%c0_322, %c82_323] : memref<6x135xf32, #tpu.memory_space<vmem>>, vector<6x1xf32>
    %1074 = vector.broadcast %1073 : vector<6x1xf32> to vector<6x256xf32>
    %1075 = arith.mulf %1074, %56 : vector<6x256xf32>
    %c0_324 = arith.constant 0 : index
    %c91 = arith.constant 91 : index
    %1076 = vector.load %arg2[%c0_324, %c91] : memref<6x135xf32, #tpu.memory_space<vmem>>, vector<6x1xf32>
    %1077 = vector.broadcast %1076 : vector<6x1xf32> to vector<6x256xf32>
    %1078 = arith.mulf %1077, %60 : vector<6x256xf32>
    %1079 = arith.addf %1075, %1078 : vector<6x256xf32>
    %c0_325 = arith.constant 0 : index
    %c100 = arith.constant 100 : index
    %1080 = vector.load %arg2[%c0_325, %c100] : memref<6x135xf32, #tpu.memory_space<vmem>>, vector<6x1xf32>
    %1081 = vector.broadcast %1080 : vector<6x1xf32> to vector<6x256xf32>
    %1082 = arith.mulf %1081, %64 : vector<6x256xf32>
    %1083 = arith.addf %1079, %1082 : vector<6x256xf32>
    %c0_326 = arith.constant 0 : index
    %c109 = arith.constant 109 : index
    %1084 = vector.load %arg2[%c0_326, %c109] : memref<6x135xf32, #tpu.memory_space<vmem>>, vector<6x1xf32>
    %1085 = vector.broadcast %1084 : vector<6x1xf32> to vector<6x256xf32>
    %1086 = arith.mulf %1085, %206 : vector<6x256xf32>
    %1087 = arith.addf %1083, %1086 : vector<6x256xf32>
    %c0_327 = arith.constant 0 : index
    %c118_328 = arith.constant 118 : index
    %1088 = vector.load %arg2[%c0_327, %c118_328] : memref<6x135xf32, #tpu.memory_space<vmem>>, vector<6x1xf32>
    %1089 = vector.broadcast %1088 : vector<6x1xf32> to vector<6x256xf32>
    %1090 = arith.mulf %1089, %607 : vector<6x256xf32>
    %1091 = arith.addf %1087, %1090 : vector<6x256xf32>
    %c0_329 = arith.constant 0 : index
    %c127 = arith.constant 127 : index
    %1092 = vector.load %arg2[%c0_329, %c127] : memref<6x135xf32, #tpu.memory_space<vmem>>, vector<6x1xf32>
    %1093 = vector.broadcast %1092 : vector<6x1xf32> to vector<6x256xf32>
    %1094 = arith.mulf %1093, %1044 : vector<6x256xf32>
    %1095 = arith.addf %1091, %1094 : vector<6x256xf32>
    %c16_i32_330 = arith.constant 16 : i32
    %1096 = tpu.dynamic_rotate %1095 by %c16_i32_330 dim 1 : vector<6x256xf32>, i32 -> vector<6x256xf32>
    %1097 = vector.broadcast %13 : vector<1x256xf32> to vector<6x256xf32>
    %1098 = arith.mulf %1096, %1097 : vector<6x256xf32>
    %1099 = arith.addf %1072, %1098 : vector<6x256xf32>
    %c0_331 = arith.constant 0 : index
    %c83_332 = arith.constant 83 : index
    %1100 = vector.load %arg2[%c0_331, %c83_332] : memref<6x135xf32, #tpu.memory_space<vmem>>, vector<6x1xf32>
    %1101 = vector.broadcast %1100 : vector<6x1xf32> to vector<6x256xf32>
    %1102 = arith.mulf %1101, %56 : vector<6x256xf32>
    %c0_333 = arith.constant 0 : index
    %c92 = arith.constant 92 : index
    %1103 = vector.load %arg2[%c0_333, %c92] : memref<6x135xf32, #tpu.memory_space<vmem>>, vector<6x1xf32>
    %1104 = vector.broadcast %1103 : vector<6x1xf32> to vector<6x256xf32>
    %1105 = arith.mulf %1104, %60 : vector<6x256xf32>
    %1106 = arith.addf %1102, %1105 : vector<6x256xf32>
    %c0_334 = arith.constant 0 : index
    %c101 = arith.constant 101 : index
    %1107 = vector.load %arg2[%c0_334, %c101] : memref<6x135xf32, #tpu.memory_space<vmem>>, vector<6x1xf32>
    %1108 = vector.broadcast %1107 : vector<6x1xf32> to vector<6x256xf32>
    %1109 = arith.mulf %1108, %64 : vector<6x256xf32>
    %1110 = arith.addf %1106, %1109 : vector<6x256xf32>
    %c0_335 = arith.constant 0 : index
    %c110 = arith.constant 110 : index
    %1111 = vector.load %arg2[%c0_335, %c110] : memref<6x135xf32, #tpu.memory_space<vmem>>, vector<6x1xf32>
    %1112 = vector.broadcast %1111 : vector<6x1xf32> to vector<6x256xf32>
    %1113 = arith.mulf %1112, %206 : vector<6x256xf32>
    %1114 = arith.addf %1110, %1113 : vector<6x256xf32>
    %c0_336 = arith.constant 0 : index
    %c119_337 = arith.constant 119 : index
    %1115 = vector.load %arg2[%c0_336, %c119_337] : memref<6x135xf32, #tpu.memory_space<vmem>>, vector<6x1xf32>
    %1116 = vector.broadcast %1115 : vector<6x1xf32> to vector<6x256xf32>
    %1117 = arith.mulf %1116, %607 : vector<6x256xf32>
    %1118 = arith.addf %1114, %1117 : vector<6x256xf32>
    %c0_338 = arith.constant 0 : index
    %c128 = arith.constant 128 : index
    %1119 = vector.load %arg2[%c0_338, %c128] : memref<6x135xf32, #tpu.memory_space<vmem>>, vector<6x1xf32>
    %1120 = vector.broadcast %1119 : vector<6x1xf32> to vector<6x256xf32>
    %1121 = arith.mulf %1120, %1044 : vector<6x256xf32>
    %1122 = arith.addf %1118, %1121 : vector<6x256xf32>
    %c15_i32_339 = arith.constant 15 : i32
    %1123 = tpu.dynamic_rotate %1122 by %c15_i32_339 dim 1 : vector<6x256xf32>, i32 -> vector<6x256xf32>
    %1124 = vector.broadcast %20 : vector<1x256xf32> to vector<6x256xf32>
    %1125 = arith.mulf %1123, %1124 : vector<6x256xf32>
    %1126 = arith.addf %1099, %1125 : vector<6x256xf32>
    %c0_340 = arith.constant 0 : index
    %c84 = arith.constant 84 : index
    %1127 = vector.load %arg2[%c0_340, %c84] : memref<6x135xf32, #tpu.memory_space<vmem>>, vector<6x1xf32>
    %1128 = vector.broadcast %1127 : vector<6x1xf32> to vector<6x256xf32>
    %1129 = arith.mulf %1128, %56 : vector<6x256xf32>
    %c0_341 = arith.constant 0 : index
    %c93 = arith.constant 93 : index
    %1130 = vector.load %arg2[%c0_341, %c93] : memref<6x135xf32, #tpu.memory_space<vmem>>, vector<6x1xf32>
    %1131 = vector.broadcast %1130 : vector<6x1xf32> to vector<6x256xf32>
    %1132 = arith.mulf %1131, %60 : vector<6x256xf32>
    %1133 = arith.addf %1129, %1132 : vector<6x256xf32>
    %c0_342 = arith.constant 0 : index
    %c102 = arith.constant 102 : index
    %1134 = vector.load %arg2[%c0_342, %c102] : memref<6x135xf32, #tpu.memory_space<vmem>>, vector<6x1xf32>
    %1135 = vector.broadcast %1134 : vector<6x1xf32> to vector<6x256xf32>
    %1136 = arith.mulf %1135, %64 : vector<6x256xf32>
    %1137 = arith.addf %1133, %1136 : vector<6x256xf32>
    %c0_343 = arith.constant 0 : index
    %c111 = arith.constant 111 : index
    %1138 = vector.load %arg2[%c0_343, %c111] : memref<6x135xf32, #tpu.memory_space<vmem>>, vector<6x1xf32>
    %1139 = vector.broadcast %1138 : vector<6x1xf32> to vector<6x256xf32>
    %1140 = arith.mulf %1139, %206 : vector<6x256xf32>
    %1141 = arith.addf %1137, %1140 : vector<6x256xf32>
    %c0_344 = arith.constant 0 : index
    %c120_345 = arith.constant 120 : index
    %1142 = vector.load %arg2[%c0_344, %c120_345] : memref<6x135xf32, #tpu.memory_space<vmem>>, vector<6x1xf32>
    %1143 = vector.broadcast %1142 : vector<6x1xf32> to vector<6x256xf32>
    %1144 = arith.mulf %1143, %607 : vector<6x256xf32>
    %1145 = arith.addf %1141, %1144 : vector<6x256xf32>
    %c0_346 = arith.constant 0 : index
    %c129 = arith.constant 129 : index
    %1146 = vector.load %arg2[%c0_346, %c129] : memref<6x135xf32, #tpu.memory_space<vmem>>, vector<6x1xf32>
    %1147 = vector.broadcast %1146 : vector<6x1xf32> to vector<6x256xf32>
    %1148 = arith.mulf %1147, %1044 : vector<6x256xf32>
    %1149 = arith.addf %1145, %1148 : vector<6x256xf32>
    %c1_i32_347 = arith.constant 1 : i32
    %1150 = tpu.dynamic_rotate %1149 by %c1_i32_347 dim 1 : vector<6x256xf32>, i32 -> vector<6x256xf32>
    %1151 = vector.broadcast %24 : vector<1x256xf32> to vector<6x256xf32>
    %1152 = arith.mulf %1150, %1151 : vector<6x256xf32>
    %1153 = arith.addf %1126, %1152 : vector<6x256xf32>
    %c0_348 = arith.constant 0 : index
    %c85 = arith.constant 85 : index
    %1154 = vector.load %arg2[%c0_348, %c85] : memref<6x135xf32, #tpu.memory_space<vmem>>, vector<6x1xf32>
    %1155 = vector.broadcast %1154 : vector<6x1xf32> to vector<6x256xf32>
    %1156 = arith.mulf %1155, %56 : vector<6x256xf32>
    %c0_349 = arith.constant 0 : index
    %c94 = arith.constant 94 : index
    %1157 = vector.load %arg2[%c0_349, %c94] : memref<6x135xf32, #tpu.memory_space<vmem>>, vector<6x1xf32>
    %1158 = vector.broadcast %1157 : vector<6x1xf32> to vector<6x256xf32>
    %1159 = arith.mulf %1158, %60 : vector<6x256xf32>
    %1160 = arith.addf %1156, %1159 : vector<6x256xf32>
    %c0_350 = arith.constant 0 : index
    %c103 = arith.constant 103 : index
    %1161 = vector.load %arg2[%c0_350, %c103] : memref<6x135xf32, #tpu.memory_space<vmem>>, vector<6x1xf32>
    %1162 = vector.broadcast %1161 : vector<6x1xf32> to vector<6x256xf32>
    %1163 = arith.mulf %1162, %64 : vector<6x256xf32>
    %1164 = arith.addf %1160, %1163 : vector<6x256xf32>
    %c0_351 = arith.constant 0 : index
    %c112_352 = arith.constant 112 : index
    %1165 = vector.load %arg2[%c0_351, %c112_352] : memref<6x135xf32, #tpu.memory_space<vmem>>, vector<6x1xf32>
    %1166 = vector.broadcast %1165 : vector<6x1xf32> to vector<6x256xf32>
    %1167 = arith.mulf %1166, %206 : vector<6x256xf32>
    %1168 = arith.addf %1164, %1167 : vector<6x256xf32>
    %c0_353 = arith.constant 0 : index
    %c121_354 = arith.constant 121 : index
    %1169 = vector.load %arg2[%c0_353, %c121_354] : memref<6x135xf32, #tpu.memory_space<vmem>>, vector<6x1xf32>
    %1170 = vector.broadcast %1169 : vector<6x1xf32> to vector<6x256xf32>
    %1171 = arith.mulf %1170, %607 : vector<6x256xf32>
    %1172 = arith.addf %1168, %1171 : vector<6x256xf32>
    %c0_355 = arith.constant 0 : index
    %c130 = arith.constant 130 : index
    %1173 = vector.load %arg2[%c0_355, %c130] : memref<6x135xf32, #tpu.memory_space<vmem>>, vector<6x1xf32>
    %1174 = vector.broadcast %1173 : vector<6x1xf32> to vector<6x256xf32>
    %1175 = arith.mulf %1174, %1044 : vector<6x256xf32>
    %1176 = arith.addf %1172, %1175 : vector<6x256xf32>
    %1177 = arith.addf %1153, %1176 : vector<6x256xf32>
    %c0_356 = arith.constant 0 : index
    %c86 = arith.constant 86 : index
    %1178 = vector.load %arg2[%c0_356, %c86] : memref<6x135xf32, #tpu.memory_space<vmem>>, vector<6x1xf32>
    %1179 = vector.broadcast %1178 : vector<6x1xf32> to vector<6x256xf32>
    %1180 = arith.mulf %1179, %56 : vector<6x256xf32>
    %c0_357 = arith.constant 0 : index
    %c95 = arith.constant 95 : index
    %1181 = vector.load %arg2[%c0_357, %c95] : memref<6x135xf32, #tpu.memory_space<vmem>>, vector<6x1xf32>
    %1182 = vector.broadcast %1181 : vector<6x1xf32> to vector<6x256xf32>
    %1183 = arith.mulf %1182, %60 : vector<6x256xf32>
    %1184 = arith.addf %1180, %1183 : vector<6x256xf32>
    %c0_358 = arith.constant 0 : index
    %c104 = arith.constant 104 : index
    %1185 = vector.load %arg2[%c0_358, %c104] : memref<6x135xf32, #tpu.memory_space<vmem>>, vector<6x1xf32>
    %1186 = vector.broadcast %1185 : vector<6x1xf32> to vector<6x256xf32>
    %1187 = arith.mulf %1186, %64 : vector<6x256xf32>
    %1188 = arith.addf %1184, %1187 : vector<6x256xf32>
    %c0_359 = arith.constant 0 : index
    %c113_360 = arith.constant 113 : index
    %1189 = vector.load %arg2[%c0_359, %c113_360] : memref<6x135xf32, #tpu.memory_space<vmem>>, vector<6x1xf32>
    %1190 = vector.broadcast %1189 : vector<6x1xf32> to vector<6x256xf32>
    %1191 = arith.mulf %1190, %206 : vector<6x256xf32>
    %1192 = arith.addf %1188, %1191 : vector<6x256xf32>
    %c0_361 = arith.constant 0 : index
    %c122_362 = arith.constant 122 : index
    %1193 = vector.load %arg2[%c0_361, %c122_362] : memref<6x135xf32, #tpu.memory_space<vmem>>, vector<6x1xf32>
    %1194 = vector.broadcast %1193 : vector<6x1xf32> to vector<6x256xf32>
    %1195 = arith.mulf %1194, %607 : vector<6x256xf32>
    %1196 = arith.addf %1192, %1195 : vector<6x256xf32>
    %c0_363 = arith.constant 0 : index
    %c131 = arith.constant 131 : index
    %1197 = vector.load %arg2[%c0_363, %c131] : memref<6x135xf32, #tpu.memory_space<vmem>>, vector<6x1xf32>
    %1198 = vector.broadcast %1197 : vector<6x1xf32> to vector<6x256xf32>
    %1199 = arith.mulf %1198, %1044 : vector<6x256xf32>
    %1200 = arith.addf %1196, %1199 : vector<6x256xf32>
    %c255_i32_364 = arith.constant 255 : i32
    %1201 = tpu.dynamic_rotate %1200 by %c255_i32_364 dim 1 : vector<6x256xf32>, i32 -> vector<6x256xf32>
    %1202 = vector.broadcast %28 : vector<1x256xf32> to vector<6x256xf32>
    %1203 = arith.mulf %1201, %1202 : vector<6x256xf32>
    %1204 = arith.addf %1177, %1203 : vector<6x256xf32>
    %c0_365 = arith.constant 0 : index
    %c87 = arith.constant 87 : index
    %1205 = vector.load %arg2[%c0_365, %c87] : memref<6x135xf32, #tpu.memory_space<vmem>>, vector<6x1xf32>
    %1206 = vector.broadcast %1205 : vector<6x1xf32> to vector<6x256xf32>
    %1207 = arith.mulf %1206, %56 : vector<6x256xf32>
    %c0_366 = arith.constant 0 : index
    %c96 = arith.constant 96 : index
    %1208 = vector.load %arg2[%c0_366, %c96] : memref<6x135xf32, #tpu.memory_space<vmem>>, vector<6x1xf32>
    %1209 = vector.broadcast %1208 : vector<6x1xf32> to vector<6x256xf32>
    %1210 = arith.mulf %1209, %60 : vector<6x256xf32>
    %1211 = arith.addf %1207, %1210 : vector<6x256xf32>
    %c0_367 = arith.constant 0 : index
    %c105 = arith.constant 105 : index
    %1212 = vector.load %arg2[%c0_367, %c105] : memref<6x135xf32, #tpu.memory_space<vmem>>, vector<6x1xf32>
    %1213 = vector.broadcast %1212 : vector<6x1xf32> to vector<6x256xf32>
    %1214 = arith.mulf %1213, %64 : vector<6x256xf32>
    %1215 = arith.addf %1211, %1214 : vector<6x256xf32>
    %c0_368 = arith.constant 0 : index
    %c114_369 = arith.constant 114 : index
    %1216 = vector.load %arg2[%c0_368, %c114_369] : memref<6x135xf32, #tpu.memory_space<vmem>>, vector<6x1xf32>
    %1217 = vector.broadcast %1216 : vector<6x1xf32> to vector<6x256xf32>
    %1218 = arith.mulf %1217, %206 : vector<6x256xf32>
    %1219 = arith.addf %1215, %1218 : vector<6x256xf32>
    %c0_370 = arith.constant 0 : index
    %c123_371 = arith.constant 123 : index
    %1220 = vector.load %arg2[%c0_370, %c123_371] : memref<6x135xf32, #tpu.memory_space<vmem>>, vector<6x1xf32>
    %1221 = vector.broadcast %1220 : vector<6x1xf32> to vector<6x256xf32>
    %1222 = arith.mulf %1221, %607 : vector<6x256xf32>
    %1223 = arith.addf %1219, %1222 : vector<6x256xf32>
    %c0_372 = arith.constant 0 : index
    %c132 = arith.constant 132 : index
    %1224 = vector.load %arg2[%c0_372, %c132] : memref<6x135xf32, #tpu.memory_space<vmem>>, vector<6x1xf32>
    %1225 = vector.broadcast %1224 : vector<6x1xf32> to vector<6x256xf32>
    %1226 = arith.mulf %1225, %1044 : vector<6x256xf32>
    %1227 = arith.addf %1223, %1226 : vector<6x256xf32>
    %c241_i32_373 = arith.constant 241 : i32
    %1228 = tpu.dynamic_rotate %1227 by %c241_i32_373 dim 1 : vector<6x256xf32>, i32 -> vector<6x256xf32>
    %1229 = vector.broadcast %35 : vector<1x256xf32> to vector<6x256xf32>
    %1230 = arith.mulf %1228, %1229 : vector<6x256xf32>
    %1231 = arith.addf %1204, %1230 : vector<6x256xf32>
    %c0_374 = arith.constant 0 : index
    %c88 = arith.constant 88 : index
    %1232 = vector.load %arg2[%c0_374, %c88] : memref<6x135xf32, #tpu.memory_space<vmem>>, vector<6x1xf32>
    %1233 = vector.broadcast %1232 : vector<6x1xf32> to vector<6x256xf32>
    %1234 = arith.mulf %1233, %56 : vector<6x256xf32>
    %c0_375 = arith.constant 0 : index
    %c97 = arith.constant 97 : index
    %1235 = vector.load %arg2[%c0_375, %c97] : memref<6x135xf32, #tpu.memory_space<vmem>>, vector<6x1xf32>
    %1236 = vector.broadcast %1235 : vector<6x1xf32> to vector<6x256xf32>
    %1237 = arith.mulf %1236, %60 : vector<6x256xf32>
    %1238 = arith.addf %1234, %1237 : vector<6x256xf32>
    %c0_376 = arith.constant 0 : index
    %c106 = arith.constant 106 : index
    %1239 = vector.load %arg2[%c0_376, %c106] : memref<6x135xf32, #tpu.memory_space<vmem>>, vector<6x1xf32>
    %1240 = vector.broadcast %1239 : vector<6x1xf32> to vector<6x256xf32>
    %1241 = arith.mulf %1240, %64 : vector<6x256xf32>
    %1242 = arith.addf %1238, %1241 : vector<6x256xf32>
    %c0_377 = arith.constant 0 : index
    %c115_378 = arith.constant 115 : index
    %1243 = vector.load %arg2[%c0_377, %c115_378] : memref<6x135xf32, #tpu.memory_space<vmem>>, vector<6x1xf32>
    %1244 = vector.broadcast %1243 : vector<6x1xf32> to vector<6x256xf32>
    %1245 = arith.mulf %1244, %206 : vector<6x256xf32>
    %1246 = arith.addf %1242, %1245 : vector<6x256xf32>
    %c0_379 = arith.constant 0 : index
    %c124 = arith.constant 124 : index
    %1247 = vector.load %arg2[%c0_379, %c124] : memref<6x135xf32, #tpu.memory_space<vmem>>, vector<6x1xf32>
    %1248 = vector.broadcast %1247 : vector<6x1xf32> to vector<6x256xf32>
    %1249 = arith.mulf %1248, %607 : vector<6x256xf32>
    %1250 = arith.addf %1246, %1249 : vector<6x256xf32>
    %c0_380 = arith.constant 0 : index
    %c133 = arith.constant 133 : index
    %1251 = vector.load %arg2[%c0_380, %c133] : memref<6x135xf32, #tpu.memory_space<vmem>>, vector<6x1xf32>
    %1252 = vector.broadcast %1251 : vector<6x1xf32> to vector<6x256xf32>
    %1253 = arith.mulf %1252, %1044 : vector<6x256xf32>
    %1254 = arith.addf %1250, %1253 : vector<6x256xf32>
    %c240_i32_381 = arith.constant 240 : i32
    %1255 = tpu.dynamic_rotate %1254 by %c240_i32_381 dim 1 : vector<6x256xf32>, i32 -> vector<6x256xf32>
    %1256 = vector.broadcast %39 : vector<1x256xf32> to vector<6x256xf32>
    %1257 = arith.mulf %1255, %1256 : vector<6x256xf32>
    %1258 = arith.addf %1231, %1257 : vector<6x256xf32>
    %c0_382 = arith.constant 0 : index
    %c89 = arith.constant 89 : index
    %1259 = vector.load %arg2[%c0_382, %c89] : memref<6x135xf32, #tpu.memory_space<vmem>>, vector<6x1xf32>
    %1260 = vector.broadcast %1259 : vector<6x1xf32> to vector<6x256xf32>
    %1261 = arith.mulf %1260, %56 : vector<6x256xf32>
    %c0_383 = arith.constant 0 : index
    %c98 = arith.constant 98 : index
    %1262 = vector.load %arg2[%c0_383, %c98] : memref<6x135xf32, #tpu.memory_space<vmem>>, vector<6x1xf32>
    %1263 = vector.broadcast %1262 : vector<6x1xf32> to vector<6x256xf32>
    %1264 = arith.mulf %1263, %60 : vector<6x256xf32>
    %1265 = arith.addf %1261, %1264 : vector<6x256xf32>
    %c0_384 = arith.constant 0 : index
    %c107 = arith.constant 107 : index
    %1266 = vector.load %arg2[%c0_384, %c107] : memref<6x135xf32, #tpu.memory_space<vmem>>, vector<6x1xf32>
    %1267 = vector.broadcast %1266 : vector<6x1xf32> to vector<6x256xf32>
    %1268 = arith.mulf %1267, %64 : vector<6x256xf32>
    %1269 = arith.addf %1265, %1268 : vector<6x256xf32>
    %c0_385 = arith.constant 0 : index
    %c116_386 = arith.constant 116 : index
    %1270 = vector.load %arg2[%c0_385, %c116_386] : memref<6x135xf32, #tpu.memory_space<vmem>>, vector<6x1xf32>
    %1271 = vector.broadcast %1270 : vector<6x1xf32> to vector<6x256xf32>
    %1272 = arith.mulf %1271, %206 : vector<6x256xf32>
    %1273 = arith.addf %1269, %1272 : vector<6x256xf32>
    %c0_387 = arith.constant 0 : index
    %c125 = arith.constant 125 : index
    %1274 = vector.load %arg2[%c0_387, %c125] : memref<6x135xf32, #tpu.memory_space<vmem>>, vector<6x1xf32>
    %1275 = vector.broadcast %1274 : vector<6x1xf32> to vector<6x256xf32>
    %1276 = arith.mulf %1275, %607 : vector<6x256xf32>
    %1277 = arith.addf %1273, %1276 : vector<6x256xf32>
    %c0_388 = arith.constant 0 : index
    %c134 = arith.constant 134 : index
    %1278 = vector.load %arg2[%c0_388, %c134] : memref<6x135xf32, #tpu.memory_space<vmem>>, vector<6x1xf32>
    %1279 = vector.broadcast %1278 : vector<6x1xf32> to vector<6x256xf32>
    %1280 = arith.mulf %1279, %1044 : vector<6x256xf32>
    %1281 = arith.addf %1277, %1280 : vector<6x256xf32>
    %c239_i32_389 = arith.constant 239 : i32
    %1282 = tpu.dynamic_rotate %1281 by %c239_i32_389 dim 1 : vector<6x256xf32>, i32 -> vector<6x256xf32>
    %1283 = vector.broadcast %46 : vector<1x256xf32> to vector<6x256xf32>
    %1284 = arith.mulf %1282, %1283 : vector<6x256xf32>
    %1285 = arith.addf %1258, %1284 : vector<6x256xf32>
    %1286 = vector.extract_strided_slice %1285 {offsets = [0, 0], sizes = [2, 256], strides = [1, 1]} : vector<6x256xf32> to vector<2x256xf32>
    %cst_390 = arith.constant dense<0.000000e+00> : vector<2xf32>
    %1287 = vector.multi_reduction <add>, %1286, %cst_390 [1] : vector<2x256xf32> to vector<2xf32>
    %1288 = vector.shape_cast %1287 : vector<2xf32> to vector<2x1xf32>
    %cst_391 = arith.constant dense<0.000000e+00> : vector<1xf32>
    %1289 = vector.multi_reduction <add>, %1288, %cst_391 [0] : vector<2x1xf32> to vector<1xf32>
    %1290 = vector.shape_cast %1289 : vector<1xf32> to vector<1x1xf32>
    %1291 = arith.mulf %1286, %1286 : vector<2x256xf32>
    %cst_392 = arith.constant dense<0.000000e+00> : vector<2xf32>
    %1292 = vector.multi_reduction <add>, %1291, %cst_392 [1] : vector<2x256xf32> to vector<2xf32>
    %1293 = vector.shape_cast %1292 : vector<2xf32> to vector<2x1xf32>
    %cst_393 = arith.constant dense<0.000000e+00> : vector<1xf32>
    %1294 = vector.multi_reduction <add>, %1293, %cst_393 [0] : vector<2x1xf32> to vector<1xf32>
    %1295 = vector.shape_cast %1294 : vector<1xf32> to vector<1x1xf32>
    %cst_394 = arith.constant 0.001953125 : f32
    %1296 = vector.broadcast %cst_394 : f32 to vector<1x1xf32>
    %1297 = arith.mulf %1290, %1296 : vector<1x1xf32>
    %cst_395 = arith.constant 0.001953125 : f32
    %1298 = vector.broadcast %cst_395 : f32 to vector<1x1xf32>
    %1299 = arith.mulf %1295, %1298 : vector<1x1xf32>
    %1300 = arith.mulf %1297, %1297 : vector<1x1xf32>
    %1301 = arith.subf %1299, %1300 : vector<1x1xf32>
    %c124_396 = arith.constant 124 : index
    %1302 = memref.load %arg0[%c124_396] : memref<130xf32, #tpu.memory_space<smem>>
    %cst_397 = arith.constant 9.99999974E-6 : f32
    %1303 = vector.broadcast %cst_397 : f32 to vector<1x1xf32>
    %1304 = arith.addf %1301, %1303 : vector<1x1xf32>
    %1305 = math.rsqrt %1304 : vector<1x1xf32>
    %1306 = vector.broadcast %1302 : f32 to vector<1x1xf32>
    %1307 = arith.mulf %1306, %1305 : vector<1x1xf32>
    %c127_398 = arith.constant 127 : index
    %1308 = memref.load %arg0[%c127_398] : memref<130xf32, #tpu.memory_space<smem>>
    %1309 = arith.mulf %1297, %1307 : vector<1x1xf32>
    %1310 = vector.broadcast %1308 : f32 to vector<1x1xf32>
    %1311 = arith.subf %1310, %1309 : vector<1x1xf32>
    %1312 = vector.broadcast %1307 : vector<1x1xf32> to vector<2x256xf32>
    %1313 = arith.mulf %1286, %1312 : vector<2x256xf32>
    %1314 = vector.broadcast %1311 : vector<1x1xf32> to vector<2x256xf32>
    %1315 = arith.addf %1313, %1314 : vector<2x256xf32>
    %1316 = vector.extract_strided_slice %1285 {offsets = [2, 0], sizes = [2, 256], strides = [1, 1]} : vector<6x256xf32> to vector<2x256xf32>
    %cst_399 = arith.constant dense<0.000000e+00> : vector<2xf32>
    %1317 = vector.multi_reduction <add>, %1316, %cst_399 [1] : vector<2x256xf32> to vector<2xf32>
    %1318 = vector.shape_cast %1317 : vector<2xf32> to vector<2x1xf32>
    %cst_400 = arith.constant dense<0.000000e+00> : vector<1xf32>
    %1319 = vector.multi_reduction <add>, %1318, %cst_400 [0] : vector<2x1xf32> to vector<1xf32>
    %1320 = vector.shape_cast %1319 : vector<1xf32> to vector<1x1xf32>
    %1321 = arith.mulf %1316, %1316 : vector<2x256xf32>
    %cst_401 = arith.constant dense<0.000000e+00> : vector<2xf32>
    %1322 = vector.multi_reduction <add>, %1321, %cst_401 [1] : vector<2x256xf32> to vector<2xf32>
    %1323 = vector.shape_cast %1322 : vector<2xf32> to vector<2x1xf32>
    %cst_402 = arith.constant dense<0.000000e+00> : vector<1xf32>
    %1324 = vector.multi_reduction <add>, %1323, %cst_402 [0] : vector<2x1xf32> to vector<1xf32>
    %1325 = vector.shape_cast %1324 : vector<1xf32> to vector<1x1xf32>
    %cst_403 = arith.constant 0.001953125 : f32
    %1326 = vector.broadcast %cst_403 : f32 to vector<1x1xf32>
    %1327 = arith.mulf %1320, %1326 : vector<1x1xf32>
    %cst_404 = arith.constant 0.001953125 : f32
    %1328 = vector.broadcast %cst_404 : f32 to vector<1x1xf32>
    %1329 = arith.mulf %1325, %1328 : vector<1x1xf32>
    %1330 = arith.mulf %1327, %1327 : vector<1x1xf32>
    %1331 = arith.subf %1329, %1330 : vector<1x1xf32>
    %c125_405 = arith.constant 125 : index
    %1332 = memref.load %arg0[%c125_405] : memref<130xf32, #tpu.memory_space<smem>>
    %cst_406 = arith.constant 9.99999974E-6 : f32
    %1333 = vector.broadcast %cst_406 : f32 to vector<1x1xf32>
    %1334 = arith.addf %1331, %1333 : vector<1x1xf32>
    %1335 = math.rsqrt %1334 : vector<1x1xf32>
    %1336 = vector.broadcast %1332 : f32 to vector<1x1xf32>
    %1337 = arith.mulf %1336, %1335 : vector<1x1xf32>
    %c128_407 = arith.constant 128 : index
    %1338 = memref.load %arg0[%c128_407] : memref<130xf32, #tpu.memory_space<smem>>
    %1339 = arith.mulf %1327, %1337 : vector<1x1xf32>
    %1340 = vector.broadcast %1338 : f32 to vector<1x1xf32>
    %1341 = arith.subf %1340, %1339 : vector<1x1xf32>
    %1342 = vector.broadcast %1337 : vector<1x1xf32> to vector<2x256xf32>
    %1343 = arith.mulf %1316, %1342 : vector<2x256xf32>
    %1344 = vector.broadcast %1341 : vector<1x1xf32> to vector<2x256xf32>
    %1345 = arith.addf %1343, %1344 : vector<2x256xf32>
    %1346 = vector.extract_strided_slice %1285 {offsets = [4, 0], sizes = [2, 256], strides = [1, 1]} : vector<6x256xf32> to vector<2x256xf32>
    %cst_408 = arith.constant dense<0.000000e+00> : vector<2xf32>
    %1347 = vector.multi_reduction <add>, %1346, %cst_408 [1] : vector<2x256xf32> to vector<2xf32>
    %1348 = vector.shape_cast %1347 : vector<2xf32> to vector<2x1xf32>
    %cst_409 = arith.constant dense<0.000000e+00> : vector<1xf32>
    %1349 = vector.multi_reduction <add>, %1348, %cst_409 [0] : vector<2x1xf32> to vector<1xf32>
    %1350 = vector.shape_cast %1349 : vector<1xf32> to vector<1x1xf32>
    %1351 = arith.mulf %1346, %1346 : vector<2x256xf32>
    %cst_410 = arith.constant dense<0.000000e+00> : vector<2xf32>
    %1352 = vector.multi_reduction <add>, %1351, %cst_410 [1] : vector<2x256xf32> to vector<2xf32>
    %1353 = vector.shape_cast %1352 : vector<2xf32> to vector<2x1xf32>
    %cst_411 = arith.constant dense<0.000000e+00> : vector<1xf32>
    %1354 = vector.multi_reduction <add>, %1353, %cst_411 [0] : vector<2x1xf32> to vector<1xf32>
    %1355 = vector.shape_cast %1354 : vector<1xf32> to vector<1x1xf32>
    %cst_412 = arith.constant 0.001953125 : f32
    %1356 = vector.broadcast %cst_412 : f32 to vector<1x1xf32>
    %1357 = arith.mulf %1350, %1356 : vector<1x1xf32>
    %cst_413 = arith.constant 0.001953125 : f32
    %1358 = vector.broadcast %cst_413 : f32 to vector<1x1xf32>
    %1359 = arith.mulf %1355, %1358 : vector<1x1xf32>
    %1360 = arith.mulf %1357, %1357 : vector<1x1xf32>
    %1361 = arith.subf %1359, %1360 : vector<1x1xf32>
    %c126_414 = arith.constant 126 : index
    %1362 = memref.load %arg0[%c126_414] : memref<130xf32, #tpu.memory_space<smem>>
    %cst_415 = arith.constant 9.99999974E-6 : f32
    %1363 = vector.broadcast %cst_415 : f32 to vector<1x1xf32>
    %1364 = arith.addf %1361, %1363 : vector<1x1xf32>
    %1365 = math.rsqrt %1364 : vector<1x1xf32>
    %1366 = vector.broadcast %1362 : f32 to vector<1x1xf32>
    %1367 = arith.mulf %1366, %1365 : vector<1x1xf32>
    %c129_416 = arith.constant 129 : index
    %1368 = memref.load %arg0[%c129_416] : memref<130xf32, #tpu.memory_space<smem>>
    %1369 = arith.mulf %1357, %1367 : vector<1x1xf32>
    %1370 = vector.broadcast %1368 : f32 to vector<1x1xf32>
    %1371 = arith.subf %1370, %1369 : vector<1x1xf32>
    %1372 = vector.broadcast %1367 : vector<1x1xf32> to vector<2x256xf32>
    %1373 = arith.mulf %1346, %1372 : vector<2x256xf32>
    %1374 = vector.broadcast %1371 : vector<1x1xf32> to vector<2x256xf32>
    %1375 = arith.addf %1373, %1374 : vector<2x256xf32>
    %cst_417 = arith.constant 0.000000e+00 : f32
    %1376 = vector.broadcast %cst_417 : f32 to vector<2x256xf32>
    %c111_418 = arith.constant 111 : index
    %1377 = memref.load %arg0[%c111_418] : memref<130xf32, #tpu.memory_space<smem>>
    %1378 = vector.broadcast %1377 : f32 to vector<2x256xf32>
    %1379 = arith.addf %1376, %1378 : vector<2x256xf32>
    %c84_419 = arith.constant 84 : index
    %1380 = memref.load %arg0[%c84_419] : memref<130xf32, #tpu.memory_space<smem>>
    %1381 = vector.broadcast %1380 : f32 to vector<2x256xf32>
    %1382 = arith.mulf %1381, %1315 : vector<2x256xf32>
    %c93_420 = arith.constant 93 : index
    %1383 = memref.load %arg0[%c93_420] : memref<130xf32, #tpu.memory_space<smem>>
    %1384 = vector.broadcast %1383 : f32 to vector<2x256xf32>
    %1385 = arith.mulf %1384, %1345 : vector<2x256xf32>
    %1386 = arith.addf %1382, %1385 : vector<2x256xf32>
    %c102_421 = arith.constant 102 : index
    %1387 = memref.load %arg0[%c102_421] : memref<130xf32, #tpu.memory_space<smem>>
    %1388 = vector.broadcast %1387 : f32 to vector<2x256xf32>
    %1389 = arith.mulf %1388, %1375 : vector<2x256xf32>
    %1390 = arith.addf %1386, %1389 : vector<2x256xf32>
    %c17_i32_422 = arith.constant 17 : i32
    %1391 = tpu.dynamic_rotate %1390 by %c17_i32_422 dim 1 : vector<2x256xf32>, i32 -> vector<2x256xf32>
    %1392 = vector.broadcast %9 : vector<1x256xf32> to vector<2x256xf32>
    %1393 = arith.mulf %1391, %1392 : vector<2x256xf32>
    %1394 = arith.addf %1379, %1393 : vector<2x256xf32>
    %c85_423 = arith.constant 85 : index
    %1395 = memref.load %arg0[%c85_423] : memref<130xf32, #tpu.memory_space<smem>>
    %1396 = vector.broadcast %1395 : f32 to vector<2x256xf32>
    %1397 = arith.mulf %1396, %1315 : vector<2x256xf32>
    %c94_424 = arith.constant 94 : index
    %1398 = memref.load %arg0[%c94_424] : memref<130xf32, #tpu.memory_space<smem>>
    %1399 = vector.broadcast %1398 : f32 to vector<2x256xf32>
    %1400 = arith.mulf %1399, %1345 : vector<2x256xf32>
    %1401 = arith.addf %1397, %1400 : vector<2x256xf32>
    %c103_425 = arith.constant 103 : index
    %1402 = memref.load %arg0[%c103_425] : memref<130xf32, #tpu.memory_space<smem>>
    %1403 = vector.broadcast %1402 : f32 to vector<2x256xf32>
    %1404 = arith.mulf %1403, %1375 : vector<2x256xf32>
    %1405 = arith.addf %1401, %1404 : vector<2x256xf32>
    %c16_i32_426 = arith.constant 16 : i32
    %1406 = tpu.dynamic_rotate %1405 by %c16_i32_426 dim 1 : vector<2x256xf32>, i32 -> vector<2x256xf32>
    %1407 = vector.broadcast %13 : vector<1x256xf32> to vector<2x256xf32>
    %1408 = arith.mulf %1406, %1407 : vector<2x256xf32>
    %1409 = arith.addf %1394, %1408 : vector<2x256xf32>
    %c86_427 = arith.constant 86 : index
    %1410 = memref.load %arg0[%c86_427] : memref<130xf32, #tpu.memory_space<smem>>
    %1411 = vector.broadcast %1410 : f32 to vector<2x256xf32>
    %1412 = arith.mulf %1411, %1315 : vector<2x256xf32>
    %c95_428 = arith.constant 95 : index
    %1413 = memref.load %arg0[%c95_428] : memref<130xf32, #tpu.memory_space<smem>>
    %1414 = vector.broadcast %1413 : f32 to vector<2x256xf32>
    %1415 = arith.mulf %1414, %1345 : vector<2x256xf32>
    %1416 = arith.addf %1412, %1415 : vector<2x256xf32>
    %c104_429 = arith.constant 104 : index
    %1417 = memref.load %arg0[%c104_429] : memref<130xf32, #tpu.memory_space<smem>>
    %1418 = vector.broadcast %1417 : f32 to vector<2x256xf32>
    %1419 = arith.mulf %1418, %1375 : vector<2x256xf32>
    %1420 = arith.addf %1416, %1419 : vector<2x256xf32>
    %c15_i32_430 = arith.constant 15 : i32
    %1421 = tpu.dynamic_rotate %1420 by %c15_i32_430 dim 1 : vector<2x256xf32>, i32 -> vector<2x256xf32>
    %1422 = vector.broadcast %20 : vector<1x256xf32> to vector<2x256xf32>
    %1423 = arith.mulf %1421, %1422 : vector<2x256xf32>
    %1424 = arith.addf %1409, %1423 : vector<2x256xf32>
    %c87_431 = arith.constant 87 : index
    %1425 = memref.load %arg0[%c87_431] : memref<130xf32, #tpu.memory_space<smem>>
    %1426 = vector.broadcast %1425 : f32 to vector<2x256xf32>
    %1427 = arith.mulf %1426, %1315 : vector<2x256xf32>
    %c96_432 = arith.constant 96 : index
    %1428 = memref.load %arg0[%c96_432] : memref<130xf32, #tpu.memory_space<smem>>
    %1429 = vector.broadcast %1428 : f32 to vector<2x256xf32>
    %1430 = arith.mulf %1429, %1345 : vector<2x256xf32>
    %1431 = arith.addf %1427, %1430 : vector<2x256xf32>
    %c105_433 = arith.constant 105 : index
    %1432 = memref.load %arg0[%c105_433] : memref<130xf32, #tpu.memory_space<smem>>
    %1433 = vector.broadcast %1432 : f32 to vector<2x256xf32>
    %1434 = arith.mulf %1433, %1375 : vector<2x256xf32>
    %1435 = arith.addf %1431, %1434 : vector<2x256xf32>
    %c1_i32_434 = arith.constant 1 : i32
    %1436 = tpu.dynamic_rotate %1435 by %c1_i32_434 dim 1 : vector<2x256xf32>, i32 -> vector<2x256xf32>
    %1437 = vector.broadcast %24 : vector<1x256xf32> to vector<2x256xf32>
    %1438 = arith.mulf %1436, %1437 : vector<2x256xf32>
    %1439 = arith.addf %1424, %1438 : vector<2x256xf32>
    %c88_435 = arith.constant 88 : index
    %1440 = memref.load %arg0[%c88_435] : memref<130xf32, #tpu.memory_space<smem>>
    %1441 = vector.broadcast %1440 : f32 to vector<2x256xf32>
    %1442 = arith.mulf %1441, %1315 : vector<2x256xf32>
    %c97_436 = arith.constant 97 : index
    %1443 = memref.load %arg0[%c97_436] : memref<130xf32, #tpu.memory_space<smem>>
    %1444 = vector.broadcast %1443 : f32 to vector<2x256xf32>
    %1445 = arith.mulf %1444, %1345 : vector<2x256xf32>
    %1446 = arith.addf %1442, %1445 : vector<2x256xf32>
    %c106_437 = arith.constant 106 : index
    %1447 = memref.load %arg0[%c106_437] : memref<130xf32, #tpu.memory_space<smem>>
    %1448 = vector.broadcast %1447 : f32 to vector<2x256xf32>
    %1449 = arith.mulf %1448, %1375 : vector<2x256xf32>
    %1450 = arith.addf %1446, %1449 : vector<2x256xf32>
    %1451 = arith.addf %1439, %1450 : vector<2x256xf32>
    %c89_438 = arith.constant 89 : index
    %1452 = memref.load %arg0[%c89_438] : memref<130xf32, #tpu.memory_space<smem>>
    %1453 = vector.broadcast %1452 : f32 to vector<2x256xf32>
    %1454 = arith.mulf %1453, %1315 : vector<2x256xf32>
    %c98_439 = arith.constant 98 : index
    %1455 = memref.load %arg0[%c98_439] : memref<130xf32, #tpu.memory_space<smem>>
    %1456 = vector.broadcast %1455 : f32 to vector<2x256xf32>
    %1457 = arith.mulf %1456, %1345 : vector<2x256xf32>
    %1458 = arith.addf %1454, %1457 : vector<2x256xf32>
    %c107_440 = arith.constant 107 : index
    %1459 = memref.load %arg0[%c107_440] : memref<130xf32, #tpu.memory_space<smem>>
    %1460 = vector.broadcast %1459 : f32 to vector<2x256xf32>
    %1461 = arith.mulf %1460, %1375 : vector<2x256xf32>
    %1462 = arith.addf %1458, %1461 : vector<2x256xf32>
    %c255_i32_441 = arith.constant 255 : i32
    %1463 = tpu.dynamic_rotate %1462 by %c255_i32_441 dim 1 : vector<2x256xf32>, i32 -> vector<2x256xf32>
    %1464 = vector.broadcast %28 : vector<1x256xf32> to vector<2x256xf32>
    %1465 = arith.mulf %1463, %1464 : vector<2x256xf32>
    %1466 = arith.addf %1451, %1465 : vector<2x256xf32>
    %c90_442 = arith.constant 90 : index
    %1467 = memref.load %arg0[%c90_442] : memref<130xf32, #tpu.memory_space<smem>>
    %1468 = vector.broadcast %1467 : f32 to vector<2x256xf32>
    %1469 = arith.mulf %1468, %1315 : vector<2x256xf32>
    %c99_443 = arith.constant 99 : index
    %1470 = memref.load %arg0[%c99_443] : memref<130xf32, #tpu.memory_space<smem>>
    %1471 = vector.broadcast %1470 : f32 to vector<2x256xf32>
    %1472 = arith.mulf %1471, %1345 : vector<2x256xf32>
    %1473 = arith.addf %1469, %1472 : vector<2x256xf32>
    %c108_444 = arith.constant 108 : index
    %1474 = memref.load %arg0[%c108_444] : memref<130xf32, #tpu.memory_space<smem>>
    %1475 = vector.broadcast %1474 : f32 to vector<2x256xf32>
    %1476 = arith.mulf %1475, %1375 : vector<2x256xf32>
    %1477 = arith.addf %1473, %1476 : vector<2x256xf32>
    %c241_i32_445 = arith.constant 241 : i32
    %1478 = tpu.dynamic_rotate %1477 by %c241_i32_445 dim 1 : vector<2x256xf32>, i32 -> vector<2x256xf32>
    %1479 = vector.broadcast %35 : vector<1x256xf32> to vector<2x256xf32>
    %1480 = arith.mulf %1478, %1479 : vector<2x256xf32>
    %1481 = arith.addf %1466, %1480 : vector<2x256xf32>
    %c91_446 = arith.constant 91 : index
    %1482 = memref.load %arg0[%c91_446] : memref<130xf32, #tpu.memory_space<smem>>
    %1483 = vector.broadcast %1482 : f32 to vector<2x256xf32>
    %1484 = arith.mulf %1483, %1315 : vector<2x256xf32>
    %c100_447 = arith.constant 100 : index
    %1485 = memref.load %arg0[%c100_447] : memref<130xf32, #tpu.memory_space<smem>>
    %1486 = vector.broadcast %1485 : f32 to vector<2x256xf32>
    %1487 = arith.mulf %1486, %1345 : vector<2x256xf32>
    %1488 = arith.addf %1484, %1487 : vector<2x256xf32>
    %c109_448 = arith.constant 109 : index
    %1489 = memref.load %arg0[%c109_448] : memref<130xf32, #tpu.memory_space<smem>>
    %1490 = vector.broadcast %1489 : f32 to vector<2x256xf32>
    %1491 = arith.mulf %1490, %1375 : vector<2x256xf32>
    %1492 = arith.addf %1488, %1491 : vector<2x256xf32>
    %c240_i32_449 = arith.constant 240 : i32
    %1493 = tpu.dynamic_rotate %1492 by %c240_i32_449 dim 1 : vector<2x256xf32>, i32 -> vector<2x256xf32>
    %1494 = vector.broadcast %39 : vector<1x256xf32> to vector<2x256xf32>
    %1495 = arith.mulf %1493, %1494 : vector<2x256xf32>
    %1496 = arith.addf %1481, %1495 : vector<2x256xf32>
    %c92_450 = arith.constant 92 : index
    %1497 = memref.load %arg0[%c92_450] : memref<130xf32, #tpu.memory_space<smem>>
    %1498 = vector.broadcast %1497 : f32 to vector<2x256xf32>
    %1499 = arith.mulf %1498, %1315 : vector<2x256xf32>
    %c101_451 = arith.constant 101 : index
    %1500 = memref.load %arg0[%c101_451] : memref<130xf32, #tpu.memory_space<smem>>
    %1501 = vector.broadcast %1500 : f32 to vector<2x256xf32>
    %1502 = arith.mulf %1501, %1345 : vector<2x256xf32>
    %1503 = arith.addf %1499, %1502 : vector<2x256xf32>
    %c110_452 = arith.constant 110 : index
    %1504 = memref.load %arg0[%c110_452] : memref<130xf32, #tpu.memory_space<smem>>
    %1505 = vector.broadcast %1504 : f32 to vector<2x256xf32>
    %1506 = arith.mulf %1505, %1375 : vector<2x256xf32>
    %1507 = arith.addf %1503, %1506 : vector<2x256xf32>
    %c239_i32_453 = arith.constant 239 : i32
    %1508 = tpu.dynamic_rotate %1507 by %c239_i32_453 dim 1 : vector<2x256xf32>, i32 -> vector<2x256xf32>
    %1509 = vector.broadcast %46 : vector<1x256xf32> to vector<2x256xf32>
    %1510 = arith.mulf %1508, %1509 : vector<2x256xf32>
    %1511 = arith.addf %1496, %1510 : vector<2x256xf32>
    %cst_454 = arith.constant 0.000000e+00 : f32
    %1512 = vector.broadcast %cst_454 : f32 to vector<2x256xf32>
    %1513 = arith.maximumf %1511, %1512 : vector<2x256xf32>
    %c0_455 = arith.constant 0 : index
    %c0_456 = arith.constant 0 : index
    %1514 = vector.load %arg3[%c0_455, %c0_456] : memref<2x256xf32, #tpu.memory_space<vmem>>, vector<2x256xf32>
    tpu.vector_store %arg3[%c0_455, %c0_456], %1513 {strides = array<i32>} : memref<2x256xf32, #tpu.memory_space<vmem>>, vector<2x256xf32>,
    return
  }
}

</mosaic_0001>

<llo_original>
// kernel: chain_eunet_4_forward.1
$region0: #{chain_eunet_4_forward.1}
  #allocation0 [shape = 'u32[]', space=smem, size = 0x4, offset = 0x4, fixed_abs, tag = 'smem constant byte address 0x4 - core index']
  #allocation1 [shape = 'u32[144,128]{1,0:T(1,128)}', space=vmem, size = 0x12000, scoped, tag = 'internal scratch']
  #allocation2 [shape = 'f32[6,256]{1,0:T(8,128)}', space=vmem, size = 0x2000, scoped, tag = 'scratch operand']
  %s0 = inlined_call_operand.vmem [shape: f32[130], index: 0, kind: input, shape index: {}]
  %s1 = inlined_call_operand.vmem [shape: f32[3,2,256], index: 1, kind: input, shape index: {}]
  %s2 = inlined_call_operand.vmem [shape: f32[6,135], index: 2, kind: input, shape index: {}]
  %s3 = inlined_call_operand.vmem [shape: f32[2,256], index: 3, kind: output, shape index: {}]
  %s4 = sld [smem:[#allocation0]]
  $region26: #{chain_eunet_4_forward.1} parent=0
    _
  %s6 = ssub.s32 1, %s4
  %s7 = scalar_select 0, %s6, %s4
  $region1: #{chain_eunet_4_forward.1} parent=0
    #allocation3 [shape = 'u8[1024]{0}', space=smem, size = 0x400, scoped, tag = 'input window, operand 0, single buffered']
    #allocation4 [shape = 's32[1]{0}', space=sflag, size = 0x4, scoped, tag = 'scoped memory for chain_eunet_4_forward.1']
    %8 = vsyncpa [#allocation4], 0
    // Predicated region
    $region2: #{chain_eunet_4_forward.1} parent=1 // pred_check
      _
    $region3: #{chain_eunet_4_forward.1} parent=1 // pred_check_branch
      %10 = sbr.rel (0) target = $region5
    $region4: #{chain_eunet_4_forward.1} parent=1 // pred_region
      %s12 = ssub.s32 32, 32
      %13 = vsyncadd [#allocation4], %s12
      %s15 = sshll.u32 %s0, 4
      %s16 = int_to_ptr.vmem [resolvable:$true] %s15
      %18 = dma.vmem_to_smem %s16, 32, [#allocation3], [#allocation4]
    $region5: #{chain_eunet_4_forward.1} parent=1 // pred_fallthru
      _
    // Predicated region
    $region6: #{chain_eunet_4_forward.1} parent=1 // pred_check
      _
    $region7: #{chain_eunet_4_forward.1} parent=1 // pred_check_branch
      %20 = sbr.rel (0) target = $region9
    $region8: #{chain_eunet_4_forward.1} parent=1 // pred_region
      _
    $region9: #{chain_eunet_4_forward.1} parent=1 // pred_fallthru
      _
    // Predicated region
    $region10: #{chain_eunet_4_forward.1} parent=1 // pred_check
      _
    $region11: #{chain_eunet_4_forward.1} parent=1 // pred_check_branch
      %22 = sbr.rel (0) target = $region13
    $region12: #{chain_eunet_4_forward.1} parent=1 // pred_region
      _
    $region13: #{chain_eunet_4_forward.1} parent=1 // pred_fallthru
      _
    // Predicated region
    $region14: #{chain_eunet_4_forward.1} parent=1 // pred_check
      _
    $region15: #{chain_eunet_4_forward.1} parent=1 // pred_check_branch
      %24 = sbr.rel (0) target = $region17
    $region16: #{chain_eunet_4_forward.1} parent=1 // pred_region
      %25 = dma.done [#allocation4], 32
    $region17: #{chain_eunet_4_forward.1} parent=1 // pred_fallthru
      _
    %26 = sfence
    %v27 = vlaneseq
    %v28 = vand.u32 %v27, 127
    %v29 = vadd.s32 %v28, 128
    %v30 = vand.u32 %v28, 15
    %v31 = vand.u32 %v29, 15
    %vm32 = vcmp.ge.s32.totalorder %v28, 16
    %vm33 = vcmp.ge.s32.totalorder %v29, 16
    %vm34 = vcmp.ge.s32.totalorder %v30, 1
    %vm35 = vcmp.ge.s32.totalorder %v31, 1
    %vm36 = vmand %vm32, %vm34
    %vm37 = vmand %vm33, %vm35
    %v38 = vsel %vm36, 1, 0
    %v39 = vsel %vm37, 1, 0
    %v40 = vcvt.s32.f32 %v38
    %v41 = vcvt.s32.f32 %v39
    %v42 = vsel %vm32, 1, 0
    %v43 = vsel %vm33, 1, 0
    %v44 = vcvt.s32.f32 %v42
    %v45 = vcvt.s32.f32 %v43
    %vm46 = vcmp.le.s32.totalorder %v30, 14
    %vm47 = vcmp.le.s32.totalorder %v31, 14
    %vm48 = vmand %vm32, %vm46
    %vm49 = vmand %vm33, %vm47
    %v50 = vsel %vm48, 1, 0
    %v51 = vsel %vm49, 1, 0
    %v52 = vcvt.s32.f32 %v50
    %v53 = vcvt.s32.f32 %v51
    %v54 = vsel %vm34, 1, 0
    %v55 = vsel %vm35, 1, 0
    %v56 = vcvt.s32.f32 %v54
    %v57 = vcvt.s32.f32 %v55
    %v58 = vsel %vm46, 1, 0
    %v59 = vsel %vm47, 1, 0
    %v60 = vcvt.s32.f32 %v58
    %v61 = vcvt.s32.f32 %v59
    %vm62 = vcmp.lt.s32.totalorder %v28, 240
    %vm63 = vcmp.lt.s32.totalorder %v29, 240
    %vm64 = vmand %vm62, %vm34
    %vm65 = vmand %vm63, %vm35
    %v66 = vsel %vm64, 1, 0
    %v67 = vsel %vm65, 1, 0
    %v68 = vcvt.s32.f32 %v66
    %v69 = vcvt.s32.f32 %v67
    %v70 = vsel %vm62, 1, 0
    %v71 = vsel %vm63, 1, 0
    %v72 = vcvt.s32.f32 %v70
    %v73 = vcvt.s32.f32 %v71
    %vm74 = vmand %vm62, %vm46
    %vm75 = vmand %vm63, %vm47
    %v76 = vsel %vm74, 1, 0
    %v77 = vsel %vm75, 1, 0
    %v78 = vcvt.s32.f32 %v76
    %v79 = vcvt.s32.f32 %v77
    %v80 = vld [vmem:[%s1] sm:$0xf]
    %s81 = scalar_lea.vmem %s1, 4
    %v82 = vld [vmem:[%s81] sm:$0xf]
    %s83 = scalar_lea.vmem %s1, 8
    %v84 = vld [vmem:[%s83] sm:$0xf]
    %v87 = vunpack.c.l.s4 1983009808
    %v88 = vunpack.c.0.s8 %v87
    %v89 = vlaneseq
    %v90 = vshrl.u32 %v89, 7
    %v91 = vsub.s32 %v88, %v90
    %v92 = vrot.slane %v80, %v91
    %v93 = vcombine.high %v92, %v92
    %96 = vst [vmem:[#allocation2] sm:$0x3] %v92
    %97 = vst [vmem:[#allocation2 + $0x8] sm:$0x3] %v93
    %v98 = vcombine.low %v80, %v80
    %v100 = vunpack.c.l.s4 1983009808
    %v101 = vunpack.c.0.s8 %v100
    %v102 = vlaneseq
    %v103 = vshrl.u32 %v102, 7
    %v104 = vsub.s32 %v101, %v103
    %v105 = vrot.slane %v98, %v104
    %v106 = vcombine.high %v105, %v105
    %109 = vst [vmem:[#allocation2] sm:$0xc] %v105
    %110 = vst [vmem:[#allocation2 + $0x8] sm:$0xc] %v106
    %v111 = vcombine.low %v92, %v92
    %113 = vst [vmem:[#allocation2] sm:$0x30] %v111
    %114 = vst [vmem:[#allocation2 + $0x8] sm:$0x30] %v92
    %v115 = vld [vmem:[#allocation2] sm:$0x3f]
    %v116 = vld [vmem:[#allocation2 + $0x8] sm:$0x3f]
    %v119 = vunpack.c.l.s4 1983009808
    %v120 = vunpack.c.0.s8 %v119
    %v121 = vlaneseq
    %v122 = vshrl.u32 %v121, 7
    %v123 = vsub.s32 %v120, %v122
    %v124 = vrot.slane %v82, %v123
    %v125 = vcombine.high %v124, %v124
    %128 = vst [vmem:[#allocation2] sm:$0x3] %v124
    %129 = vst [vmem:[#allocation2 + $0x8] sm:$0x3] %v125
    %v130 = vcombine.low %v82, %v82
    %v132 = vunpack.c.l.s4 1983009808
    %v133 = vunpack.c.0.s8 %v132
    %v134 = vlaneseq
    %v135 = vshrl.u32 %v134, 7
    %v136 = vsub.s32 %v133, %v135
    %v137 = vrot.slane %v130, %v136
    %v138 = vcombine.high %v137, %v137
    %141 = vst [vmem:[#allocation2] sm:$0xc] %v137
    %142 = vst [vmem:[#allocation2 + $0x8] sm:$0xc] %v138
    %v143 = vcombine.low %v124, %v124
    %145 = vst [vmem:[#allocation2] sm:$0x30] %v143
    %146 = vst [vmem:[#allocation2 + $0x8] sm:$0x30] %v124
    %v147 = vld [vmem:[#allocation2] sm:$0x3f]
    %v148 = vld [vmem:[#allocation2 + $0x8] sm:$0x3f]
    %v151 = vunpack.c.l.s4 1983009808
    %v152 = vunpack.c.0.s8 %v151
    %v153 = vlaneseq
    %v154 = vshrl.u32 %v153, 7
    %v155 = vsub.s32 %v152, %v154
    %v156 = vrot.slane %v84, %v155
    %v157 = vcombine.high %v156, %v156
    %160 = vst [vmem:[#allocation2] sm:$0x3] %v156
    %161 = vst [vmem:[#allocation2 + $0x8] sm:$0x3] %v157
    %v162 = vcombine.low %v84, %v84
    %v164 = vunpack.c.l.s4 1983009808
    %v165 = vunpack.c.0.s8 %v164
    %v166 = vlaneseq
    %v167 = vshrl.u32 %v166, 7
    %v168 = vsub.s32 %v165, %v167
    %v169 = vrot.slane %v162, %v168
    %v170 = vcombine.high %v169, %v169
    %173 = vst [vmem:[#allocation2] sm:$0xc] %v169
    %174 = vst [vmem:[#allocation2 + $0x8] sm:$0xc] %v170
    %v175 = vcombine.low %v156, %v156
    %177 = vst [vmem:[#allocation2] sm:$0x30] %v175
    %178 = vst [vmem:[#allocation2 + $0x8] sm:$0x30] %v156
    %v179 = vld [vmem:[#allocation2] sm:$0x3f]
    %v180 = vld [vmem:[#allocation2 + $0x8] sm:$0x3f]
    %s181 = sld [smem:[#allocation3 + $0x1b]]
    %v182 = vstv %s181
    %v183 = vadd.f32 %v182, 0.0
    %s184 = sld [smem:[#allocation3]]
    %v185 = vstv %s184
    %v186 = vmul.f32 %v185, %v80
    %s187 = sld [smem:[#allocation3 + $0x9]]
    %v188 = vstv %s187
    %v189 = vmul.f32 %v188, %v82
    %v190 = vadd.f32 %v186, %v189
    %s191 = sld [smem:[#allocation3 + $0x12]]
    %v192 = vstv %s191
    %v193 = vmul.f32 %v192, %v84
    %v194 = vadd.f32 %v190, %v193
    %v197 = vunpack.c.l.s4 1983009808
    %v198 = vunpack.c.0.s8 %v197
    %v199 = vlaneseq
    %v200 = vshrl.u32 %v199, 7
    %v201 = vsub.s32 %v198, %v200
    %v202 = vrot.slane %v194, %v201
    %v203 = vcombine.high %v202, %v202
    %206 = vrot.lane.b32.xlu0 %v202, 17
    %v207 = vpop.permute.xlu0 %206
    %208 = vrot.lane.b32.xlu0 %v203, 17
    %v209 = vpop.permute.xlu0 %208
    %vm210 = vcmp.lt.s32.totalorder %v28, 17
    %v211 = vsel %vm210, %v207, %v209
    %v212 = vsel %vm210, %v209, %v207
    %v213 = vmul.f32 %v212, %v40
    %v214 = vmul.f32 %v211, %v41
    %v215 = vadd.f32 %v183, %v213
    %v216 = vadd.f32 %v183, %v214
    %s217 = sld [smem:[#allocation3 + $0x1]]
    %v218 = vstv %s217
    %v219 = vmul.f32 %v218, %v80
    %s220 = sld [smem:[#allocation3 + $0xa]]
    %v221 = vstv %s220
    %v222 = vmul.f32 %v221, %v82
    %v223 = vadd.f32 %v219, %v222
    %s224 = sld [smem:[#allocation3 + $0x13]]
    %v225 = vstv %s224
    %v226 = vmul.f32 %v225, %v84
    %v227 = vadd.f32 %v223, %v226
    %v230 = vunpack.c.l.s4 1983009808
    %v231 = vunpack.c.0.s8 %v230
    %v232 = vlaneseq
    %v233 = vshrl.u32 %v232, 7
    %v234 = vsub.s32 %v231, %v233
    %v235 = vrot.slane %v227, %v234
    %v236 = vcombine.high %v235, %v235
    %239 = vrot.lane.b32.xlu0 %v235, 16
    %v240 = vpop.permute.xlu0 %239
    %241 = vrot.lane.b32.xlu0 %v236, 16
    %v242 = vpop.permute.xlu0 %241
    %vm243 = vcmp.lt.s32.totalorder %v28, 16
    %v244 = vsel %vm243, %v240, %v242
    %v245 = vsel %vm243, %v242, %v240
    %v246 = vmul.f32 %v245, %v44
    %v247 = vmul.f32 %v244, %v45
    %v248 = vadd.f32 %v215, %v246
    %v249 = vadd.f32 %v216, %v247
    %s250 = sld [smem:[#allocation3 + $0x2]]
    %v251 = vstv %s250
    %v252 = vmul.f32 %v251, %v80
    %s253 = sld [smem:[#allocation3 + $0xb]]
    %v254 = vstv %s253
    %v255 = vmul.f32 %v254, %v82
    %v256 = vadd.f32 %v252, %v255
    %s257 = sld [smem:[#allocation3 + $0x14]]
    %v258 = vstv %s257
    %v259 = vmul.f32 %v258, %v84
    %v260 = vadd.f32 %v256, %v259
    %v263 = vunpack.c.l.s4 1983009808
    %v264 = vunpack.c.0.s8 %v263
    %v265 = vlaneseq
    %v266 = vshrl.u32 %v265, 7
    %v267 = vsub.s32 %v264, %v266
    %v268 = vrot.slane %v260, %v267
    %v269 = vcombine.high %v268, %v268
    %272 = vrot.lane.b32.xlu0 %v268, 15
    %v273 = vpop.permute.xlu0 %272
    %274 = vrot.lane.b32.xlu0 %v269, 15
    %v275 = vpop.permute.xlu0 %274
    %vm276 = vcmp.lt.s32.totalorder %v28, 15
    %v277 = vsel %vm276, %v273, %v275
    %v278 = vsel %vm276, %v275, %v273
    %v279 = vmul.f32 %v278, %v52
    %v280 = vmul.f32 %v277, %v53
    %v281 = vadd.f32 %v248, %v279
    %v282 = vadd.f32 %v249, %v280
    %s283 = sld [smem:[#allocation3 + $0x3]]
    %v284 = vstv %s283
    %v285 = vmul.f32 %v284, %v80
    %s286 = sld [smem:[#allocation3 + $0xc]]
    %v287 = vstv %s286
    %v288 = vmul.f32 %v287, %v82
    %v289 = vadd.f32 %v285, %v288
    %s290 = sld [smem:[#allocation3 + $0x15]]
    %v291 = vstv %s290
    %v292 = vmul.f32 %v291, %v84
    %v293 = vadd.f32 %v289, %v292
    %v296 = vunpack.c.l.s4 1983009808
    %v297 = vunpack.c.0.s8 %v296
    %v298 = vlaneseq
    %v299 = vshrl.u32 %v298, 7
    %v300 = vsub.s32 %v297, %v299
    %v301 = vrot.slane %v293, %v300
    %v302 = vcombine.high %v301, %v301
    %305 = vrot.lane.b32.xlu0 %v301, 1
    %v306 = vpop.permute.xlu0 %305
    %307 = vrot.lane.b32.xlu0 %v302, 1
    %v308 = vpop.permute.xlu0 %307
    %vm309 = vcmp.lt.s32.totalorder %v28, 1
    %v310 = vsel %vm309, %v306, %v308
    %v311 = vsel %vm309, %v308, %v306
    %v312 = vmul.f32 %v311, %v56
    %v313 = vmul.f32 %v310, %v57
    %v314 = vadd.f32 %v281, %v312
    %v315 = vadd.f32 %v282, %v313
    %s316 = sld [smem:[#allocation3 + $0x4]]
    %v317 = vstv %s316
    %v318 = vmul.f32 %v317, %v80
    %s319 = sld [smem:[#allocation3 + $0xd]]
    %v320 = vstv %s319
    %v321 = vmul.f32 %v320, %v82
    %v322 = vadd.f32 %v318, %v321
    %s323 = sld [smem:[#allocation3 + $0x16]]
    %v324 = vstv %s323
    %v325 = vmul.f32 %v324, %v84
    %v326 = vadd.f32 %v322, %v325
    %v329 = vunpack.c.l.s4 1983009808
    %v330 = vunpack.c.0.s8 %v329
    %v331 = vlaneseq
    %v332 = vshrl.u32 %v331, 7
    %v333 = vsub.s32 %v330, %v332
    %v334 = vrot.slane %v326, %v333
    %v335 = vcombine.high %v334, %v334
    %v338 = vadd.f32 %v314, %v334
    %v339 = vadd.f32 %v315, %v335
    %s340 = sld [smem:[#allocation3 + $0x5]]
    %v341 = vstv %s340
    %v342 = vmul.f32 %v341, %v80
    %s343 = sld [smem:[#allocation3 + $0xe]]
    %v344 = vstv %s343
    %v345 = vmul.f32 %v344, %v82
    %v346 = vadd.f32 %v342, %v345
    %s347 = sld [smem:[#allocation3 + $0x17]]
    %v348 = vstv %s347
    %v349 = vmul.f32 %v348, %v84
    %v350 = vadd.f32 %v346, %v349
    %v353 = vunpack.c.l.s4 1983009808
    %v354 = vunpack.c.0.s8 %v353
    %v355 = vlaneseq
    %v356 = vshrl.u32 %v355, 7
    %v357 = vsub.s32 %v354, %v356
    %v358 = vrot.slane %v350, %v357
    %v359 = vcombine.high %v358, %v358
    %362 = vrot.lane.b32.xlu0 %v358, 127
    %v363 = vpop.permute.xlu0 %362
    %364 = vrot.lane.b32.xlu0 %v359, 127
    %v365 = vpop.permute.xlu0 %364
    %vm366 = vcmp.lt.s32.totalorder %v28, 127
    %v367 = vsel %vm366, %v363, %v365
    %v368 = vsel %vm366, %v365, %v363
    %v369 = vmul.f32 %v367, %v60
    %v370 = vmul.f32 %v368, %v61
    %v371 = vadd.f32 %v338, %v369
    %v372 = vadd.f32 %v339, %v370
    %s373 = sld [smem:[#allocation3 + $0x6]]
    %v374 = vstv %s373
    %v375 = vmul.f32 %v374, %v80
    %s376 = sld [smem:[#allocation3 + $0xf]]
    %v377 = vstv %s376
    %v378 = vmul.f32 %v377, %v82
    %v379 = vadd.f32 %v375, %v378
    %s380 = sld [smem:[#allocation3 + $0x18]]
    %v381 = vstv %s380
    %v382 = vmul.f32 %v381, %v84
    %v383 = vadd.f32 %v379, %v382
    %v386 = vunpack.c.l.s4 1983009808
    %v387 = vunpack.c.0.s8 %v386
    %v388 = vlaneseq
    %v389 = vshrl.u32 %v388, 7
    %v390 = vsub.s32 %v387, %v389
    %v391 = vrot.slane %v383, %v390
    %v392 = vcombine.high %v391, %v391
    %395 = vrot.lane.b32.xlu0 %v391, 113
    %v396 = vpop.permute.xlu0 %395
    %397 = vrot.lane.b32.xlu0 %v392, 113
    %v398 = vpop.permute.xlu0 %397
    %vm399 = vcmp.lt.s32.totalorder %v28, 113
    %v400 = vsel %vm399, %v396, %v398
    %v401 = vsel %vm399, %v398, %v396
    %v402 = vmul.f32 %v400, %v68
    %v403 = vmul.f32 %v401, %v69
    %v404 = vadd.f32 %v371, %v402
    %v405 = vadd.f32 %v372, %v403
    %s406 = sld [smem:[#allocation3 + $0x7]]
    %v407 = vstv %s406
    %v408 = vmul.f32 %v407, %v80
    %s409 = sld [smem:[#allocation3 + $0x10]]
    %v410 = vstv %s409
    %v411 = vmul.f32 %v410, %v82
    %v412 = vadd.f32 %v408, %v411
    %s413 = sld [smem:[#allocation3 + $0x19]]
    %v414 = vstv %s413
    %v415 = vmul.f32 %v414, %v84
    %v416 = vadd.f32 %v412, %v415
    %v419 = vunpack.c.l.s4 1983009808
    %v420 = vunpack.c.0.s8 %v419
    %v421 = vlaneseq
    %v422 = vshrl.u32 %v421, 7
    %v423 = vsub.s32 %v420, %v422
    %v424 = vrot.slane %v416, %v423
    %v425 = vcombine.high %v424, %v424
    %428 = vrot.lane.b32.xlu0 %v424, 112
    %v429 = vpop.permute.xlu0 %428
    %430 = vrot.lane.b32.xlu0 %v425, 112
    %v431 = vpop.permute.xlu0 %430
    %vm432 = vcmp.lt.s32.totalorder %v28, 112
    %v433 = vsel %vm432, %v429, %v431
    %v434 = vsel %vm432, %v431, %v429
    %v435 = vmul.f32 %v433, %v72
    %v436 = vmul.f32 %v434, %v73
    %v437 = vadd.f32 %v404, %v435
    %v438 = vadd.f32 %v405, %v436
    %s439 = sld [smem:[#allocation3 + $0x8]]
    %v440 = vstv %s439
    %v441 = vmul.f32 %v440, %v80
    %s442 = sld [smem:[#allocation3 + $0x11]]
    %v443 = vstv %s442
    %v444 = vmul.f32 %v443, %v82
    %v445 = vadd.f32 %v441, %v444
    %s446 = sld [smem:[#allocation3 + $0x1a]]
    %v447 = vstv %s446
    %v448 = vmul.f32 %v447, %v84
    %v449 = vadd.f32 %v445, %v448
    %v452 = vunpack.c.l.s4 1983009808
    %v453 = vunpack.c.0.s8 %v452
    %v454 = vlaneseq
    %v455 = vshrl.u32 %v454, 7
    %v456 = vsub.s32 %v453, %v455
    %v457 = vrot.slane %v449, %v456
    %v458 = vcombine.high %v457, %v457
    %461 = vrot.lane.b32.xlu0 %v457, 111
    %v462 = vpop.permute.xlu0 %461
    %463 = vrot.lane.b32.xlu0 %v458, 111
    %v464 = vpop.permute.xlu0 %463
    %vm465 = vcmp.lt.s32.totalorder %v28, 111
    %v466 = vsel %vm465, %v462, %v464
    %v467 = vsel %vm465, %v464, %v462
    %v468 = vmul.f32 %v466, %v78
    %v469 = vmul.f32 %v467, %v79
    %v470 = vadd.f32 %v437, %v468
    %v471 = vadd.f32 %v438, %v469
    %v472 = vmax.f32 %v470, 0.0
    %v473 = vmax.f32 %v471, 0.0
    %474 = vst [vmem:[#allocation2] sm:$0x3] %v472
    %475 = vst [vmem:[#allocation2 + $0x8] sm:$0x3] %v473
    %v478 = vrot.slane %v472, 6
    %v479 = vrot.slane %v473, 6
    %482 = vst [vmem:[#allocation2] sm:$0xc] %v478
    %483 = vst [vmem:[#allocation2 + $0x8] sm:$0xc] %v479
    %v484 = vrot.slane %v472, 4
    %v485 = vrot.slane %v473, 4
    %488 = vst [vmem:[#allocation2] sm:$0x30] %v484
    %489 = vst [vmem:[#allocation2 + $0x8] sm:$0x30] %v485
    %v490 = vld [vmem:[#allocation2] sm:$0x3f]
    %v491 = vld [vmem:[#allocation2 + $0x8] sm:$0x3f]
    %v492 = vld [vmem:[%s2] sm:$0x3f]
    %494 = vset.pattern.permute.xlu0 0
    %495 = vperm.xlu0 %494, %v492
    %v496 = vpop.permute.xlu0 %495
    %v498 = vmul.f32 %v496, %v115
    %v499 = vmul.f32 %v496, %v116
    %500 = vset.pattern.permute.xlu0 9
    %501 = vperm.xlu0 %500, %v492
    %v502 = vpop.permute.xlu0 %501
    %v504 = vmul.f32 %v502, %v147
    %v505 = vmul.f32 %v502, %v148
    %v506 = vadd.f32 %v498, %v504
    %v507 = vadd.f32 %v499, %v505
    %508 = vset.pattern.permute.xlu0 18
    %509 = vperm.xlu0 %508, %v492
    %v510 = vpop.permute.xlu0 %509
    %v512 = vmul.f32 %v510, %v179
    %v513 = vmul.f32 %v510, %v180
    %v514 = vadd.f32 %v506, %v512
    %v515 = vadd.f32 %v507, %v513
    %516 = vset.pattern.permute.xlu0 27
    %517 = vperm.xlu0 %516, %v492
    %v518 = vpop.permute.xlu0 %517
    %v520 = vmul.f32 %v518, %v490
    %v521 = vmul.f32 %v518, %v491
    %v522 = vadd.f32 %v514, %v520
    %v523 = vadd.f32 %v515, %v521
    %524 = vrot.lane.b32.xlu0 %v522, 17
    %v525 = vpop.permute.xlu0 %524
    %526 = vrot.lane.b32.xlu0 %v523, 17
    %v527 = vpop.permute.xlu0 %526
    %v528 = vsel %vm210, %v525, %v527
    %v529 = vsel %vm210, %v527, %v525
    %v530 = vmul.f32 %v529, %v40
    %v531 = vmul.f32 %v528, %v41
    %v532 = vadd.f32 %v530, 0.0
    %v533 = vadd.f32 %v531, 0.0
    %534 = vset.pattern.permute.xlu0 1
    %535 = vperm.xlu0 %534, %v492
    %v536 = vpop.permute.xlu0 %535
    %v538 = vmul.f32 %v536, %v115
    %v539 = vmul.f32 %v536, %v116
    %540 = vset.pattern.permute.xlu0 10
    %541 = vperm.xlu0 %540, %v492
    %v542 = vpop.permute.xlu0 %541
    %v544 = vmul.f32 %v542, %v147
    %v545 = vmul.f32 %v542, %v148
    %v546 = vadd.f32 %v538, %v544
    %v547 = vadd.f32 %v539, %v545
    %548 = vset.pattern.permute.xlu0 19
    %549 = vperm.xlu0 %548, %v492
    %v550 = vpop.permute.xlu0 %549
    %v552 = vmul.f32 %v550, %v179
    %v553 = vmul.f32 %v550, %v180
    %v554 = vadd.f32 %v546, %v552
    %v555 = vadd.f32 %v547, %v553
    %556 = vset.pattern.permute.xlu0 28
    %557 = vperm.xlu0 %556, %v492
    %v558 = vpop.permute.xlu0 %557
    %v560 = vmul.f32 %v558, %v490
    %v561 = vmul.f32 %v558, %v491
    %v562 = vadd.f32 %v554, %v560
    %v563 = vadd.f32 %v555, %v561
    %564 = vrot.lane.b32.xlu0 %v562, 16
    %v565 = vpop.permute.xlu0 %564
    %566 = vrot.lane.b32.xlu0 %v563, 16
    %v567 = vpop.permute.xlu0 %566
    %v568 = vsel %vm243, %v565, %v567
    %v569 = vsel %vm243, %v567, %v565
    %v570 = vmul.f32 %v569, %v44
    %v571 = vmul.f32 %v568, %v45
    %v572 = vadd.f32 %v532, %v570
    %v573 = vadd.f32 %v533, %v571
    %574 = vset.pattern.permute.xlu0 2
    %575 = vperm.xlu0 %574, %v492
    %v576 = vpop.permute.xlu0 %575
    %v578 = vmul.f32 %v576, %v115
    %v579 = vmul.f32 %v576, %v116
    %580 = vset.pattern.permute.xlu0 11
    %581 = vperm.xlu0 %580, %v492
    %v582 = vpop.permute.xlu0 %581
    %v584 = vmul.f32 %v582, %v147
    %v585 = vmul.f32 %v582, %v148
    %v586 = vadd.f32 %v578, %v584
    %v587 = vadd.f32 %v579, %v585
    %588 = vset.pattern.permute.xlu0 20
    %589 = vperm.xlu0 %588, %v492
    %v590 = vpop.permute.xlu0 %589
    %v592 = vmul.f32 %v590, %v179
    %v593 = vmul.f32 %v590, %v180
    %v594 = vadd.f32 %v586, %v592
    %v595 = vadd.f32 %v587, %v593
    %596 = vset.pattern.permute.xlu0 29
    %597 = vperm.xlu0 %596, %v492
    %v598 = vpop.permute.xlu0 %597
    %v600 = vmul.f32 %v598, %v490
    %v601 = vmul.f32 %v598, %v491
    %v602 = vadd.f32 %v594, %v600
    %v603 = vadd.f32 %v595, %v601
    %604 = vrot.lane.b32.xlu0 %v602, 15
    %v605 = vpop.permute.xlu0 %604
    %606 = vrot.lane.b32.xlu0 %v603, 15
    %v607 = vpop.permute.xlu0 %606
    %v608 = vsel %vm276, %v605, %v607
    %v609 = vsel %vm276, %v607, %v605
    %v610 = vmul.f32 %v609, %v52
    %v611 = vmul.f32 %v608, %v53
    %v612 = vadd.f32 %v572, %v610
    %v613 = vadd.f32 %v573, %v611
    %614 = vset.pattern.permute.xlu0 3
    %615 = vperm.xlu0 %614, %v492
    %v616 = vpop.permute.xlu0 %615
    %v618 = vmul.f32 %v616, %v115
    %v619 = vmul.f32 %v616, %v116
    %620 = vset.pattern.permute.xlu0 12
    %621 = vperm.xlu0 %620, %v492
    %v622 = vpop.permute.xlu0 %621
    %v624 = vmul.f32 %v622, %v147
    %v625 = vmul.f32 %v622, %v148
    %v626 = vadd.f32 %v618, %v624
    %v627 = vadd.f32 %v619, %v625
    %628 = vset.pattern.permute.xlu0 21
    %629 = vperm.xlu0 %628, %v492
    %v630 = vpop.permute.xlu0 %629
    %v632 = vmul.f32 %v630, %v179
    %v633 = vmul.f32 %v630, %v180
    %v634 = vadd.f32 %v626, %v632
    %v635 = vadd.f32 %v627, %v633
    %636 = vset.pattern.permute.xlu0 30
    %637 = vperm.xlu0 %636, %v492
    %v638 = vpop.permute.xlu0 %637
    %v640 = vmul.f32 %v638, %v490
    %v641 = vmul.f32 %v638, %v491
    %v642 = vadd.f32 %v634, %v640
    %v643 = vadd.f32 %v635, %v641
    %644 = vrot.lane.b32.xlu0 %v642, 1
    %v645 = vpop.permute.xlu0 %644
    %646 = vrot.lane.b32.xlu0 %v643, 1
    %v647 = vpop.permute.xlu0 %646
    %v648 = vsel %vm309, %v645, %v647
    %v649 = vsel %vm309, %v647, %v645
    %v650 = vmul.f32 %v649, %v56
    %v651 = vmul.f32 %v648, %v57
    %v652 = vadd.f32 %v612, %v650
    %v653 = vadd.f32 %v613, %v651
    %654 = vset.pattern.permute.xlu0 4
    %655 = vperm.xlu0 %654, %v492
    %v656 = vpop.permute.xlu0 %655
    %v658 = vmul.f32 %v656, %v115
    %v659 = vmul.f32 %v656, %v116
    %660 = vset.pattern.permute.xlu0 13
    %661 = vperm.xlu0 %660, %v492
    %v662 = vpop.permute.xlu0 %661
    %v664 = vmul.f32 %v662, %v147
    %v665 = vmul.f32 %v662, %v148
    %v666 = vadd.f32 %v658, %v664
    %v667 = vadd.f32 %v659, %v665
    %668 = vset.pattern.permute.xlu0 22
    %669 = vperm.xlu0 %668, %v492
    %v670 = vpop.permute.xlu0 %669
    %v672 = vmul.f32 %v670, %v179
    %v673 = vmul.f32 %v670, %v180
    %v674 = vadd.f32 %v666, %v672
    %v675 = vadd.f32 %v667, %v673
    %676 = vset.pattern.permute.xlu0 31
    %677 = vperm.xlu0 %676, %v492
    %v678 = vpop.permute.xlu0 %677
    %v680 = vmul.f32 %v678, %v490
    %v681 = vmul.f32 %v678, %v491
    %v682 = vadd.f32 %v674, %v680
    %v683 = vadd.f32 %v675, %v681
    %v684 = vadd.f32 %v652, %v682
    %v685 = vadd.f32 %v653, %v683
    %686 = vset.pattern.permute.xlu0 5
    %687 = vperm.xlu0 %686, %v492
    %v688 = vpop.permute.xlu0 %687
    %v690 = vmul.f32 %v688, %v115
    %v691 = vmul.f32 %v688, %v116
    %692 = vset.pattern.permute.xlu0 14
    %693 = vperm.xlu0 %692, %v492
    %v694 = vpop.permute.xlu0 %693
    %v696 = vmul.f32 %v694, %v147
    %v697 = vmul.f32 %v694, %v148
    %v698 = vadd.f32 %v690, %v696
    %v699 = vadd.f32 %v691, %v697
    %700 = vset.pattern.permute.xlu0 23
    %701 = vperm.xlu0 %700, %v492
    %v702 = vpop.permute.xlu0 %701
    %v704 = vmul.f32 %v702, %v179
    %v705 = vmul.f32 %v702, %v180
    %v706 = vadd.f32 %v698, %v704
    %v707 = vadd.f32 %v699, %v705
    %708 = vset.pattern.permute.xlu0 32
    %709 = vperm.xlu0 %708, %v492
    %v710 = vpop.permute.xlu0 %709
    %v712 = vmul.f32 %v710, %v490
    %v713 = vmul.f32 %v710, %v491
    %v714 = vadd.f32 %v706, %v712
    %v715 = vadd.f32 %v707, %v713
    %716 = vrot.lane.b32.xlu0 %v714, 127
    %v717 = vpop.permute.xlu0 %716
    %718 = vrot.lane.b32.xlu0 %v715, 127
    %v719 = vpop.permute.xlu0 %718
    %v720 = vsel %vm366, %v717, %v719
    %v721 = vsel %vm366, %v719, %v717
    %v722 = vmul.f32 %v720, %v60
    %v723 = vmul.f32 %v721, %v61
    %v724 = vadd.f32 %v684, %v722
    %v725 = vadd.f32 %v685, %v723
    %726 = vset.pattern.permute.xlu0 6
    %727 = vperm.xlu0 %726, %v492
    %v728 = vpop.permute.xlu0 %727
    %v730 = vmul.f32 %v728, %v115
    %v731 = vmul.f32 %v728, %v116
    %732 = vset.pattern.permute.xlu0 15
    %733 = vperm.xlu0 %732, %v492
    %v734 = vpop.permute.xlu0 %733
    %v736 = vmul.f32 %v734, %v147
    %v737 = vmul.f32 %v734, %v148
    %v738 = vadd.f32 %v730, %v736
    %v739 = vadd.f32 %v731, %v737
    %740 = vset.pattern.permute.xlu0 24
    %741 = vperm.xlu0 %740, %v492
    %v742 = vpop.permute.xlu0 %741
    %v744 = vmul.f32 %v742, %v179
    %v745 = vmul.f32 %v742, %v180
    %v746 = vadd.f32 %v738, %v744
    %v747 = vadd.f32 %v739, %v745
    %748 = vset.pattern.permute.xlu0 33
    %749 = vperm.xlu0 %748, %v492
    %v750 = vpop.permute.xlu0 %749
    %v752 = vmul.f32 %v750, %v490
    %v753 = vmul.f32 %v750, %v491
    %v754 = vadd.f32 %v746, %v752
    %v755 = vadd.f32 %v747, %v753
    %756 = vrot.lane.b32.xlu0 %v754, 113
    %v757 = vpop.permute.xlu0 %756
    %758 = vrot.lane.b32.xlu0 %v755, 113
    %v759 = vpop.permute.xlu0 %758
    %v760 = vsel %vm399, %v757, %v759
    %v761 = vsel %vm399, %v759, %v757
    %v762 = vmul.f32 %v760, %v68
    %v763 = vmul.f32 %v761, %v69
    %v764 = vadd.f32 %v724, %v762
    %v765 = vadd.f32 %v725, %v763
    %766 = vset.pattern.permute.xlu0 7
    %767 = vperm.xlu0 %766, %v492
    %v768 = vpop.permute.xlu0 %767
    %v770 = vmul.f32 %v768, %v115
    %v771 = vmul.f32 %v768, %v116
    %772 = vset.pattern.permute.xlu0 16
    %773 = vperm.xlu0 %772, %v492
    %v774 = vpop.permute.xlu0 %773
    %v776 = vmul.f32 %v774, %v147
    %v777 = vmul.f32 %v774, %v148
    %v778 = vadd.f32 %v770, %v776
    %v779 = vadd.f32 %v771, %v777
    %780 = vset.pattern.permute.xlu0 25
    %781 = vperm.xlu0 %780, %v492
    %v782 = vpop.permute.xlu0 %781
    %v784 = vmul.f32 %v782, %v179
    %v785 = vmul.f32 %v782, %v180
    %v786 = vadd.f32 %v778, %v784
    %v787 = vadd.f32 %v779, %v785
    %788 = vset.pattern.permute.xlu0 34
    %789 = vperm.xlu0 %788, %v492
    %v790 = vpop.permute.xlu0 %789
    %v792 = vmul.f32 %v790, %v490
    %v793 = vmul.f32 %v790, %v491
    %v794 = vadd.f32 %v786, %v792
    %v795 = vadd.f32 %v787, %v793
    %796 = vrot.lane.b32.xlu0 %v794, 112
    %v797 = vpop.permute.xlu0 %796
    %798 = vrot.lane.b32.xlu0 %v795, 112
    %v799 = vpop.permute.xlu0 %798
    %v800 = vsel %vm432, %v797, %v799
    %v801 = vsel %vm432, %v799, %v797
    %v802 = vmul.f32 %v800, %v72
    %v803 = vmul.f32 %v801, %v73
    %v804 = vadd.f32 %v764, %v802
    %v805 = vadd.f32 %v765, %v803
    %806 = vset.pattern.permute.xlu0 8
    %807 = vperm.xlu0 %806, %v492
    %v808 = vpop.permute.xlu0 %807
    %v810 = vmul.f32 %v808, %v115
    %v811 = vmul.f32 %v808, %v116
    %812 = vset.pattern.permute.xlu0 17
    %813 = vperm.xlu0 %812, %v492
    %v814 = vpop.permute.xlu0 %813
    %v816 = vmul.f32 %v814, %v147
    %v817 = vmul.f32 %v814, %v148
    %v818 = vadd.f32 %v810, %v816
    %v819 = vadd.f32 %v811, %v817
    %820 = vset.pattern.permute.xlu0 26
    %821 = vperm.xlu0 %820, %v492
    %v822 = vpop.permute.xlu0 %821
    %v824 = vmul.f32 %v822, %v179
    %v825 = vmul.f32 %v822, %v180
    %v826 = vadd.f32 %v818, %v824
    %v827 = vadd.f32 %v819, %v825
    %828 = vset.pattern.permute.xlu0 35
    %829 = vperm.xlu0 %828, %v492
    %v830 = vpop.permute.xlu0 %829
    %v832 = vmul.f32 %v830, %v490
    %v833 = vmul.f32 %v830, %v491
    %v834 = vadd.f32 %v826, %v832
    %v835 = vadd.f32 %v827, %v833
    %836 = vrot.lane.b32.xlu0 %v834, 111
    %v837 = vpop.permute.xlu0 %836
    %838 = vrot.lane.b32.xlu0 %v835, 111
    %v839 = vpop.permute.xlu0 %838
    %v840 = vsel %vm465, %v837, %v839
    %v841 = vsel %vm465, %v839, %v837
    %v842 = vmul.f32 %v840, %v78
    %v843 = vmul.f32 %v841, %v79
    %v844 = vadd.f32 %v804, %v842
    %v845 = vadd.f32 %v805, %v843
    %vm846 = vcmask 1041408
    %v847 = vsel %vm846, %v844, 0.0
    %v848 = vsel %vm846, %v845, 0.0
    %v849 = vadd.f32 %v847, %v848
    %850 = vadd.xlane.f32.xlu0 %v849
    %v851 = vpop.xlane.xlu0 %850
    %v852 = vsel %vm846, %v851, 0.0
    %v853 = vrot.slane %v852, 4
    %v854 = vadd.f32 %v852, %v853
    %v855 = vrot.slane %v854, 2
    %v856 = vadd.f32 %v854, %v855
    %v857 = vrot.slane %v856, 1
    %v858 = vadd.f32 %v856, %v857
    %v859 = vmul.f32 %v844, %v844
    %v860 = vmul.f32 %v845, %v845
    %v861 = vsel %vm846, %v859, 0.0
    %v862 = vsel %vm846, %v860, 0.0
    %v863 = vadd.f32 %v861, %v862
    %864 = vadd.xlane.f32.xlu0 %v863
    %v865 = vpop.xlane.xlu0 %864
    %v866 = vsel %vm846, %v865, 0.0
    %v867 = vrot.slane %v866, 4
    %v868 = vadd.f32 %v866, %v867
    %v869 = vrot.slane %v868, 2
    %v870 = vadd.f32 %v868, %v869
    %v871 = vrot.slane %v870, 1
    %v872 = vadd.f32 %v870, %v871
    %v873 = vmul.f32 %v858, 0.001953125
    %v874 = vmul.f32 %v872, 0.001953125
    %v875 = vmul.f32 %v873, %v873
    %v876 = vsub.f32 %v874, %v875
    %s877 = sld [smem:[#allocation3 + $0x70]]
    %v878 = vadd.f32 %v876, 1e-05
    %v879 = vrsqrt.pop %v878
    %v880 = vstv %s877
    %v881 = vmul.f32 %v880, %v879
    %s882 = sld [smem:[#allocation3 + $0x73]]
    %v883 = vmul.f32 %v873, %v881
    %v884 = vstv %s882
    %v885 = vsub.f32 %v884, %v883
    %v886 = vmul.f32 %v844, %v881
    %v887 = vmul.f32 %v845, %v881
    %v888 = vadd.f32 %v886, %v885
    %v889 = vadd.f32 %v887, %v885
    %vm890 = vcmask 1043458
    %v891 = vsel %vm890, %v844, 0.0
    %v892 = vsel %vm890, %v845, 0.0
    %v893 = vadd.f32 %v891, %v892
    %894 = vadd.xlane.f32.xlu0 %v893
    %v895 = vpop.xlane.xlu0 %894
    %v897 = vrot.slane %v895, 2
    %v899 = vsel %vm846, %v897, 0.0
    %v900 = vrot.slane %v899, 4
    %v901 = vadd.f32 %v899, %v900
    %v902 = vrot.slane %v901, 2
    %v903 = vadd.f32 %v901, %v902
    %v904 = vrot.slane %v903, 1
    %v905 = vadd.f32 %v903, %v904
    %v906 = vsel %vm890, %v859, 0.0
    %v907 = vsel %vm890, %v860, 0.0
    %v908 = vadd.f32 %v906, %v907
    %909 = vadd.xlane.f32.xlu0 %v908
    %v910 = vpop.xlane.xlu0 %909
    %v912 = vrot.slane %v910, 2
    %v914 = vsel %vm846, %v912, 0.0
    %v915 = vrot.slane %v914, 4
    %v916 = vadd.f32 %v914, %v915
    %v917 = vrot.slane %v916, 2
    %v918 = vadd.f32 %v916, %v917
    %v919 = vrot.slane %v918, 1
    %v920 = vadd.f32 %v918, %v919
    %v921 = vmul.f32 %v905, 0.001953125
    %v922 = vmul.f32 %v920, 0.001953125
    %v923 = vmul.f32 %v921, %v921
    %v924 = vsub.f32 %v922, %v923
    %s925 = sld [smem:[#allocation3 + $0x71]]
    %v926 = vadd.f32 %v924, 1e-05
    %v927 = vrsqrt.pop %v926
    %v928 = vstv %s925
    %v929 = vmul.f32 %v928, %v927
    %s930 = sld [smem:[#allocation3 + $0x74]]
    %v931 = vmul.f32 %v921, %v929
    %v932 = vstv %s930
    %v933 = vsub.f32 %v932, %v931
    %v934 = vmul.f32 %v844, %v929
    %v935 = vmul.f32 %v845, %v929
    %v936 = vadd.f32 %v934, %v933
    %v937 = vadd.f32 %v935, %v933
    %vm938 = vcmask 1045508
    %v939 = vsel %vm938, %v844, 0.0
    %v940 = vsel %vm938, %v845, 0.0
    %v941 = vadd.f32 %v939, %v940
    %942 = vadd.xlane.f32.xlu0 %v941
    %v943 = vpop.xlane.xlu0 %942
    %v945 = vrot.slane %v943, 4
    %v947 = vsel %vm846, %v945, 0.0
    %v948 = vrot.slane %v947, 4
    %v949 = vadd.f32 %v947, %v948
    %v950 = vrot.slane %v949, 2
    %v951 = vadd.f32 %v949, %v950
    %v952 = vrot.slane %v951, 1
    %v953 = vadd.f32 %v951, %v952
    %v954 = vsel %vm938, %v859, 0.0
    %v955 = vsel %vm938, %v860, 0.0
    %v956 = vadd.f32 %v954, %v955
    %957 = vadd.xlane.f32.xlu0 %v956
    %v958 = vpop.xlane.xlu0 %957
    %v960 = vrot.slane %v958, 4
    %v962 = vsel %vm846, %v960, 0.0
    %v963 = vrot.slane %v962, 4
    %v964 = vadd.f32 %v962, %v963
    %v965 = vrot.slane %v964, 2
    %v966 = vadd.f32 %v964, %v965
    %v967 = vrot.slane %v966, 1
    %v968 = vadd.f32 %v966, %v967
    %v969 = vmul.f32 %v953, 0.001953125
    %v970 = vmul.f32 %v968, 0.001953125
    %v971 = vmul.f32 %v969, %v969
    %v972 = vsub.f32 %v970, %v971
    %s973 = sld [smem:[#allocation3 + $0x72]]
    %v974 = vadd.f32 %v972, 1e-05
    %v975 = vrsqrt.pop %v974
    %v976 = vstv %s973
    %v977 = vmul.f32 %v976, %v975
    %s978 = sld [smem:[#allocation3 + $0x75]]
    %v979 = vmul.f32 %v969, %v977
    %v980 = vstv %s978
    %v981 = vsub.f32 %v980, %v979
    %v982 = vmul.f32 %v844, %v977
    %v983 = vmul.f32 %v845, %v977
    %v984 = vadd.f32 %v982, %v981
    %v985 = vadd.f32 %v983, %v981
    %s986 = sld [smem:[#allocation3 + $0x37]]
    %v987 = vstv %s986
    %v988 = vadd.f32 %v987, 0.0
    %s989 = sld [smem:[#allocation3 + $0x1c]]
    %v990 = vstv %s989
    %v991 = vmul.f32 %v990, %v888
    %v992 = vmul.f32 %v990, %v889
    %s993 = sld [smem:[#allocation3 + $0x25]]
    %v994 = vstv %s993
    %v995 = vmul.f32 %v994, %v936
    %v996 = vmul.f32 %v994, %v937
    %v999 = vrot.slane %v995, 2
    %v1000 = vrot.slane %v996, 2
    %v1003 = vadd.f32 %v991, %v999
    %v1004 = vadd.f32 %v992, %v1000
    %s1005 = sld [smem:[#allocation3 + $0x2e]]
    %v1006 = vstv %s1005
    %v1007 = vmul.f32 %v1006, %v984
    %v1008 = vmul.f32 %v1006, %v985
    %v1011 = vrot.slane %v1007, 4
    %v1012 = vrot.slane %v1008, 4
    %v1015 = vadd.f32 %v1003, %v1011
    %v1016 = vadd.f32 %v1004, %v1012
    %1017 = vrot.lane.b32.xlu0 %v1015, 17
    %v1018 = vpop.permute.xlu0 %1017
    %1019 = vrot.lane.b32.xlu0 %v1016, 17
    %v1020 = vpop.permute.xlu0 %1019
    %v1021 = vsel %vm210, %v1018, %v1020
    %v1022 = vsel %vm210, %v1020, %v1018
    %v1023 = vmul.f32 %v1022, %v40
    %v1024 = vmul.f32 %v1021, %v41
    %v1025 = vadd.f32 %v988, %v1023
    %v1026 = vadd.f32 %v988, %v1024
    %s1027 = sld [smem:[#allocation3 + $0x1d]]
    %v1028 = vstv %s1027
    %v1029 = vmul.f32 %v1028, %v888
    %v1030 = vmul.f32 %v1028, %v889
    %s1031 = sld [smem:[#allocation3 + $0x26]]
    %v1032 = vstv %s1031
    %v1033 = vmul.f32 %v1032, %v936
    %v1034 = vmul.f32 %v1032, %v937
    %v1037 = vrot.slane %v1033, 2
    %v1038 = vrot.slane %v1034, 2
    %v1041 = vadd.f32 %v1029, %v1037
    %v1042 = vadd.f32 %v1030, %v1038
    %s1043 = sld [smem:[#allocation3 + $0x2f]]
    %v1044 = vstv %s1043
    %v1045 = vmul.f32 %v1044, %v984
    %v1046 = vmul.f32 %v1044, %v985
    %v1049 = vrot.slane %v1045, 4
    %v1050 = vrot.slane %v1046, 4
    %v1053 = vadd.f32 %v1041, %v1049
    %v1054 = vadd.f32 %v1042, %v1050
    %1055 = vrot.lane.b32.xlu0 %v1053, 16
    %v1056 = vpop.permute.xlu0 %1055
    %1057 = vrot.lane.b32.xlu0 %v1054, 16
    %v1058 = vpop.permute.xlu0 %1057
    %v1059 = vsel %vm243, %v1056, %v1058
    %v1060 = vsel %vm243, %v1058, %v1056
    %v1061 = vmul.f32 %v1060, %v44
    %v1062 = vmul.f32 %v1059, %v45
    %v1063 = vadd.f32 %v1025, %v1061
    %v1064 = vadd.f32 %v1026, %v1062
    %s1065 = sld [smem:[#allocation3 + $0x1e]]
    %v1066 = vstv %s1065
    %v1067 = vmul.f32 %v1066, %v888
    %v1068 = vmul.f32 %v1066, %v889
    %s1069 = sld [smem:[#allocation3 + $0x27]]
    %v1070 = vstv %s1069
    %v1071 = vmul.f32 %v1070, %v936
    %v1072 = vmul.f32 %v1070, %v937
    %v1075 = vrot.slane %v1071, 2
    %v1076 = vrot.slane %v1072, 2
    %v1079 = vadd.f32 %v1067, %v1075
    %v1080 = vadd.f32 %v1068, %v1076
    %s1081 = sld [smem:[#allocation3 + $0x30]]
    %v1082 = vstv %s1081
    %v1083 = vmul.f32 %v1082, %v984
    %v1084 = vmul.f32 %v1082, %v985
    %v1087 = vrot.slane %v1083, 4
    %v1088 = vrot.slane %v1084, 4
    %v1091 = vadd.f32 %v1079, %v1087
    %v1092 = vadd.f32 %v1080, %v1088
    %1093 = vrot.lane.b32.xlu0 %v1091, 15
    %v1094 = vpop.permute.xlu0 %1093
    %1095 = vrot.lane.b32.xlu0 %v1092, 15
    %v1096 = vpop.permute.xlu0 %1095
    %v1097 = vsel %vm276, %v1094, %v1096
    %v1098 = vsel %vm276, %v1096, %v1094
    %v1099 = vmul.f32 %v1098, %v52
    %v1100 = vmul.f32 %v1097, %v53
    %v1101 = vadd.f32 %v1063, %v1099
    %v1102 = vadd.f32 %v1064, %v1100
    %s1103 = sld [smem:[#allocation3 + $0x1f]]
    %v1104 = vstv %s1103
    %v1105 = vmul.f32 %v1104, %v888
    %v1106 = vmul.f32 %v1104, %v889
    %s1107 = sld [smem:[#allocation3 + $0x28]]
    %v1108 = vstv %s1107
    %v1109 = vmul.f32 %v1108, %v936
    %v1110 = vmul.f32 %v1108, %v937
    %v1113 = vrot.slane %v1109, 2
    %v1114 = vrot.slane %v1110, 2
    %v1117 = vadd.f32 %v1105, %v1113
    %v1118 = vadd.f32 %v1106, %v1114
    %s1119 = sld [smem:[#allocation3 + $0x31]]
    %v1120 = vstv %s1119
    %v1121 = vmul.f32 %v1120, %v984
    %v1122 = vmul.f32 %v1120, %v985
    %v1125 = vrot.slane %v1121, 4
    %v1126 = vrot.slane %v1122, 4
    %v1129 = vadd.f32 %v1117, %v1125
    %v1130 = vadd.f32 %v1118, %v1126
    %1131 = vrot.lane.b32.xlu0 %v1129, 1
    %v1132 = vpop.permute.xlu0 %1131
    %1133 = vrot.lane.b32.xlu0 %v1130, 1
    %v1134 = vpop.permute.xlu0 %1133
    %v1135 = vsel %vm309, %v1132, %v1134
    %v1136 = vsel %vm309, %v1134, %v1132
    %v1137 = vmul.f32 %v1136, %v56
    %v1138 = vmul.f32 %v1135, %v57
    %v1139 = vadd.f32 %v1101, %v1137
    %v1140 = vadd.f32 %v1102, %v1138
    %s1141 = sld [smem:[#allocation3 + $0x20]]
    %v1142 = vstv %s1141
    %v1143 = vmul.f32 %v1142, %v888
    %v1144 = vmul.f32 %v1142, %v889
    %s1145 = sld [smem:[#allocation3 + $0x29]]
    %v1146 = vstv %s1145
    %v1147 = vmul.f32 %v1146, %v936
    %v1148 = vmul.f32 %v1146, %v937
    %v1151 = vrot.slane %v1147, 2
    %v1152 = vrot.slane %v1148, 2
    %v1155 = vadd.f32 %v1143, %v1151
    %v1156 = vadd.f32 %v1144, %v1152
    %s1157 = sld [smem:[#allocation3 + $0x32]]
    %v1158 = vstv %s1157
    %v1159 = vmul.f32 %v1158, %v984
    %v1160 = vmul.f32 %v1158, %v985
    %v1163 = vrot.slane %v1159, 4
    %v1164 = vrot.slane %v1160, 4
    %v1167 = vadd.f32 %v1155, %v1163
    %v1168 = vadd.f32 %v1156, %v1164
    %v1169 = vadd.f32 %v1139, %v1167
    %v1170 = vadd.f32 %v1140, %v1168
    %s1171 = sld [smem:[#allocation3 + $0x21]]
    %v1172 = vstv %s1171
    %v1173 = vmul.f32 %v1172, %v888
    %v1174 = vmul.f32 %v1172, %v889
    %s1175 = sld [smem:[#allocation3 + $0x2a]]
    %v1176 = vstv %s1175
    %v1177 = vmul.f32 %v1176, %v936
    %v1178 = vmul.f32 %v1176, %v937
    %v1181 = vrot.slane %v1177, 2
    %v1182 = vrot.slane %v1178, 2
    %v1185 = vadd.f32 %v1173, %v1181
    %v1186 = vadd.f32 %v1174, %v1182
    %s1187 = sld [smem:[#allocation3 + $0x33]]
    %v1188 = vstv %s1187
    %v1189 = vmul.f32 %v1188, %v984
    %v1190 = vmul.f32 %v1188, %v985
    %v1193 = vrot.slane %v1189, 4
    %v1194 = vrot.slane %v1190, 4
    %v1197 = vadd.f32 %v1185, %v1193
    %v1198 = vadd.f32 %v1186, %v1194
    %1199 = vrot.lane.b32.xlu0 %v1197, 127
    %v1200 = vpop.permute.xlu0 %1199
    %1201 = vrot.lane.b32.xlu0 %v1198, 127
    %v1202 = vpop.permute.xlu0 %1201
    %v1203 = vsel %vm366, %v1200, %v1202
    %v1204 = vsel %vm366, %v1202, %v1200
    %v1205 = vmul.f32 %v1203, %v60
    %v1206 = vmul.f32 %v1204, %v61
    %v1207 = vadd.f32 %v1169, %v1205
    %v1208 = vadd.f32 %v1170, %v1206
    %s1209 = sld [smem:[#allocation3 + $0x22]]
    %v1210 = vstv %s1209
    %v1211 = vmul.f32 %v1210, %v888
    %v1212 = vmul.f32 %v1210, %v889
    %s1213 = sld [smem:[#allocation3 + $0x2b]]
    %v1214 = vstv %s1213
    %v1215 = vmul.f32 %v1214, %v936
    %v1216 = vmul.f32 %v1214, %v937
    %v1219 = vrot.slane %v1215, 2
    %v1220 = vrot.slane %v1216, 2
    %v1223 = vadd.f32 %v1211, %v1219
    %v1224 = vadd.f32 %v1212, %v1220
    %s1225 = sld [smem:[#allocation3 + $0x34]]
    %v1226 = vstv %s1225
    %v1227 = vmul.f32 %v1226, %v984
    %v1228 = vmul.f32 %v1226, %v985
    %v1231 = vrot.slane %v1227, 4
    %v1232 = vrot.slane %v1228, 4
    %v1235 = vadd.f32 %v1223, %v1231
    %v1236 = vadd.f32 %v1224, %v1232
    %1237 = vrot.lane.b32.xlu0 %v1235, 113
    %v1238 = vpop.permute.xlu0 %1237
    %1239 = vrot.lane.b32.xlu0 %v1236, 113
    %v1240 = vpop.permute.xlu0 %1239
    %v1241 = vsel %vm399, %v1238, %v1240
    %v1242 = vsel %vm399, %v1240, %v1238
    %v1243 = vmul.f32 %v1241, %v68
    %v1244 = vmul.f32 %v1242, %v69
    %v1245 = vadd.f32 %v1207, %v1243
    %v1246 = vadd.f32 %v1208, %v1244
    %s1247 = sld [smem:[#allocation3 + $0x23]]
    %v1248 = vstv %s1247
    %v1249 = vmul.f32 %v1248, %v888
    %v1250 = vmul.f32 %v1248, %v889
    %s1251 = sld [smem:[#allocation3 + $0x2c]]
    %v1252 = vstv %s1251
    %v1253 = vmul.f32 %v1252, %v936
    %v1254 = vmul.f32 %v1252, %v937
    %v1257 = vrot.slane %v1253, 2
    %v1258 = vrot.slane %v1254, 2
    %v1261 = vadd.f32 %v1249, %v1257
    %v1262 = vadd.f32 %v1250, %v1258
    %s1263 = sld [smem:[#allocation3 + $0x35]]
    %v1264 = vstv %s1263
    %v1265 = vmul.f32 %v1264, %v984
    %v1266 = vmul.f32 %v1264, %v985
    %v1269 = vrot.slane %v1265, 4
    %v1270 = vrot.slane %v1266, 4
    %v1273 = vadd.f32 %v1261, %v1269
    %v1274 = vadd.f32 %v1262, %v1270
    %1275 = vrot.lane.b32.xlu0 %v1273, 112
    %v1276 = vpop.permute.xlu0 %1275
    %1277 = vrot.lane.b32.xlu0 %v1274, 112
    %v1278 = vpop.permute.xlu0 %1277
    %v1279 = vsel %vm432, %v1276, %v1278
    %v1280 = vsel %vm432, %v1278, %v1276
    %v1281 = vmul.f32 %v1279, %v72
    %v1282 = vmul.f32 %v1280, %v73
    %v1283 = vadd.f32 %v1245, %v1281
    %v1284 = vadd.f32 %v1246, %v1282
    %s1285 = sld [smem:[#allocation3 + $0x24]]
    %v1286 = vstv %s1285
    %v1287 = vmul.f32 %v1286, %v888
    %v1288 = vmul.f32 %v1286, %v889
    %s1289 = sld [smem:[#allocation3 + $0x2d]]
    %v1290 = vstv %s1289
    %v1291 = vmul.f32 %v1290, %v936
    %v1292 = vmul.f32 %v1290, %v937
    %v1295 = vrot.slane %v1291, 2
    %v1296 = vrot.slane %v1292, 2
    %v1299 = vadd.f32 %v1287, %v1295
    %v1300 = vadd.f32 %v1288, %v1296
    %s1301 = sld [smem:[#allocation3 + $0x36]]
    %v1302 = vstv %s1301
    %v1303 = vmul.f32 %v1302, %v984
    %v1304 = vmul.f32 %v1302, %v985
    %v1307 = vrot.slane %v1303, 4
    %v1308 = vrot.slane %v1304, 4
    %v1311 = vadd.f32 %v1299, %v1307
    %v1312 = vadd.f32 %v1300, %v1308
    %1313 = vrot.lane.b32.xlu0 %v1311, 111
    %v1314 = vpop.permute.xlu0 %1313
    %1315 = vrot.lane.b32.xlu0 %v1312, 111
    %v1316 = vpop.permute.xlu0 %1315
    %v1317 = vsel %vm465, %v1314, %v1316
    %v1318 = vsel %vm465, %v1316, %v1314
    %v1319 = vmul.f32 %v1317, %v78
    %v1320 = vmul.f32 %v1318, %v79
    %v1321 = vadd.f32 %v1283, %v1319
    %v1322 = vadd.f32 %v1284, %v1320
    %v1323 = vmax.f32 %v1321, 0.0
    %v1324 = vmax.f32 %v1322, 0.0
    %1325 = vst [vmem:[#allocation2] sm:$0x3] %v1323
    %1326 = vst [vmem:[#allocation2 + $0x8] sm:$0x3] %v1324
    %v1329 = vrot.slane %v1323, 6
    %v1330 = vrot.slane %v1324, 6
    %1333 = vst [vmem:[#allocation2] sm:$0xc] %v1329
    %1334 = vst [vmem:[#allocation2 + $0x8] sm:$0xc] %v1330
    %v1335 = vrot.slane %v1323, 4
    %v1336 = vrot.slane %v1324, 4
    %1339 = vst [vmem:[#allocation2] sm:$0x30] %v1335
    %1340 = vst [vmem:[#allocation2 + $0x8] sm:$0x30] %v1336
    %v1341 = vld [vmem:[#allocation2] sm:$0x3f]
    %v1342 = vld [vmem:[#allocation2 + $0x8] sm:$0x3f]
    %v1343 = vld [vmem:[%s2] sm:$0x3f]
    %1345 = vset.pattern.permute.xlu0 36
    %1346 = vperm.xlu0 %1345, %v1343
    %v1347 = vpop.permute.xlu0 %1346
    %v1349 = vmul.f32 %v1347, %v115
    %v1350 = vmul.f32 %v1347, %v116
    %1351 = vset.pattern.permute.xlu0 45
    %1352 = vperm.xlu0 %1351, %v1343
    %v1353 = vpop.permute.xlu0 %1352
    %v1355 = vmul.f32 %v1353, %v147
    %v1356 = vmul.f32 %v1353, %v148
    %v1357 = vadd.f32 %v1349, %v1355
    %v1358 = vadd.f32 %v1350, %v1356
    %1359 = vset.pattern.permute.xlu0 54
    %1360 = vperm.xlu0 %1359, %v1343
    %v1361 = vpop.permute.xlu0 %1360
    %v1363 = vmul.f32 %v1361, %v179
    %v1364 = vmul.f32 %v1361, %v180
    %v1365 = vadd.f32 %v1357, %v1363
    %v1366 = vadd.f32 %v1358, %v1364
    %1367 = vset.pattern.permute.xlu0 63
    %1368 = vperm.xlu0 %1367, %v1343
    %v1369 = vpop.permute.xlu0 %1368
    %v1371 = vmul.f32 %v1369, %v490
    %v1372 = vmul.f32 %v1369, %v491
    %v1373 = vadd.f32 %v1365, %v1371
    %v1374 = vadd.f32 %v1366, %v1372
    %1375 = vset.pattern.permute.xlu0 72
    %1376 = vperm.xlu0 %1375, %v1343
    %v1377 = vpop.permute.xlu0 %1376
    %v1379 = vmul.f32 %v1377, %v1341
    %v1380 = vmul.f32 %v1377, %v1342
    %v1381 = vadd.f32 %v1373, %v1379
    %v1382 = vadd.f32 %v1374, %v1380
    %1383 = vrot.lane.b32.xlu0 %v1381, 17
    %v1384 = vpop.permute.xlu0 %1383
    %1385 = vrot.lane.b32.xlu0 %v1382, 17
    %v1386 = vpop.permute.xlu0 %1385
    %v1387 = vsel %vm210, %v1384, %v1386
    %v1388 = vsel %vm210, %v1386, %v1384
    %v1389 = vmul.f32 %v1388, %v40
    %v1390 = vmul.f32 %v1387, %v41
    %v1391 = vadd.f32 %v1389, 0.0
    %v1392 = vadd.f32 %v1390, 0.0
    %1393 = vset.pattern.permute.xlu0 37
    %1394 = vperm.xlu0 %1393, %v1343
    %v1395 = vpop.permute.xlu0 %1394
    %v1397 = vmul.f32 %v1395, %v115
    %v1398 = vmul.f32 %v1395, %v116
    %1399 = vset.pattern.permute.xlu0 46
    %1400 = vperm.xlu0 %1399, %v1343
    %v1401 = vpop.permute.xlu0 %1400
    %v1403 = vmul.f32 %v1401, %v147
    %v1404 = vmul.f32 %v1401, %v148
    %v1405 = vadd.f32 %v1397, %v1403
    %v1406 = vadd.f32 %v1398, %v1404
    %1407 = vset.pattern.permute.xlu0 55
    %1408 = vperm.xlu0 %1407, %v1343
    %v1409 = vpop.permute.xlu0 %1408
    %v1411 = vmul.f32 %v1409, %v179
    %v1412 = vmul.f32 %v1409, %v180
    %v1413 = vadd.f32 %v1405, %v1411
    %v1414 = vadd.f32 %v1406, %v1412
    %1415 = vset.pattern.permute.xlu0 64
    %1416 = vperm.xlu0 %1415, %v1343
    %v1417 = vpop.permute.xlu0 %1416
    %v1419 = vmul.f32 %v1417, %v490
    %v1420 = vmul.f32 %v1417, %v491
    %v1421 = vadd.f32 %v1413, %v1419
    %v1422 = vadd.f32 %v1414, %v1420
    %1423 = vset.pattern.permute.xlu0 73
    %1424 = vperm.xlu0 %1423, %v1343
    %v1425 = vpop.permute.xlu0 %1424
    %v1427 = vmul.f32 %v1425, %v1341
    %v1428 = vmul.f32 %v1425, %v1342
    %v1429 = vadd.f32 %v1421, %v1427
    %v1430 = vadd.f32 %v1422, %v1428
    %1431 = vrot.lane.b32.xlu0 %v1429, 16
    %v1432 = vpop.permute.xlu0 %1431
    %1433 = vrot.lane.b32.xlu0 %v1430, 16
    %v1434 = vpop.permute.xlu0 %1433
    %v1435 = vsel %vm243, %v1432, %v1434
    %v1436 = vsel %vm243, %v1434, %v1432
    %v1437 = vmul.f32 %v1436, %v44
    %v1438 = vmul.f32 %v1435, %v45
    %v1439 = vadd.f32 %v1391, %v1437
    %v1440 = vadd.f32 %v1392, %v1438
    %1441 = vset.pattern.permute.xlu0 38
    %1442 = vperm.xlu0 %1441, %v1343
    %v1443 = vpop.permute.xlu0 %1442
    %v1445 = vmul.f32 %v1443, %v115
    %v1446 = vmul.f32 %v1443, %v116
    %1447 = vset.pattern.permute.xlu0 47
    %1448 = vperm.xlu0 %1447, %v1343
    %v1449 = vpop.permute.xlu0 %1448
    %v1451 = vmul.f32 %v1449, %v147
    %v1452 = vmul.f32 %v1449, %v148
    %v1453 = vadd.f32 %v1445, %v1451
    %v1454 = vadd.f32 %v1446, %v1452
    %1455 = vset.pattern.permute.xlu0 56
    %1456 = vperm.xlu0 %1455, %v1343
    %v1457 = vpop.permute.xlu0 %1456
    %v1459 = vmul.f32 %v1457, %v179
    %v1460 = vmul.f32 %v1457, %v180
    %v1461 = vadd.f32 %v1453, %v1459
    %v1462 = vadd.f32 %v1454, %v1460
    %1463 = vset.pattern.permute.xlu0 65
    %1464 = vperm.xlu0 %1463, %v1343
    %v1465 = vpop.permute.xlu0 %1464
    %v1467 = vmul.f32 %v1465, %v490
    %v1468 = vmul.f32 %v1465, %v491
    %v1469 = vadd.f32 %v1461, %v1467
    %v1470 = vadd.f32 %v1462, %v1468
    %1471 = vset.pattern.permute.xlu0 74
    %1472 = vperm.xlu0 %1471, %v1343
    %v1473 = vpop.permute.xlu0 %1472
    %v1475 = vmul.f32 %v1473, %v1341
    %v1476 = vmul.f32 %v1473, %v1342
    %v1477 = vadd.f32 %v1469, %v1475
    %v1478 = vadd.f32 %v1470, %v1476
    %1479 = vrot.lane.b32.xlu0 %v1477, 15
    %v1480 = vpop.permute.xlu0 %1479
    %1481 = vrot.lane.b32.xlu0 %v1478, 15
    %v1482 = vpop.permute.xlu0 %1481
    %v1483 = vsel %vm276, %v1480, %v1482
    %v1484 = vsel %vm276, %v1482, %v1480
    %v1485 = vmul.f32 %v1484, %v52
    %v1486 = vmul.f32 %v1483, %v53
    %v1487 = vadd.f32 %v1439, %v1485
    %v1488 = vadd.f32 %v1440, %v1486
    %1489 = vset.pattern.permute.xlu0 39
    %1490 = vperm.xlu0 %1489, %v1343
    %v1491 = vpop.permute.xlu0 %1490
    %v1493 = vmul.f32 %v1491, %v115
    %v1494 = vmul.f32 %v1491, %v116
    %1495 = vset.pattern.permute.xlu0 48
    %1496 = vperm.xlu0 %1495, %v1343
    %v1497 = vpop.permute.xlu0 %1496
    %v1499 = vmul.f32 %v1497, %v147
    %v1500 = vmul.f32 %v1497, %v148
    %v1501 = vadd.f32 %v1493, %v1499
    %v1502 = vadd.f32 %v1494, %v1500
    %1503 = vset.pattern.permute.xlu0 57
    %1504 = vperm.xlu0 %1503, %v1343
    %v1505 = vpop.permute.xlu0 %1504
    %v1507 = vmul.f32 %v1505, %v179
    %v1508 = vmul.f32 %v1505, %v180
    %v1509 = vadd.f32 %v1501, %v1507
    %v1510 = vadd.f32 %v1502, %v1508
    %1511 = vset.pattern.permute.xlu0 66
    %1512 = vperm.xlu0 %1511, %v1343
    %v1513 = vpop.permute.xlu0 %1512
    %v1515 = vmul.f32 %v1513, %v490
    %v1516 = vmul.f32 %v1513, %v491
    %v1517 = vadd.f32 %v1509, %v1515
    %v1518 = vadd.f32 %v1510, %v1516
    %1519 = vset.pattern.permute.xlu0 75
    %1520 = vperm.xlu0 %1519, %v1343
    %v1521 = vpop.permute.xlu0 %1520
    %v1523 = vmul.f32 %v1521, %v1341
    %v1524 = vmul.f32 %v1521, %v1342
    %v1525 = vadd.f32 %v1517, %v1523
    %v1526 = vadd.f32 %v1518, %v1524
    %1527 = vrot.lane.b32.xlu0 %v1525, 1
    %v1528 = vpop.permute.xlu0 %1527
    %1529 = vrot.lane.b32.xlu0 %v1526, 1
    %v1530 = vpop.permute.xlu0 %1529
    %v1531 = vsel %vm309, %v1528, %v1530
    %v1532 = vsel %vm309, %v1530, %v1528
    %v1533 = vmul.f32 %v1532, %v56
    %v1534 = vmul.f32 %v1531, %v57
    %v1535 = vadd.f32 %v1487, %v1533
    %v1536 = vadd.f32 %v1488, %v1534
    %1537 = vset.pattern.permute.xlu0 40
    %1538 = vperm.xlu0 %1537, %v1343
    %v1539 = vpop.permute.xlu0 %1538
    %v1541 = vmul.f32 %v1539, %v115
    %v1542 = vmul.f32 %v1539, %v116
    %1543 = vset.pattern.permute.xlu0 49
    %1544 = vperm.xlu0 %1543, %v1343
    %v1545 = vpop.permute.xlu0 %1544
    %v1547 = vmul.f32 %v1545, %v147
    %v1548 = vmul.f32 %v1545, %v148
    %v1549 = vadd.f32 %v1541, %v1547
    %v1550 = vadd.f32 %v1542, %v1548
    %1551 = vset.pattern.permute.xlu0 58
    %1552 = vperm.xlu0 %1551, %v1343
    %v1553 = vpop.permute.xlu0 %1552
    %v1555 = vmul.f32 %v1553, %v179
    %v1556 = vmul.f32 %v1553, %v180
    %v1557 = vadd.f32 %v1549, %v1555
    %v1558 = vadd.f32 %v1550, %v1556
    %1559 = vset.pattern.permute.xlu0 67
    %1560 = vperm.xlu0 %1559, %v1343
    %v1561 = vpop.permute.xlu0 %1560
    %v1563 = vmul.f32 %v1561, %v490
    %v1564 = vmul.f32 %v1561, %v491
    %v1565 = vadd.f32 %v1557, %v1563
    %v1566 = vadd.f32 %v1558, %v1564
    %1567 = vset.pattern.permute.xlu0 76
    %1568 = vperm.xlu0 %1567, %v1343
    %v1569 = vpop.permute.xlu0 %1568
    %v1571 = vmul.f32 %v1569, %v1341
    %v1572 = vmul.f32 %v1569, %v1342
    %v1573 = vadd.f32 %v1565, %v1571
    %v1574 = vadd.f32 %v1566, %v1572
    %v1575 = vadd.f32 %v1535, %v1573
    %v1576 = vadd.f32 %v1536, %v1574
    %1577 = vset.pattern.permute.xlu0 41
    %1578 = vperm.xlu0 %1577, %v1343
    %v1579 = vpop.permute.xlu0 %1578
    %v1581 = vmul.f32 %v1579, %v115
    %v1582 = vmul.f32 %v1579, %v116
    %1583 = vset.pattern.permute.xlu0 50
    %1584 = vperm.xlu0 %1583, %v1343
    %v1585 = vpop.permute.xlu0 %1584
    %v1587 = vmul.f32 %v1585, %v147
    %v1588 = vmul.f32 %v1585, %v148
    %v1589 = vadd.f32 %v1581, %v1587
    %v1590 = vadd.f32 %v1582, %v1588
    %1591 = vset.pattern.permute.xlu0 59
    %1592 = vperm.xlu0 %1591, %v1343
    %v1593 = vpop.permute.xlu0 %1592
    %v1595 = vmul.f32 %v1593, %v179
    %v1596 = vmul.f32 %v1593, %v180
    %v1597 = vadd.f32 %v1589, %v1595
    %v1598 = vadd.f32 %v1590, %v1596
    %1599 = vset.pattern.permute.xlu0 68
    %1600 = vperm.xlu0 %1599, %v1343
    %v1601 = vpop.permute.xlu0 %1600
    %v1603 = vmul.f32 %v1601, %v490
    %v1604 = vmul.f32 %v1601, %v491
    %v1605 = vadd.f32 %v1597, %v1603
    %v1606 = vadd.f32 %v1598, %v1604
    %1607 = vset.pattern.permute.xlu0 77
    %1608 = vperm.xlu0 %1607, %v1343
    %v1609 = vpop.permute.xlu0 %1608
    %v1611 = vmul.f32 %v1609, %v1341
    %v1612 = vmul.f32 %v1609, %v1342
    %v1613 = vadd.f32 %v1605, %v1611
    %v1614 = vadd.f32 %v1606, %v1612
    %1615 = vrot.lane.b32.xlu0 %v1613, 127
    %v1616 = vpop.permute.xlu0 %1615
    %1617 = vrot.lane.b32.xlu0 %v1614, 127
    %v1618 = vpop.permute.xlu0 %1617
    %v1619 = vsel %vm366, %v1616, %v1618
    %v1620 = vsel %vm366, %v1618, %v1616
    %v1621 = vmul.f32 %v1619, %v60
    %v1622 = vmul.f32 %v1620, %v61
    %v1623 = vadd.f32 %v1575, %v1621
    %v1624 = vadd.f32 %v1576, %v1622
    %1625 = vset.pattern.permute.xlu0 42
    %1626 = vperm.xlu0 %1625, %v1343
    %v1627 = vpop.permute.xlu0 %1626
    %v1629 = vmul.f32 %v1627, %v115
    %v1630 = vmul.f32 %v1627, %v116
    %1631 = vset.pattern.permute.xlu0 51
    %1632 = vperm.xlu0 %1631, %v1343
    %v1633 = vpop.permute.xlu0 %1632
    %v1635 = vmul.f32 %v1633, %v147
    %v1636 = vmul.f32 %v1633, %v148
    %v1637 = vadd.f32 %v1629, %v1635
    %v1638 = vadd.f32 %v1630, %v1636
    %1639 = vset.pattern.permute.xlu0 60
    %1640 = vperm.xlu0 %1639, %v1343
    %v1641 = vpop.permute.xlu0 %1640
    %v1643 = vmul.f32 %v1641, %v179
    %v1644 = vmul.f32 %v1641, %v180
    %v1645 = vadd.f32 %v1637, %v1643
    %v1646 = vadd.f32 %v1638, %v1644
    %1647 = vset.pattern.permute.xlu0 69
    %1648 = vperm.xlu0 %1647, %v1343
    %v1649 = vpop.permute.xlu0 %1648
    %v1651 = vmul.f32 %v1649, %v490
    %v1652 = vmul.f32 %v1649, %v491
    %v1653 = vadd.f32 %v1645, %v1651
    %v1654 = vadd.f32 %v1646, %v1652
    %1655 = vset.pattern.permute.xlu0 78
    %1656 = vperm.xlu0 %1655, %v1343
    %v1657 = vpop.permute.xlu0 %1656
    %v1659 = vmul.f32 %v1657, %v1341
    %v1660 = vmul.f32 %v1657, %v1342
    %v1661 = vadd.f32 %v1653, %v1659
    %v1662 = vadd.f32 %v1654, %v1660
    %1663 = vrot.lane.b32.xlu0 %v1661, 113
    %v1664 = vpop.permute.xlu0 %1663
    %1665 = vrot.lane.b32.xlu0 %v1662, 113
    %v1666 = vpop.permute.xlu0 %1665
    %v1667 = vsel %vm399, %v1664, %v1666
    %v1668 = vsel %vm399, %v1666, %v1664
    %v1669 = vmul.f32 %v1667, %v68
    %v1670 = vmul.f32 %v1668, %v69
    %v1671 = vadd.f32 %v1623, %v1669
    %v1672 = vadd.f32 %v1624, %v1670
    %1673 = vset.pattern.permute.xlu0 43
    %1674 = vperm.xlu0 %1673, %v1343
    %v1675 = vpop.permute.xlu0 %1674
    %v1677 = vmul.f32 %v1675, %v115
    %v1678 = vmul.f32 %v1675, %v116
    %1679 = vset.pattern.permute.xlu0 52
    %1680 = vperm.xlu0 %1679, %v1343
    %v1681 = vpop.permute.xlu0 %1680
    %v1683 = vmul.f32 %v1681, %v147
    %v1684 = vmul.f32 %v1681, %v148
    %v1685 = vadd.f32 %v1677, %v1683
    %v1686 = vadd.f32 %v1678, %v1684
    %1687 = vset.pattern.permute.xlu0 61
    %1688 = vperm.xlu0 %1687, %v1343
    %v1689 = vpop.permute.xlu0 %1688
    %v1691 = vmul.f32 %v1689, %v179
    %v1692 = vmul.f32 %v1689, %v180
    %v1693 = vadd.f32 %v1685, %v1691
    %v1694 = vadd.f32 %v1686, %v1692
    %1695 = vset.pattern.permute.xlu0 70
    %1696 = vperm.xlu0 %1695, %v1343
    %v1697 = vpop.permute.xlu0 %1696
    %v1699 = vmul.f32 %v1697, %v490
    %v1700 = vmul.f32 %v1697, %v491
    %v1701 = vadd.f32 %v1693, %v1699
    %v1702 = vadd.f32 %v1694, %v1700
    %1703 = vset.pattern.permute.xlu0 79
    %1704 = vperm.xlu0 %1703, %v1343
    %v1705 = vpop.permute.xlu0 %1704
    %v1707 = vmul.f32 %v1705, %v1341
    %v1708 = vmul.f32 %v1705, %v1342
    %v1709 = vadd.f32 %v1701, %v1707
    %v1710 = vadd.f32 %v1702, %v1708
    %1711 = vrot.lane.b32.xlu0 %v1709, 112
    %v1712 = vpop.permute.xlu0 %1711
    %1713 = vrot.lane.b32.xlu0 %v1710, 112
    %v1714 = vpop.permute.xlu0 %1713
    %v1715 = vsel %vm432, %v1712, %v1714
    %v1716 = vsel %vm432, %v1714, %v1712
    %v1717 = vmul.f32 %v1715, %v72
    %v1718 = vmul.f32 %v1716, %v73
    %v1719 = vadd.f32 %v1671, %v1717
    %v1720 = vadd.f32 %v1672, %v1718
    %1721 = vset.pattern.permute.xlu0 44
    %1722 = vperm.xlu0 %1721, %v1343
    %v1723 = vpop.permute.xlu0 %1722
    %v1725 = vmul.f32 %v1723, %v115
    %v1726 = vmul.f32 %v1723, %v116
    %1727 = vset.pattern.permute.xlu0 53
    %1728 = vperm.xlu0 %1727, %v1343
    %v1729 = vpop.permute.xlu0 %1728
    %v1731 = vmul.f32 %v1729, %v147
    %v1732 = vmul.f32 %v1729, %v148
    %v1733 = vadd.f32 %v1725, %v1731
    %v1734 = vadd.f32 %v1726, %v1732
    %1735 = vset.pattern.permute.xlu0 62
    %1736 = vperm.xlu0 %1735, %v1343
    %v1737 = vpop.permute.xlu0 %1736
    %v1739 = vmul.f32 %v1737, %v179
    %v1740 = vmul.f32 %v1737, %v180
    %v1741 = vadd.f32 %v1733, %v1739
    %v1742 = vadd.f32 %v1734, %v1740
    %1743 = vset.pattern.permute.xlu0 71
    %1744 = vperm.xlu0 %1743, %v1343
    %v1745 = vpop.permute.xlu0 %1744
    %v1747 = vmul.f32 %v1745, %v490
    %v1748 = vmul.f32 %v1745, %v491
    %v1749 = vadd.f32 %v1741, %v1747
    %v1750 = vadd.f32 %v1742, %v1748
    %1751 = vset.pattern.permute.xlu0 80
    %1752 = vperm.xlu0 %1751, %v1343
    %v1753 = vpop.permute.xlu0 %1752
    %v1755 = vmul.f32 %v1753, %v1341
    %v1756 = vmul.f32 %v1753, %v1342
    %v1757 = vadd.f32 %v1749, %v1755
    %v1758 = vadd.f32 %v1750, %v1756
    %1759 = vrot.lane.b32.xlu0 %v1757, 111
    %v1760 = vpop.permute.xlu0 %1759
    %1761 = vrot.lane.b32.xlu0 %v1758, 111
    %v1762 = vpop.permute.xlu0 %1761
    %v1763 = vsel %vm465, %v1760, %v1762
    %v1764 = vsel %vm465, %v1762, %v1760
    %v1765 = vmul.f32 %v1763, %v78
    %v1766 = vmul.f32 %v1764, %v79
    %v1767 = vadd.f32 %v1719, %v1765
    %v1768 = vadd.f32 %v1720, %v1766
    %v1769 = vsel %vm846, %v1767, 0.0
    %v1770 = vsel %vm846, %v1768, 0.0
    %v1771 = vadd.f32 %v1769, %v1770
    %1772 = vadd.xlane.f32.xlu0 %v1771
    %v1773 = vpop.xlane.xlu0 %1772
    %v1774 = vsel %vm846, %v1773, 0.0
    %v1775 = vrot.slane %v1774, 4
    %v1776 = vadd.f32 %v1774, %v1775
    %v1777 = vrot.slane %v1776, 2
    %v1778 = vadd.f32 %v1776, %v1777
    %v1779 = vrot.slane %v1778, 1
    %v1780 = vadd.f32 %v1778, %v1779
    %v1781 = vmul.f32 %v1767, %v1767
    %v1782 = vmul.f32 %v1768, %v1768
    %v1783 = vsel %vm846, %v1781, 0.0
    %v1784 = vsel %vm846, %v1782, 0.0
    %v1785 = vadd.f32 %v1783, %v1784
    %1786 = vadd.xlane.f32.xlu0 %v1785
    %v1787 = vpop.xlane.xlu0 %1786
    %v1788 = vsel %vm846, %v1787, 0.0
    %v1789 = vrot.slane %v1788, 4
    %v1790 = vadd.f32 %v1788, %v1789
    %v1791 = vrot.slane %v1790, 2
    %v1792 = vadd.f32 %v1790, %v1791
    %v1793 = vrot.slane %v1792, 1
    %v1794 = vadd.f32 %v1792, %v1793
    %v1795 = vmul.f32 %v1780, 0.001953125
    %v1796 = vmul.f32 %v1794, 0.001953125
    %v1797 = vmul.f32 %v1795, %v1795
    %v1798 = vsub.f32 %v1796, %v1797
    %s1799 = sld [smem:[#allocation3 + $0x76]]
    %v1800 = vadd.f32 %v1798, 1e-05
    %v1801 = vrsqrt.pop %v1800
    %v1802 = vstv %s1799
    %v1803 = vmul.f32 %v1802, %v1801
    %s1804 = sld [smem:[#allocation3 + $0x79]]
    %v1805 = vmul.f32 %v1795, %v1803
    %v1806 = vstv %s1804
    %v1807 = vsub.f32 %v1806, %v1805
    %v1808 = vmul.f32 %v1767, %v1803
    %v1809 = vmul.f32 %v1768, %v1803
    %v1810 = vadd.f32 %v1808, %v1807
    %v1811 = vadd.f32 %v1809, %v1807
    %v1812 = vsel %vm890, %v1767, 0.0
    %v1813 = vsel %vm890, %v1768, 0.0
    %v1814 = vadd.f32 %v1812, %v1813
    %1815 = vadd.xlane.f32.xlu0 %v1814
    %v1816 = vpop.xlane.xlu0 %1815
    %v1818 = vrot.slane %v1816, 2
    %v1820 = vsel %vm846, %v1818, 0.0
    %v1821 = vrot.slane %v1820, 4
    %v1822 = vadd.f32 %v1820, %v1821
    %v1823 = vrot.slane %v1822, 2
    %v1824 = vadd.f32 %v1822, %v1823
    %v1825 = vrot.slane %v1824, 1
    %v1826 = vadd.f32 %v1824, %v1825
    %v1827 = vsel %vm890, %v1781, 0.0
    %v1828 = vsel %vm890, %v1782, 0.0
    %v1829 = vadd.f32 %v1827, %v1828
    %1830 = vadd.xlane.f32.xlu0 %v1829
    %v1831 = vpop.xlane.xlu0 %1830
    %v1833 = vrot.slane %v1831, 2
    %v1835 = vsel %vm846, %v1833, 0.0
    %v1836 = vrot.slane %v1835, 4
    %v1837 = vadd.f32 %v1835, %v1836
    %v1838 = vrot.slane %v1837, 2
    %v1839 = vadd.f32 %v1837, %v1838
    %v1840 = vrot.slane %v1839, 1
    %v1841 = vadd.f32 %v1839, %v1840
    %v1842 = vmul.f32 %v1826, 0.001953125
    %v1843 = vmul.f32 %v1841, 0.001953125
    %v1844 = vmul.f32 %v1842, %v1842
    %v1845 = vsub.f32 %v1843, %v1844
    %s1846 = sld [smem:[#allocation3 + $0x77]]
    %v1847 = vadd.f32 %v1845, 1e-05
    %v1848 = vrsqrt.pop %v1847
    %v1849 = vstv %s1846
    %v1850 = vmul.f32 %v1849, %v1848
    %s1851 = sld [smem:[#allocation3 + $0x7a]]
    %v1852 = vmul.f32 %v1842, %v1850
    %v1853 = vstv %s1851
    %v1854 = vsub.f32 %v1853, %v1852
    %v1855 = vmul.f32 %v1767, %v1850
    %v1856 = vmul.f32 %v1768, %v1850
    %v1857 = vadd.f32 %v1855, %v1854
    %v1858 = vadd.f32 %v1856, %v1854
    %v1859 = vsel %vm938, %v1767, 0.0
    %v1860 = vsel %vm938, %v1768, 0.0
    %v1861 = vadd.f32 %v1859, %v1860
    %1862 = vadd.xlane.f32.xlu0 %v1861
    %v1863 = vpop.xlane.xlu0 %1862
    %v1865 = vrot.slane %v1863, 4
    %v1867 = vsel %vm846, %v1865, 0.0
    %v1868 = vrot.slane %v1867, 4
    %v1869 = vadd.f32 %v1867, %v1868
    %v1870 = vrot.slane %v1869, 2
    %v1871 = vadd.f32 %v1869, %v1870
    %v1872 = vrot.slane %v1871, 1
    %v1873 = vadd.f32 %v1871, %v1872
    %v1874 = vsel %vm938, %v1781, 0.0
    %v1875 = vsel %vm938, %v1782, 0.0
    %v1876 = vadd.f32 %v1874, %v1875
    %1877 = vadd.xlane.f32.xlu0 %v1876
    %v1878 = vpop.xlane.xlu0 %1877
    %v1880 = vrot.slane %v1878, 4
    %v1882 = vsel %vm846, %v1880, 0.0
    %v1883 = vrot.slane %v1882, 4
    %v1884 = vadd.f32 %v1882, %v1883
    %v1885 = vrot.slane %v1884, 2
    %v1886 = vadd.f32 %v1884, %v1885
    %v1887 = vrot.slane %v1886, 1
    %v1888 = vadd.f32 %v1886, %v1887
    %v1889 = vmul.f32 %v1873, 0.001953125
    %v1890 = vmul.f32 %v1888, 0.001953125
    %v1891 = vmul.f32 %v1889, %v1889
    %v1892 = vsub.f32 %v1890, %v1891
    %s1893 = sld [smem:[#allocation3 + $0x78]]
    %v1894 = vadd.f32 %v1892, 1e-05
    %v1895 = vrsqrt.pop %v1894
    %v1896 = vstv %s1893
    %v1897 = vmul.f32 %v1896, %v1895
    %s1898 = sld [smem:[#allocation3 + $0x7b]]
    %v1899 = vmul.f32 %v1889, %v1897
    %v1900 = vstv %s1898
    %v1901 = vsub.f32 %v1900, %v1899
    %v1902 = vmul.f32 %v1767, %v1897
    %v1903 = vmul.f32 %v1768, %v1897
    %v1904 = vadd.f32 %v1902, %v1901
    %v1905 = vadd.f32 %v1903, %v1901
    %s1906 = sld [smem:[#allocation3 + $0x53]]
    %v1907 = vstv %s1906
    %v1908 = vadd.f32 %v1907, 0.0
    %s1909 = sld [smem:[#allocation3 + $0x38]]
    %v1910 = vstv %s1909
    %v1911 = vmul.f32 %v1910, %v1810
    %v1912 = vmul.f32 %v1910, %v1811
    %s1913 = sld [smem:[#allocation3 + $0x41]]
    %v1914 = vstv %s1913
    %v1915 = vmul.f32 %v1914, %v1857
    %v1916 = vmul.f32 %v1914, %v1858
    %v1919 = vrot.slane %v1915, 2
    %v1920 = vrot.slane %v1916, 2
    %v1923 = vadd.f32 %v1911, %v1919
    %v1924 = vadd.f32 %v1912, %v1920
    %s1925 = sld [smem:[#allocation3 + $0x4a]]
    %v1926 = vstv %s1925
    %v1927 = vmul.f32 %v1926, %v1904
    %v1928 = vmul.f32 %v1926, %v1905
    %v1931 = vrot.slane %v1927, 4
    %v1932 = vrot.slane %v1928, 4
    %v1935 = vadd.f32 %v1923, %v1931
    %v1936 = vadd.f32 %v1924, %v1932
    %1937 = vrot.lane.b32.xlu0 %v1935, 17
    %v1938 = vpop.permute.xlu0 %1937
    %1939 = vrot.lane.b32.xlu0 %v1936, 17
    %v1940 = vpop.permute.xlu0 %1939
    %v1941 = vsel %vm210, %v1938, %v1940
    %v1942 = vsel %vm210, %v1940, %v1938
    %v1943 = vmul.f32 %v1942, %v40
    %v1944 = vmul.f32 %v1941, %v41
    %v1945 = vadd.f32 %v1908, %v1943
    %v1946 = vadd.f32 %v1908, %v1944
    %s1947 = sld [smem:[#allocation3 + $0x39]]
    %v1948 = vstv %s1947
    %v1949 = vmul.f32 %v1948, %v1810
    %v1950 = vmul.f32 %v1948, %v1811
    %s1951 = sld [smem:[#allocation3 + $0x42]]
    %v1952 = vstv %s1951
    %v1953 = vmul.f32 %v1952, %v1857
    %v1954 = vmul.f32 %v1952, %v1858
    %v1957 = vrot.slane %v1953, 2
    %v1958 = vrot.slane %v1954, 2
    %v1961 = vadd.f32 %v1949, %v1957
    %v1962 = vadd.f32 %v1950, %v1958
    %s1963 = sld [smem:[#allocation3 + $0x4b]]
    %v1964 = vstv %s1963
    %v1965 = vmul.f32 %v1964, %v1904
    %v1966 = vmul.f32 %v1964, %v1905
    %v1969 = vrot.slane %v1965, 4
    %v1970 = vrot.slane %v1966, 4
    %v1973 = vadd.f32 %v1961, %v1969
    %v1974 = vadd.f32 %v1962, %v1970
    %1975 = vrot.lane.b32.xlu0 %v1973, 16
    %v1976 = vpop.permute.xlu0 %1975
    %1977 = vrot.lane.b32.xlu0 %v1974, 16
    %v1978 = vpop.permute.xlu0 %1977
    %v1979 = vsel %vm243, %v1976, %v1978
    %v1980 = vsel %vm243, %v1978, %v1976
    %v1981 = vmul.f32 %v1980, %v44
    %v1982 = vmul.f32 %v1979, %v45
    %v1983 = vadd.f32 %v1945, %v1981
    %v1984 = vadd.f32 %v1946, %v1982
    %s1985 = sld [smem:[#allocation3 + $0x3a]]
    %v1986 = vstv %s1985
    %v1987 = vmul.f32 %v1986, %v1810
    %v1988 = vmul.f32 %v1986, %v1811
    %s1989 = sld [smem:[#allocation3 + $0x43]]
    %v1990 = vstv %s1989
    %v1991 = vmul.f32 %v1990, %v1857
    %v1992 = vmul.f32 %v1990, %v1858
    %v1995 = vrot.slane %v1991, 2
    %v1996 = vrot.slane %v1992, 2
    %v1999 = vadd.f32 %v1987, %v1995
    %v2000 = vadd.f32 %v1988, %v1996
    %s2001 = sld [smem:[#allocation3 + $0x4c]]
    %v2002 = vstv %s2001
    %v2003 = vmul.f32 %v2002, %v1904
    %v2004 = vmul.f32 %v2002, %v1905
    %v2007 = vrot.slane %v2003, 4
    %v2008 = vrot.slane %v2004, 4
    %v2011 = vadd.f32 %v1999, %v2007
    %v2012 = vadd.f32 %v2000, %v2008
    %2013 = vrot.lane.b32.xlu0 %v2011, 15
    %v2014 = vpop.permute.xlu0 %2013
    %2015 = vrot.lane.b32.xlu0 %v2012, 15
    %v2016 = vpop.permute.xlu0 %2015
    %v2017 = vsel %vm276, %v2014, %v2016
    %v2018 = vsel %vm276, %v2016, %v2014
    %v2019 = vmul.f32 %v2018, %v52
    %v2020 = vmul.f32 %v2017, %v53
    %v2021 = vadd.f32 %v1983, %v2019
    %v2022 = vadd.f32 %v1984, %v2020
    %s2023 = sld [smem:[#allocation3 + $0x3b]]
    %v2024 = vstv %s2023
    %v2025 = vmul.f32 %v2024, %v1810
    %v2026 = vmul.f32 %v2024, %v1811
    %s2027 = sld [smem:[#allocation3 + $0x44]]
    %v2028 = vstv %s2027
    %v2029 = vmul.f32 %v2028, %v1857
    %v2030 = vmul.f32 %v2028, %v1858
    %v2033 = vrot.slane %v2029, 2
    %v2034 = vrot.slane %v2030, 2
    %v2037 = vadd.f32 %v2025, %v2033
    %v2038 = vadd.f32 %v2026, %v2034
    %s2039 = sld [smem:[#allocation3 + $0x4d]]
    %v2040 = vstv %s2039
    %v2041 = vmul.f32 %v2040, %v1904
    %v2042 = vmul.f32 %v2040, %v1905
    %v2045 = vrot.slane %v2041, 4
    %v2046 = vrot.slane %v2042, 4
    %v2049 = vadd.f32 %v2037, %v2045
    %v2050 = vadd.f32 %v2038, %v2046
    %2051 = vrot.lane.b32.xlu0 %v2049, 1
    %v2052 = vpop.permute.xlu0 %2051
    %2053 = vrot.lane.b32.xlu0 %v2050, 1
    %v2054 = vpop.permute.xlu0 %2053
    %v2055 = vsel %vm309, %v2052, %v2054
    %v2056 = vsel %vm309, %v2054, %v2052
    %v2057 = vmul.f32 %v2056, %v56
    %v2058 = vmul.f32 %v2055, %v57
    %v2059 = vadd.f32 %v2021, %v2057
    %v2060 = vadd.f32 %v2022, %v2058
    %s2061 = sld [smem:[#allocation3 + $0x3c]]
    %v2062 = vstv %s2061
    %v2063 = vmul.f32 %v2062, %v1810
    %v2064 = vmul.f32 %v2062, %v1811
    %s2065 = sld [smem:[#allocation3 + $0x45]]
    %v2066 = vstv %s2065
    %v2067 = vmul.f32 %v2066, %v1857
    %v2068 = vmul.f32 %v2066, %v1858
    %v2071 = vrot.slane %v2067, 2
    %v2072 = vrot.slane %v2068, 2
    %v2075 = vadd.f32 %v2063, %v2071
    %v2076 = vadd.f32 %v2064, %v2072
    %s2077 = sld [smem:[#allocation3 + $0x4e]]
    %v2078 = vstv %s2077
    %v2079 = vmul.f32 %v2078, %v1904
    %v2080 = vmul.f32 %v2078, %v1905
    %v2083 = vrot.slane %v2079, 4
    %v2084 = vrot.slane %v2080, 4
    %v2087 = vadd.f32 %v2075, %v2083
    %v2088 = vadd.f32 %v2076, %v2084
    %v2089 = vadd.f32 %v2059, %v2087
    %v2090 = vadd.f32 %v2060, %v2088
    %s2091 = sld [smem:[#allocation3 + $0x3d]]
    %v2092 = vstv %s2091
    %v2093 = vmul.f32 %v2092, %v1810
    %v2094 = vmul.f32 %v2092, %v1811
    %s2095 = sld [smem:[#allocation3 + $0x46]]
    %v2096 = vstv %s2095
    %v2097 = vmul.f32 %v2096, %v1857
    %v2098 = vmul.f32 %v2096, %v1858
    %v2101 = vrot.slane %v2097, 2
    %v2102 = vrot.slane %v2098, 2
    %v2105 = vadd.f32 %v2093, %v2101
    %v2106 = vadd.f32 %v2094, %v2102
    %s2107 = sld [smem:[#allocation3 + $0x4f]]
    %v2108 = vstv %s2107
    %v2109 = vmul.f32 %v2108, %v1904
    %v2110 = vmul.f32 %v2108, %v1905
    %v2113 = vrot.slane %v2109, 4
    %v2114 = vrot.slane %v2110, 4
    %v2117 = vadd.f32 %v2105, %v2113
    %v2118 = vadd.f32 %v2106, %v2114
    %2119 = vrot.lane.b32.xlu0 %v2117, 127
    %v2120 = vpop.permute.xlu0 %2119
    %2121 = vrot.lane.b32.xlu0 %v2118, 127
    %v2122 = vpop.permute.xlu0 %2121
    %v2123 = vsel %vm366, %v2120, %v2122
    %v2124 = vsel %vm366, %v2122, %v2120
    %v2125 = vmul.f32 %v2123, %v60
    %v2126 = vmul.f32 %v2124, %v61
    %v2127 = vadd.f32 %v2089, %v2125
    %v2128 = vadd.f32 %v2090, %v2126
    %s2129 = sld [smem:[#allocation3 + $0x3e]]
    %v2130 = vstv %s2129
    %v2131 = vmul.f32 %v2130, %v1810
    %v2132 = vmul.f32 %v2130, %v1811
    %s2133 = sld [smem:[#allocation3 + $0x47]]
    %v2134 = vstv %s2133
    %v2135 = vmul.f32 %v2134, %v1857
    %v2136 = vmul.f32 %v2134, %v1858
    %v2139 = vrot.slane %v2135, 2
    %v2140 = vrot.slane %v2136, 2
    %v2143 = vadd.f32 %v2131, %v2139
    %v2144 = vadd.f32 %v2132, %v2140
    %s2145 = sld [smem:[#allocation3 + $0x50]]
    %v2146 = vstv %s2145
    %v2147 = vmul.f32 %v2146, %v1904
    %v2148 = vmul.f32 %v2146, %v1905
    %v2151 = vrot.slane %v2147, 4
    %v2152 = vrot.slane %v2148, 4
    %v2155 = vadd.f32 %v2143, %v2151
    %v2156 = vadd.f32 %v2144, %v2152
    %2157 = vrot.lane.b32.xlu0 %v2155, 113
    %v2158 = vpop.permute.xlu0 %2157
    %2159 = vrot.lane.b32.xlu0 %v2156, 113
    %v2160 = vpop.permute.xlu0 %2159
    %v2161 = vsel %vm399, %v2158, %v2160
    %v2162 = vsel %vm399, %v2160, %v2158
    %v2163 = vmul.f32 %v2161, %v68
    %v2164 = vmul.f32 %v2162, %v69
    %v2165 = vadd.f32 %v2127, %v2163
    %v2166 = vadd.f32 %v2128, %v2164
    %s2167 = sld [smem:[#allocation3 + $0x3f]]
    %v2168 = vstv %s2167
    %v2169 = vmul.f32 %v2168, %v1810
    %v2170 = vmul.f32 %v2168, %v1811
    %s2171 = sld [smem:[#allocation3 + $0x48]]
    %v2172 = vstv %s2171
    %v2173 = vmul.f32 %v2172, %v1857
    %v2174 = vmul.f32 %v2172, %v1858
    %v2177 = vrot.slane %v2173, 2
    %v2178 = vrot.slane %v2174, 2
    %v2181 = vadd.f32 %v2169, %v2177
    %v2182 = vadd.f32 %v2170, %v2178
    %s2183 = sld [smem:[#allocation3 + $0x51]]
    %v2184 = vstv %s2183
    %v2185 = vmul.f32 %v2184, %v1904
    %v2186 = vmul.f32 %v2184, %v1905
    %v2189 = vrot.slane %v2185, 4
    %v2190 = vrot.slane %v2186, 4
    %v2193 = vadd.f32 %v2181, %v2189
    %v2194 = vadd.f32 %v2182, %v2190
    %2195 = vrot.lane.b32.xlu0 %v2193, 112
    %v2196 = vpop.permute.xlu0 %2195
    %2197 = vrot.lane.b32.xlu0 %v2194, 112
    %v2198 = vpop.permute.xlu0 %2197
    %v2199 = vsel %vm432, %v2196, %v2198
    %v2200 = vsel %vm432, %v2198, %v2196
    %v2201 = vmul.f32 %v2199, %v72
    %v2202 = vmul.f32 %v2200, %v73
    %v2203 = vadd.f32 %v2165, %v2201
    %v2204 = vadd.f32 %v2166, %v2202
    %s2205 = sld [smem:[#allocation3 + $0x40]]
    %v2206 = vstv %s2205
    %v2207 = vmul.f32 %v2206, %v1810
    %v2208 = vmul.f32 %v2206, %v1811
    %s2209 = sld [smem:[#allocation3 + $0x49]]
    %v2210 = vstv %s2209
    %v2211 = vmul.f32 %v2210, %v1857
    %v2212 = vmul.f32 %v2210, %v1858
    %v2215 = vrot.slane %v2211, 2
    %v2216 = vrot.slane %v2212, 2
    %v2219 = vadd.f32 %v2207, %v2215
    %v2220 = vadd.f32 %v2208, %v2216
    %s2221 = sld [smem:[#allocation3 + $0x52]]
    %v2222 = vstv %s2221
    %v2223 = vmul.f32 %v2222, %v1904
    %v2224 = vmul.f32 %v2222, %v1905
    %v2227 = vrot.slane %v2223, 4
    %v2228 = vrot.slane %v2224, 4
    %v2231 = vadd.f32 %v2219, %v2227
    %v2232 = vadd.f32 %v2220, %v2228
    %2233 = vrot.lane.b32.xlu0 %v2231, 111
    %v2234 = vpop.permute.xlu0 %2233
    %2235 = vrot.lane.b32.xlu0 %v2232, 111
    %v2236 = vpop.permute.xlu0 %2235
    %v2237 = vsel %vm465, %v2234, %v2236
    %v2238 = vsel %vm465, %v2236, %v2234
    %v2239 = vmul.f32 %v2237, %v78
    %v2240 = vmul.f32 %v2238, %v79
    %v2241 = vadd.f32 %v2203, %v2239
    %v2242 = vadd.f32 %v2204, %v2240
    %v2243 = vmax.f32 %v2241, 0.0
    %v2244 = vmax.f32 %v2242, 0.0
    %2245 = vst [vmem:[#allocation2] sm:$0x3] %v2243
    %2246 = vst [vmem:[#allocation2 + $0x8] sm:$0x3] %v2244
    %v2249 = vrot.slane %v2243, 6
    %v2250 = vrot.slane %v2244, 6
    %2253 = vst [vmem:[#allocation2] sm:$0xc] %v2249
    %2254 = vst [vmem:[#allocation2 + $0x8] sm:$0xc] %v2250
    %v2255 = vrot.slane %v2243, 4
    %v2256 = vrot.slane %v2244, 4
    %2259 = vst [vmem:[#allocation2] sm:$0x30] %v2255
    %2260 = vst [vmem:[#allocation2 + $0x8] sm:$0x30] %v2256
    %v2261 = vld [vmem:[#allocation2] sm:$0x3f]
    %v2262 = vld [vmem:[#allocation2 + $0x8] sm:$0x3f]
    %v2263 = vld [vmem:[%s2] sm:$0x3f]
    %2265 = vset.pattern.permute.xlu0 81
    %2266 = vperm.xlu0 %2265, %v2263
    %v2267 = vpop.permute.xlu0 %2266
    %v2269 = vmul.f32 %v2267, %v115
    %v2270 = vmul.f32 %v2267, %v116
    %2271 = vset.pattern.permute.xlu0 90
    %2272 = vperm.xlu0 %2271, %v2263
    %v2273 = vpop.permute.xlu0 %2272
    %v2275 = vmul.f32 %v2273, %v147
    %v2276 = vmul.f32 %v2273, %v148
    %v2277 = vadd.f32 %v2269, %v2275
    %v2278 = vadd.f32 %v2270, %v2276
    %2279 = vset.pattern.permute.xlu0 99
    %2280 = vperm.xlu0 %2279, %v2263
    %v2281 = vpop.permute.xlu0 %2280
    %v2283 = vmul.f32 %v2281, %v179
    %v2284 = vmul.f32 %v2281, %v180
    %v2285 = vadd.f32 %v2277, %v2283
    %v2286 = vadd.f32 %v2278, %v2284
    %2287 = vset.pattern.permute.xlu0 108
    %2288 = vperm.xlu0 %2287, %v2263
    %v2289 = vpop.permute.xlu0 %2288
    %v2291 = vmul.f32 %v2289, %v490
    %v2292 = vmul.f32 %v2289, %v491
    %v2293 = vadd.f32 %v2285, %v2291
    %v2294 = vadd.f32 %v2286, %v2292
    %2295 = vset.pattern.permute.xlu0 117
    %2296 = vperm.xlu0 %2295, %v2263
    %v2297 = vpop.permute.xlu0 %2296
    %v2299 = vmul.f32 %v2297, %v1341
    %v2300 = vmul.f32 %v2297, %v1342
    %v2301 = vadd.f32 %v2293, %v2299
    %v2302 = vadd.f32 %v2294, %v2300
    %2303 = vset.pattern.permute.xlu0 126
    %2304 = vperm.xlu0 %2303, %v2263
    %v2305 = vpop.permute.xlu0 %2304
    %v2307 = vmul.f32 %v2305, %v2261
    %v2308 = vmul.f32 %v2305, %v2262
    %v2309 = vadd.f32 %v2301, %v2307
    %v2310 = vadd.f32 %v2302, %v2308
    %2311 = vrot.lane.b32.xlu0 %v2309, 17
    %v2312 = vpop.permute.xlu0 %2311
    %2313 = vrot.lane.b32.xlu0 %v2310, 17
    %v2314 = vpop.permute.xlu0 %2313
    %v2315 = vsel %vm210, %v2312, %v2314
    %v2316 = vsel %vm210, %v2314, %v2312
    %v2317 = vmul.f32 %v2316, %v40
    %v2318 = vmul.f32 %v2315, %v41
    %v2319 = vadd.f32 %v2317, 0.0
    %v2320 = vadd.f32 %v2318, 0.0
    %2321 = vset.pattern.permute.xlu0 82
    %2322 = vperm.xlu0 %2321, %v2263
    %v2323 = vpop.permute.xlu0 %2322
    %v2325 = vmul.f32 %v2323, %v115
    %v2326 = vmul.f32 %v2323, %v116
    %2327 = vset.pattern.permute.xlu0 91
    %2328 = vperm.xlu0 %2327, %v2263
    %v2329 = vpop.permute.xlu0 %2328
    %v2331 = vmul.f32 %v2329, %v147
    %v2332 = vmul.f32 %v2329, %v148
    %v2333 = vadd.f32 %v2325, %v2331
    %v2334 = vadd.f32 %v2326, %v2332
    %2335 = vset.pattern.permute.xlu0 100
    %2336 = vperm.xlu0 %2335, %v2263
    %v2337 = vpop.permute.xlu0 %2336
    %v2339 = vmul.f32 %v2337, %v179
    %v2340 = vmul.f32 %v2337, %v180
    %v2341 = vadd.f32 %v2333, %v2339
    %v2342 = vadd.f32 %v2334, %v2340
    %2343 = vset.pattern.permute.xlu0 109
    %2344 = vperm.xlu0 %2343, %v2263
    %v2345 = vpop.permute.xlu0 %2344
    %v2347 = vmul.f32 %v2345, %v490
    %v2348 = vmul.f32 %v2345, %v491
    %v2349 = vadd.f32 %v2341, %v2347
    %v2350 = vadd.f32 %v2342, %v2348
    %2351 = vset.pattern.permute.xlu0 118
    %2352 = vperm.xlu0 %2351, %v2263
    %v2353 = vpop.permute.xlu0 %2352
    %v2355 = vmul.f32 %v2353, %v1341
    %v2356 = vmul.f32 %v2353, %v1342
    %v2357 = vadd.f32 %v2349, %v2355
    %v2358 = vadd.f32 %v2350, %v2356
    %2359 = vset.pattern.permute.xlu0 127
    %2360 = vperm.xlu0 %2359, %v2263
    %v2361 = vpop.permute.xlu0 %2360
    %v2363 = vmul.f32 %v2361, %v2261
    %v2364 = vmul.f32 %v2361, %v2262
    %v2365 = vadd.f32 %v2357, %v2363
    %v2366 = vadd.f32 %v2358, %v2364
    %2367 = vrot.lane.b32.xlu0 %v2365, 16
    %v2368 = vpop.permute.xlu0 %2367
    %2369 = vrot.lane.b32.xlu0 %v2366, 16
    %v2370 = vpop.permute.xlu0 %2369
    %v2371 = vsel %vm243, %v2368, %v2370
    %v2372 = vsel %vm243, %v2370, %v2368
    %v2373 = vmul.f32 %v2372, %v44
    %v2374 = vmul.f32 %v2371, %v45
    %v2375 = vadd.f32 %v2319, %v2373
    %v2376 = vadd.f32 %v2320, %v2374
    %2377 = vset.pattern.permute.xlu0 83
    %2378 = vperm.xlu0 %2377, %v2263
    %v2379 = vpop.permute.xlu0 %2378
    %v2381 = vmul.f32 %v2379, %v115
    %v2382 = vmul.f32 %v2379, %v116
    %2383 = vset.pattern.permute.xlu0 92
    %2384 = vperm.xlu0 %2383, %v2263
    %v2385 = vpop.permute.xlu0 %2384
    %v2387 = vmul.f32 %v2385, %v147
    %v2388 = vmul.f32 %v2385, %v148
    %v2389 = vadd.f32 %v2381, %v2387
    %v2390 = vadd.f32 %v2382, %v2388
    %2391 = vset.pattern.permute.xlu0 101
    %2392 = vperm.xlu0 %2391, %v2263
    %v2393 = vpop.permute.xlu0 %2392
    %v2395 = vmul.f32 %v2393, %v179
    %v2396 = vmul.f32 %v2393, %v180
    %v2397 = vadd.f32 %v2389, %v2395
    %v2398 = vadd.f32 %v2390, %v2396
    %2399 = vset.pattern.permute.xlu0 110
    %2400 = vperm.xlu0 %2399, %v2263
    %v2401 = vpop.permute.xlu0 %2400
    %v2403 = vmul.f32 %v2401, %v490
    %v2404 = vmul.f32 %v2401, %v491
    %v2405 = vadd.f32 %v2397, %v2403
    %v2406 = vadd.f32 %v2398, %v2404
    %2407 = vset.pattern.permute.xlu0 119
    %2408 = vperm.xlu0 %2407, %v2263
    %v2409 = vpop.permute.xlu0 %2408
    %v2411 = vmul.f32 %v2409, %v1341
    %v2412 = vmul.f32 %v2409, %v1342
    %v2413 = vadd.f32 %v2405, %v2411
    %v2414 = vadd.f32 %v2406, %v2412
    %v2415 = vld [vmem:[%s2 + $0x8] sm:$0x3f]
    %2417 = vset.pattern.permute.xlu0 0
    %2418 = vperm.xlu0 %2417, %v2415
    %v2419 = vpop.permute.xlu0 %2418
    %v2421 = vmul.f32 %v2419, %v2261
    %v2422 = vmul.f32 %v2419, %v2262
    %v2423 = vadd.f32 %v2413, %v2421
    %v2424 = vadd.f32 %v2414, %v2422
    %2425 = vrot.lane.b32.xlu0 %v2423, 15
    %v2426 = vpop.permute.xlu0 %2425
    %2427 = vrot.lane.b32.xlu0 %v2424, 15
    %v2428 = vpop.permute.xlu0 %2427
    %v2429 = vsel %vm276, %v2426, %v2428
    %v2430 = vsel %vm276, %v2428, %v2426
    %v2431 = vmul.f32 %v2430, %v52
    %v2432 = vmul.f32 %v2429, %v53
    %v2433 = vadd.f32 %v2375, %v2431
    %v2434 = vadd.f32 %v2376, %v2432
    %2435 = vset.pattern.permute.xlu0 84
    %2436 = vperm.xlu0 %2435, %v2263
    %v2437 = vpop.permute.xlu0 %2436
    %v2439 = vmul.f32 %v2437, %v115
    %v2440 = vmul.f32 %v2437, %v116
    %2441 = vset.pattern.permute.xlu0 93
    %2442 = vperm.xlu0 %2441, %v2263
    %v2443 = vpop.permute.xlu0 %2442
    %v2445 = vmul.f32 %v2443, %v147
    %v2446 = vmul.f32 %v2443, %v148
    %v2447 = vadd.f32 %v2439, %v2445
    %v2448 = vadd.f32 %v2440, %v2446
    %2449 = vset.pattern.permute.xlu0 102
    %2450 = vperm.xlu0 %2449, %v2263
    %v2451 = vpop.permute.xlu0 %2450
    %v2453 = vmul.f32 %v2451, %v179
    %v2454 = vmul.f32 %v2451, %v180
    %v2455 = vadd.f32 %v2447, %v2453
    %v2456 = vadd.f32 %v2448, %v2454
    %2457 = vset.pattern.permute.xlu0 111
    %2458 = vperm.xlu0 %2457, %v2263
    %v2459 = vpop.permute.xlu0 %2458
    %v2461 = vmul.f32 %v2459, %v490
    %v2462 = vmul.f32 %v2459, %v491
    %v2463 = vadd.f32 %v2455, %v2461
    %v2464 = vadd.f32 %v2456, %v2462
    %2465 = vset.pattern.permute.xlu0 120
    %2466 = vperm.xlu0 %2465, %v2263
    %v2467 = vpop.permute.xlu0 %2466
    %v2469 = vmul.f32 %v2467, %v1341
    %v2470 = vmul.f32 %v2467, %v1342
    %v2471 = vadd.f32 %v2463, %v2469
    %v2472 = vadd.f32 %v2464, %v2470
    %2473 = vset.pattern.permute.xlu0 1
    %2474 = vperm.xlu0 %2473, %v2415
    %v2475 = vpop.permute.xlu0 %2474
    %v2477 = vmul.f32 %v2475, %v2261
    %v2478 = vmul.f32 %v2475, %v2262
    %v2479 = vadd.f32 %v2471, %v2477
    %v2480 = vadd.f32 %v2472, %v2478
    %2481 = vrot.lane.b32.xlu0 %v2479, 1
    %v2482 = vpop.permute.xlu0 %2481
    %2483 = vrot.lane.b32.xlu0 %v2480, 1
    %v2484 = vpop.permute.xlu0 %2483
    %v2485 = vsel %vm309, %v2482, %v2484
    %v2486 = vsel %vm309, %v2484, %v2482
    %v2487 = vmul.f32 %v2486, %v56
    %v2488 = vmul.f32 %v2485, %v57
    %v2489 = vadd.f32 %v2433, %v2487
    %v2490 = vadd.f32 %v2434, %v2488
    %2491 = vset.pattern.permute.xlu0 85
    %2492 = vperm.xlu0 %2491, %v2263
    %v2493 = vpop.permute.xlu0 %2492
    %v2495 = vmul.f32 %v2493, %v115
    %v2496 = vmul.f32 %v2493, %v116
    %2497 = vset.pattern.permute.xlu0 94
    %2498 = vperm.xlu0 %2497, %v2263
    %v2499 = vpop.permute.xlu0 %2498
    %v2501 = vmul.f32 %v2499, %v147
    %v2502 = vmul.f32 %v2499, %v148
    %v2503 = vadd.f32 %v2495, %v2501
    %v2504 = vadd.f32 %v2496, %v2502
    %2505 = vset.pattern.permute.xlu0 103
    %2506 = vperm.xlu0 %2505, %v2263
    %v2507 = vpop.permute.xlu0 %2506
    %v2509 = vmul.f32 %v2507, %v179
    %v2510 = vmul.f32 %v2507, %v180
    %v2511 = vadd.f32 %v2503, %v2509
    %v2512 = vadd.f32 %v2504, %v2510
    %2513 = vset.pattern.permute.xlu0 112
    %2514 = vperm.xlu0 %2513, %v2263
    %v2515 = vpop.permute.xlu0 %2514
    %v2517 = vmul.f32 %v2515, %v490
    %v2518 = vmul.f32 %v2515, %v491
    %v2519 = vadd.f32 %v2511, %v2517
    %v2520 = vadd.f32 %v2512, %v2518
    %2521 = vset.pattern.permute.xlu0 121
    %2522 = vperm.xlu0 %2521, %v2263
    %v2523 = vpop.permute.xlu0 %2522
    %v2525 = vmul.f32 %v2523, %v1341
    %v2526 = vmul.f32 %v2523, %v1342
    %v2527 = vadd.f32 %v2519, %v2525
    %v2528 = vadd.f32 %v2520, %v2526
    %2529 = vset.pattern.permute.xlu0 2
    %2530 = vperm.xlu0 %2529, %v2415
    %v2531 = vpop.permute.xlu0 %2530
    %v2533 = vmul.f32 %v2531, %v2261
    %v2534 = vmul.f32 %v2531, %v2262
    %v2535 = vadd.f32 %v2527, %v2533
    %v2536 = vadd.f32 %v2528, %v2534
    %v2537 = vadd.f32 %v2489, %v2535
    %v2538 = vadd.f32 %v2490, %v2536
    %2539 = vset.pattern.permute.xlu0 86
    %2540 = vperm.xlu0 %2539, %v2263
    %v2541 = vpop.permute.xlu0 %2540
    %v2543 = vmul.f32 %v2541, %v115
    %v2544 = vmul.f32 %v2541, %v116
    %2545 = vset.pattern.permute.xlu0 95
    %2546 = vperm.xlu0 %2545, %v2263
    %v2547 = vpop.permute.xlu0 %2546
    %v2549 = vmul.f32 %v2547, %v147
    %v2550 = vmul.f32 %v2547, %v148
    %v2551 = vadd.f32 %v2543, %v2549
    %v2552 = vadd.f32 %v2544, %v2550
    %2553 = vset.pattern.permute.xlu0 104
    %2554 = vperm.xlu0 %2553, %v2263
    %v2555 = vpop.permute.xlu0 %2554
    %v2557 = vmul.f32 %v2555, %v179
    %v2558 = vmul.f32 %v2555, %v180
    %v2559 = vadd.f32 %v2551, %v2557
    %v2560 = vadd.f32 %v2552, %v2558
    %2561 = vset.pattern.permute.xlu0 113
    %2562 = vperm.xlu0 %2561, %v2263
    %v2563 = vpop.permute.xlu0 %2562
    %v2565 = vmul.f32 %v2563, %v490
    %v2566 = vmul.f32 %v2563, %v491
    %v2567 = vadd.f32 %v2559, %v2565
    %v2568 = vadd.f32 %v2560, %v2566
    %2569 = vset.pattern.permute.xlu0 122
    %2570 = vperm.xlu0 %2569, %v2263
    %v2571 = vpop.permute.xlu0 %2570
    %v2573 = vmul.f32 %v2571, %v1341
    %v2574 = vmul.f32 %v2571, %v1342
    %v2575 = vadd.f32 %v2567, %v2573
    %v2576 = vadd.f32 %v2568, %v2574
    %2577 = vset.pattern.permute.xlu0 3
    %2578 = vperm.xlu0 %2577, %v2415
    %v2579 = vpop.permute.xlu0 %2578
    %v2581 = vmul.f32 %v2579, %v2261
    %v2582 = vmul.f32 %v2579, %v2262
    %v2583 = vadd.f32 %v2575, %v2581
    %v2584 = vadd.f32 %v2576, %v2582
    %2585 = vrot.lane.b32.xlu0 %v2583, 127
    %v2586 = vpop.permute.xlu0 %2585
    %2587 = vrot.lane.b32.xlu0 %v2584, 127
    %v2588 = vpop.permute.xlu0 %2587
    %v2589 = vsel %vm366, %v2586, %v2588
    %v2590 = vsel %vm366, %v2588, %v2586
    %v2591 = vmul.f32 %v2589, %v60
    %v2592 = vmul.f32 %v2590, %v61
    %v2593 = vadd.f32 %v2537, %v2591
    %v2594 = vadd.f32 %v2538, %v2592
    %2595 = vset.pattern.permute.xlu0 87
    %2596 = vperm.xlu0 %2595, %v2263
    %v2597 = vpop.permute.xlu0 %2596
    %v2599 = vmul.f32 %v2597, %v115
    %v2600 = vmul.f32 %v2597, %v116
    %2601 = vset.pattern.permute.xlu0 96
    %2602 = vperm.xlu0 %2601, %v2263
    %v2603 = vpop.permute.xlu0 %2602
    %v2605 = vmul.f32 %v2603, %v147
    %v2606 = vmul.f32 %v2603, %v148
    %v2607 = vadd.f32 %v2599, %v2605
    %v2608 = vadd.f32 %v2600, %v2606
    %2609 = vset.pattern.permute.xlu0 105
    %2610 = vperm.xlu0 %2609, %v2263
    %v2611 = vpop.permute.xlu0 %2610
    %v2613 = vmul.f32 %v2611, %v179
    %v2614 = vmul.f32 %v2611, %v180
    %v2615 = vadd.f32 %v2607, %v2613
    %v2616 = vadd.f32 %v2608, %v2614
    %2617 = vset.pattern.permute.xlu0 114
    %2618 = vperm.xlu0 %2617, %v2263
    %v2619 = vpop.permute.xlu0 %2618
    %v2621 = vmul.f32 %v2619, %v490
    %v2622 = vmul.f32 %v2619, %v491
    %v2623 = vadd.f32 %v2615, %v2621
    %v2624 = vadd.f32 %v2616, %v2622
    %2625 = vset.pattern.permute.xlu0 123
    %2626 = vperm.xlu0 %2625, %v2263
    %v2627 = vpop.permute.xlu0 %2626
    %v2629 = vmul.f32 %v2627, %v1341
    %v2630 = vmul.f32 %v2627, %v1342
    %v2631 = vadd.f32 %v2623, %v2629
    %v2632 = vadd.f32 %v2624, %v2630
    %2633 = vset.pattern.permute.xlu0 4
    %2634 = vperm.xlu0 %2633, %v2415
    %v2635 = vpop.permute.xlu0 %2634
    %v2637 = vmul.f32 %v2635, %v2261
    %v2638 = vmul.f32 %v2635, %v2262
    %v2639 = vadd.f32 %v2631, %v2637
    %v2640 = vadd.f32 %v2632, %v2638
    %2641 = vrot.lane.b32.xlu0 %v2639, 113
    %v2642 = vpop.permute.xlu0 %2641
    %2643 = vrot.lane.b32.xlu0 %v2640, 113
    %v2644 = vpop.permute.xlu0 %2643
    %v2645 = vsel %vm399, %v2642, %v2644
    %v2646 = vsel %vm399, %v2644, %v2642
    %v2647 = vmul.f32 %v2645, %v68
    %v2648 = vmul.f32 %v2646, %v69
    %v2649 = vadd.f32 %v2593, %v2647
    %v2650 = vadd.f32 %v2594, %v2648
    %2651 = vset.pattern.permute.xlu0 88
    %2652 = vperm.xlu0 %2651, %v2263
    %v2653 = vpop.permute.xlu0 %2652
    %v2655 = vmul.f32 %v2653, %v115
    %v2656 = vmul.f32 %v2653, %v116
    %2657 = vset.pattern.permute.xlu0 97
    %2658 = vperm.xlu0 %2657, %v2263
    %v2659 = vpop.permute.xlu0 %2658
    %v2661 = vmul.f32 %v2659, %v147
    %v2662 = vmul.f32 %v2659, %v148
    %v2663 = vadd.f32 %v2655, %v2661
    %v2664 = vadd.f32 %v2656, %v2662
    %2665 = vset.pattern.permute.xlu0 106
    %2666 = vperm.xlu0 %2665, %v2263
    %v2667 = vpop.permute.xlu0 %2666
    %v2669 = vmul.f32 %v2667, %v179
    %v2670 = vmul.f32 %v2667, %v180
    %v2671 = vadd.f32 %v2663, %v2669
    %v2672 = vadd.f32 %v2664, %v2670
    %2673 = vset.pattern.permute.xlu0 115
    %2674 = vperm.xlu0 %2673, %v2263
    %v2675 = vpop.permute.xlu0 %2674
    %v2677 = vmul.f32 %v2675, %v490
    %v2678 = vmul.f32 %v2675, %v491
    %v2679 = vadd.f32 %v2671, %v2677
    %v2680 = vadd.f32 %v2672, %v2678
    %2681 = vset.pattern.permute.xlu0 124
    %2682 = vperm.xlu0 %2681, %v2263
    %v2683 = vpop.permute.xlu0 %2682
    %v2685 = vmul.f32 %v2683, %v1341
    %v2686 = vmul.f32 %v2683, %v1342
    %v2687 = vadd.f32 %v2679, %v2685
    %v2688 = vadd.f32 %v2680, %v2686
    %2689 = vset.pattern.permute.xlu0 5
    %2690 = vperm.xlu0 %2689, %v2415
    %v2691 = vpop.permute.xlu0 %2690
    %v2693 = vmul.f32 %v2691, %v2261
    %v2694 = vmul.f32 %v2691, %v2262
    %v2695 = vadd.f32 %v2687, %v2693
    %v2696 = vadd.f32 %v2688, %v2694
    %2697 = vrot.lane.b32.xlu0 %v2695, 112
    %v2698 = vpop.permute.xlu0 %2697
    %2699 = vrot.lane.b32.xlu0 %v2696, 112
    %v2700 = vpop.permute.xlu0 %2699
    %v2701 = vsel %vm432, %v2698, %v2700
    %v2702 = vsel %vm432, %v2700, %v2698
    %v2703 = vmul.f32 %v2701, %v72
    %v2704 = vmul.f32 %v2702, %v73
    %v2705 = vadd.f32 %v2649, %v2703
    %v2706 = vadd.f32 %v2650, %v2704
    %2707 = vset.pattern.permute.xlu0 89
    %2708 = vperm.xlu0 %2707, %v2263
    %v2709 = vpop.permute.xlu0 %2708
    %v2711 = vmul.f32 %v2709, %v115
    %v2712 = vmul.f32 %v2709, %v116
    %2713 = vset.pattern.permute.xlu0 98
    %2714 = vperm.xlu0 %2713, %v2263
    %v2715 = vpop.permute.xlu0 %2714
    %v2717 = vmul.f32 %v2715, %v147
    %v2718 = vmul.f32 %v2715, %v148
    %v2719 = vadd.f32 %v2711, %v2717
    %v2720 = vadd.f32 %v2712, %v2718
    %2721 = vset.pattern.permute.xlu0 107
    %2722 = vperm.xlu0 %2721, %v2263
    %v2723 = vpop.permute.xlu0 %2722
    %v2725 = vmul.f32 %v2723, %v179
    %v2726 = vmul.f32 %v2723, %v180
    %v2727 = vadd.f32 %v2719, %v2725
    %v2728 = vadd.f32 %v2720, %v2726
    %2729 = vset.pattern.permute.xlu0 116
    %2730 = vperm.xlu0 %2729, %v2263
    %v2731 = vpop.permute.xlu0 %2730
    %v2733 = vmul.f32 %v2731, %v490
    %v2734 = vmul.f32 %v2731, %v491
    %v2735 = vadd.f32 %v2727, %v2733
    %v2736 = vadd.f32 %v2728, %v2734
    %2737 = vset.pattern.permute.xlu0 125
    %2738 = vperm.xlu0 %2737, %v2263
    %v2739 = vpop.permute.xlu0 %2738
    %v2741 = vmul.f32 %v2739, %v1341
    %v2742 = vmul.f32 %v2739, %v1342
    %v2743 = vadd.f32 %v2735, %v2741
    %v2744 = vadd.f32 %v2736, %v2742
    %2745 = vset.pattern.permute.xlu0 6
    %2746 = vperm.xlu0 %2745, %v2415
    %v2747 = vpop.permute.xlu0 %2746
    %v2749 = vmul.f32 %v2747, %v2261
    %v2750 = vmul.f32 %v2747, %v2262
    %v2751 = vadd.f32 %v2743, %v2749
    %v2752 = vadd.f32 %v2744, %v2750
    %2753 = vrot.lane.b32.xlu0 %v2751, 111
    %v2754 = vpop.permute.xlu0 %2753
    %2755 = vrot.lane.b32.xlu0 %v2752, 111
    %v2756 = vpop.permute.xlu0 %2755
    %v2757 = vsel %vm465, %v2754, %v2756
    %v2758 = vsel %vm465, %v2756, %v2754
    %v2759 = vmul.f32 %v2757, %v78
    %v2760 = vmul.f32 %v2758, %v79
    %v2761 = vadd.f32 %v2705, %v2759
    %v2762 = vadd.f32 %v2706, %v2760
    %v2763 = vsel %vm846, %v2761, 0.0
    %v2764 = vsel %vm846, %v2762, 0.0
    %v2765 = vadd.f32 %v2763, %v2764
    %2766 = vadd.xlane.f32.xlu0 %v2765
    %v2767 = vpop.xlane.xlu0 %2766
    %v2768 = vsel %vm846, %v2767, 0.0
    %v2769 = vrot.slane %v2768, 4
    %v2770 = vadd.f32 %v2768, %v2769
    %v2771 = vrot.slane %v2770, 2
    %v2772 = vadd.f32 %v2770, %v2771
    %v2773 = vrot.slane %v2772, 1
    %v2774 = vadd.f32 %v2772, %v2773
    %v2775 = vmul.f32 %v2761, %v2761
    %v2776 = vmul.f32 %v2762, %v2762
    %v2777 = vsel %vm846, %v2775, 0.0
    %v2778 = vsel %vm846, %v2776, 0.0
    %v2779 = vadd.f32 %v2777, %v2778
    %2780 = vadd.xlane.f32.xlu0 %v2779
    %v2781 = vpop.xlane.xlu0 %2780
    %v2782 = vsel %vm846, %v2781, 0.0
    %v2783 = vrot.slane %v2782, 4
    %v2784 = vadd.f32 %v2782, %v2783
    %v2785 = vrot.slane %v2784, 2
    %v2786 = vadd.f32 %v2784, %v2785
    %v2787 = vrot.slane %v2786, 1
    %v2788 = vadd.f32 %v2786, %v2787
    %v2789 = vmul.f32 %v2774, 0.001953125
    %v2790 = vmul.f32 %v2788, 0.001953125
    %v2791 = vmul.f32 %v2789, %v2789
    %v2792 = vsub.f32 %v2790, %v2791
    %s2793 = sld [smem:[#allocation3 + $0x7c]]
    %v2794 = vadd.f32 %v2792, 1e-05
    %v2795 = vrsqrt.pop %v2794
    %v2796 = vstv %s2793
    %v2797 = vmul.f32 %v2796, %v2795
    %s2798 = sld [smem:[#allocation3 + $0x7f]]
    %v2799 = vmul.f32 %v2789, %v2797
    %v2800 = vstv %s2798
    %v2801 = vsub.f32 %v2800, %v2799
    %v2802 = vmul.f32 %v2761, %v2797
    %v2803 = vmul.f32 %v2762, %v2797
    %v2804 = vadd.f32 %v2802, %v2801
    %v2805 = vadd.f32 %v2803, %v2801
    %v2806 = vsel %vm890, %v2761, 0.0
    %v2807 = vsel %vm890, %v2762, 0.0
    %v2808 = vadd.f32 %v2806, %v2807
    %2809 = vadd.xlane.f32.xlu0 %v2808
    %v2810 = vpop.xlane.xlu0 %2809
    %v2812 = vrot.slane %v2810, 2
    %v2814 = vsel %vm846, %v2812, 0.0
    %v2815 = vrot.slane %v2814, 4
    %v2816 = vadd.f32 %v2814, %v2815
    %v2817 = vrot.slane %v2816, 2
    %v2818 = vadd.f32 %v2816, %v2817
    %v2819 = vrot.slane %v2818, 1
    %v2820 = vadd.f32 %v2818, %v2819
    %v2821 = vsel %vm890, %v2775, 0.0
    %v2822 = vsel %vm890, %v2776, 0.0
    %v2823 = vadd.f32 %v2821, %v2822
    %2824 = vadd.xlane.f32.xlu0 %v2823
    %v2825 = vpop.xlane.xlu0 %2824
    %v2827 = vrot.slane %v2825, 2
    %v2829 = vsel %vm846, %v2827, 0.0
    %v2830 = vrot.slane %v2829, 4
    %v2831 = vadd.f32 %v2829, %v2830
    %v2832 = vrot.slane %v2831, 2
    %v2833 = vadd.f32 %v2831, %v2832
    %v2834 = vrot.slane %v2833, 1
    %v2835 = vadd.f32 %v2833, %v2834
    %v2836 = vmul.f32 %v2820, 0.001953125
    %v2837 = vmul.f32 %v2835, 0.001953125
    %v2838 = vmul.f32 %v2836, %v2836
    %v2839 = vsub.f32 %v2837, %v2838
    %s2840 = sld [smem:[#allocation3 + $0x7d]]
    %v2841 = vadd.f32 %v2839, 1e-05
    %v2842 = vrsqrt.pop %v2841
    %v2843 = vstv %s2840
    %v2844 = vmul.f32 %v2843, %v2842
    %s2845 = sld [smem:[#allocation3 + $0x80]]
    %v2846 = vmul.f32 %v2836, %v2844
    %v2847 = vstv %s2845
    %v2848 = vsub.f32 %v2847, %v2846
    %v2849 = vmul.f32 %v2761, %v2844
    %v2850 = vmul.f32 %v2762, %v2844
    %v2851 = vadd.f32 %v2849, %v2848
    %v2852 = vadd.f32 %v2850, %v2848
    %v2853 = vsel %vm938, %v2761, 0.0
    %v2854 = vsel %vm938, %v2762, 0.0
    %v2855 = vadd.f32 %v2853, %v2854
    %2856 = vadd.xlane.f32.xlu0 %v2855
    %v2857 = vpop.xlane.xlu0 %2856
    %v2859 = vrot.slane %v2857, 4
    %v2861 = vsel %vm846, %v2859, 0.0
    %v2862 = vrot.slane %v2861, 4
    %v2863 = vadd.f32 %v2861, %v2862
    %v2864 = vrot.slane %v2863, 2
    %v2865 = vadd.f32 %v2863, %v2864
    %v2866 = vrot.slane %v2865, 1
    %v2867 = vadd.f32 %v2865, %v2866
    %v2868 = vsel %vm938, %v2775, 0.0
    %v2869 = vsel %vm938, %v2776, 0.0
    %v2870 = vadd.f32 %v2868, %v2869
    %2871 = vadd.xlane.f32.xlu0 %v2870
    %v2872 = vpop.xlane.xlu0 %2871
    %v2874 = vrot.slane %v2872, 4
    %v2876 = vsel %vm846, %v2874, 0.0
    %v2877 = vrot.slane %v2876, 4
    %v2878 = vadd.f32 %v2876, %v2877
    %v2879 = vrot.slane %v2878, 2
    %v2880 = vadd.f32 %v2878, %v2879
    %v2881 = vrot.slane %v2880, 1
    %v2882 = vadd.f32 %v2880, %v2881
    %v2883 = vmul.f32 %v2867, 0.001953125
    %v2884 = vmul.f32 %v2882, 0.001953125
    %v2885 = vmul.f32 %v2883, %v2883
    %v2886 = vsub.f32 %v2884, %v2885
    %s2887 = sld [smem:[#allocation3 + $0x7e]]
    %v2888 = vadd.f32 %v2886, 1e-05
    %v2889 = vrsqrt.pop %v2888
    %v2890 = vstv %s2887
    %v2891 = vmul.f32 %v2890, %v2889
    %s2892 = sld [smem:[#allocation3 + $0x81]]
    %v2893 = vmul.f32 %v2883, %v2891
    %v2894 = vstv %s2892
    %v2895 = vsub.f32 %v2894, %v2893
    %v2896 = vmul.f32 %v2761, %v2891
    %v2897 = vmul.f32 %v2762, %v2891
    %v2898 = vadd.f32 %v2896, %v2895
    %v2899 = vadd.f32 %v2897, %v2895
    %s2900 = sld [smem:[#allocation3 + $0x6f]]
    %v2901 = vstv %s2900
    %v2902 = vadd.f32 %v2901, 0.0
    %s2903 = sld [smem:[#allocation3 + $0x54]]
    %v2904 = vstv %s2903
    %v2905 = vmul.f32 %v2904, %v2804
    %v2906 = vmul.f32 %v2904, %v2805
    %s2907 = sld [smem:[#allocation3 + $0x5d]]
    %v2908 = vstv %s2907
    %v2909 = vmul.f32 %v2908, %v2851
    %v2910 = vmul.f32 %v2908, %v2852
    %v2913 = vrot.slane %v2909, 2
    %v2914 = vrot.slane %v2910, 2
    %v2917 = vadd.f32 %v2905, %v2913
    %v2918 = vadd.f32 %v2906, %v2914
    %s2919 = sld [smem:[#allocation3 + $0x66]]
    %v2920 = vstv %s2919
    %v2921 = vmul.f32 %v2920, %v2898
    %v2922 = vmul.f32 %v2920, %v2899
    %v2925 = vrot.slane %v2921, 4
    %v2926 = vrot.slane %v2922, 4
    %v2929 = vadd.f32 %v2917, %v2925
    %v2930 = vadd.f32 %v2918, %v2926
    %2931 = vrot.lane.b32.xlu0 %v2929, 17
    %v2932 = vpop.permute.xlu0 %2931
    %2933 = vrot.lane.b32.xlu0 %v2930, 17
    %v2934 = vpop.permute.xlu0 %2933
    %v2935 = vsel %vm210, %v2932, %v2934
    %v2936 = vsel %vm210, %v2934, %v2932
    %v2937 = vmul.f32 %v2936, %v40
    %v2938 = vmul.f32 %v2935, %v41
    %v2939 = vadd.f32 %v2902, %v2937
    %v2940 = vadd.f32 %v2902, %v2938
    %s2941 = sld [smem:[#allocation3 + $0x55]]
    %v2942 = vstv %s2941
    %v2943 = vmul.f32 %v2942, %v2804
    %v2944 = vmul.f32 %v2942, %v2805
    %s2945 = sld [smem:[#allocation3 + $0x5e]]
    %v2946 = vstv %s2945
    %v2947 = vmul.f32 %v2946, %v2851
    %v2948 = vmul.f32 %v2946, %v2852
    %v2951 = vrot.slane %v2947, 2
    %v2952 = vrot.slane %v2948, 2
    %v2955 = vadd.f32 %v2943, %v2951
    %v2956 = vadd.f32 %v2944, %v2952
    %s2957 = sld [smem:[#allocation3 + $0x67]]
    %v2958 = vstv %s2957
    %v2959 = vmul.f32 %v2958, %v2898
    %v2960 = vmul.f32 %v2958, %v2899
    %v2963 = vrot.slane %v2959, 4
    %v2964 = vrot.slane %v2960, 4
    %v2967 = vadd.f32 %v2955, %v2963
    %v2968 = vadd.f32 %v2956, %v2964
    %2969 = vrot.lane.b32.xlu0 %v2967, 16
    %v2970 = vpop.permute.xlu0 %2969
    %2971 = vrot.lane.b32.xlu0 %v2968, 16
    %v2972 = vpop.permute.xlu0 %2971
    %v2973 = vsel %vm243, %v2970, %v2972
    %v2974 = vsel %vm243, %v2972, %v2970
    %v2975 = vmul.f32 %v2974, %v44
    %v2976 = vmul.f32 %v2973, %v45
    %v2977 = vadd.f32 %v2939, %v2975
    %v2978 = vadd.f32 %v2940, %v2976
    %s2979 = sld [smem:[#allocation3 + $0x56]]
    %v2980 = vstv %s2979
    %v2981 = vmul.f32 %v2980, %v2804
    %v2982 = vmul.f32 %v2980, %v2805
    %s2983 = sld [smem:[#allocation3 + $0x5f]]
    %v2984 = vstv %s2983
    %v2985 = vmul.f32 %v2984, %v2851
    %v2986 = vmul.f32 %v2984, %v2852
    %v2989 = vrot.slane %v2985, 2
    %v2990 = vrot.slane %v2986, 2
    %v2993 = vadd.f32 %v2981, %v2989
    %v2994 = vadd.f32 %v2982, %v2990
    %s2995 = sld [smem:[#allocation3 + $0x68]]
    %v2996 = vstv %s2995
    %v2997 = vmul.f32 %v2996, %v2898
    %v2998 = vmul.f32 %v2996, %v2899
    %v3001 = vrot.slane %v2997, 4
    %v3002 = vrot.slane %v2998, 4
    %v3005 = vadd.f32 %v2993, %v3001
    %v3006 = vadd.f32 %v2994, %v3002
    %3007 = vrot.lane.b32.xlu0 %v3005, 15
    %v3008 = vpop.permute.xlu0 %3007
    %3009 = vrot.lane.b32.xlu0 %v3006, 15
    %v3010 = vpop.permute.xlu0 %3009
    %v3011 = vsel %vm276, %v3008, %v3010
    %v3012 = vsel %vm276, %v3010, %v3008
    %v3013 = vmul.f32 %v3012, %v52
    %v3014 = vmul.f32 %v3011, %v53
    %v3015 = vadd.f32 %v2977, %v3013
    %v3016 = vadd.f32 %v2978, %v3014
    %s3017 = sld [smem:[#allocation3 + $0x57]]
    %v3018 = vstv %s3017
    %v3019 = vmul.f32 %v3018, %v2804
    %v3020 = vmul.f32 %v3018, %v2805
    %s3021 = sld [smem:[#allocation3 + $0x60]]
    %v3022 = vstv %s3021
    %v3023 = vmul.f32 %v3022, %v2851
    %v3024 = vmul.f32 %v3022, %v2852
    %v3027 = vrot.slane %v3023, 2
    %v3028 = vrot.slane %v3024, 2
    %v3031 = vadd.f32 %v3019, %v3027
    %v3032 = vadd.f32 %v3020, %v3028
    %s3033 = sld [smem:[#allocation3 + $0x69]]
    %v3034 = vstv %s3033
    %v3035 = vmul.f32 %v3034, %v2898
    %v3036 = vmul.f32 %v3034, %v2899
    %v3039 = vrot.slane %v3035, 4
    %v3040 = vrot.slane %v3036, 4
    %v3043 = vadd.f32 %v3031, %v3039
    %v3044 = vadd.f32 %v3032, %v3040
    %3045 = vrot.lane.b32.xlu0 %v3043, 1
    %v3046 = vpop.permute.xlu0 %3045
    %3047 = vrot.lane.b32.xlu0 %v3044, 1
    %v3048 = vpop.permute.xlu0 %3047
    %v3049 = vsel %vm309, %v3046, %v3048
    %v3050 = vsel %vm309, %v3048, %v3046
    %v3051 = vmul.f32 %v3050, %v56
    %v3052 = vmul.f32 %v3049, %v57
    %v3053 = vadd.f32 %v3015, %v3051
    %v3054 = vadd.f32 %v3016, %v3052
    %s3055 = sld [smem:[#allocation3 + $0x58]]
    %v3056 = vstv %s3055
    %v3057 = vmul.f32 %v3056, %v2804
    %v3058 = vmul.f32 %v3056, %v2805
    %s3059 = sld [smem:[#allocation3 + $0x61]]
    %v3060 = vstv %s3059
    %v3061 = vmul.f32 %v3060, %v2851
    %v3062 = vmul.f32 %v3060, %v2852
    %v3065 = vrot.slane %v3061, 2
    %v3066 = vrot.slane %v3062, 2
    %v3069 = vadd.f32 %v3057, %v3065
    %v3070 = vadd.f32 %v3058, %v3066
    %s3071 = sld [smem:[#allocation3 + $0x6a]]
    %v3072 = vstv %s3071
    %v3073 = vmul.f32 %v3072, %v2898
    %v3074 = vmul.f32 %v3072, %v2899
    %v3077 = vrot.slane %v3073, 4
    %v3078 = vrot.slane %v3074, 4
    %v3081 = vadd.f32 %v3069, %v3077
    %v3082 = vadd.f32 %v3070, %v3078
    %v3083 = vadd.f32 %v3053, %v3081
    %v3084 = vadd.f32 %v3054, %v3082
    %s3085 = sld [smem:[#allocation3 + $0x59]]
    %v3086 = vstv %s3085
    %v3087 = vmul.f32 %v3086, %v2804
    %v3088 = vmul.f32 %v3086, %v2805
    %s3089 = sld [smem:[#allocation3 + $0x62]]
    %v3090 = vstv %s3089
    %v3091 = vmul.f32 %v3090, %v2851
    %v3092 = vmul.f32 %v3090, %v2852
    %v3095 = vrot.slane %v3091, 2
    %v3096 = vrot.slane %v3092, 2
    %v3099 = vadd.f32 %v3087, %v3095
    %v3100 = vadd.f32 %v3088, %v3096
    %s3101 = sld [smem:[#allocation3 + $0x6b]]
    %v3102 = vstv %s3101
    %v3103 = vmul.f32 %v3102, %v2898
    %v3104 = vmul.f32 %v3102, %v2899
    %v3107 = vrot.slane %v3103, 4
    %v3108 = vrot.slane %v3104, 4
    %v3111 = vadd.f32 %v3099, %v3107
    %v3112 = vadd.f32 %v3100, %v3108
    %3113 = vrot.lane.b32.xlu0 %v3111, 127
    %v3114 = vpop.permute.xlu0 %3113
    %3115 = vrot.lane.b32.xlu0 %v3112, 127
    %v3116 = vpop.permute.xlu0 %3115
    %v3117 = vsel %vm366, %v3114, %v3116
    %v3118 = vsel %vm366, %v3116, %v3114
    %v3119 = vmul.f32 %v3117, %v60
    %v3120 = vmul.f32 %v3118, %v61
    %v3121 = vadd.f32 %v3083, %v3119
    %v3122 = vadd.f32 %v3084, %v3120
    %s3123 = sld [smem:[#allocation3 + $0x5a]]
    %v3124 = vstv %s3123
    %v3125 = vmul.f32 %v3124, %v2804
    %v3126 = vmul.f32 %v3124, %v2805
    %s3127 = sld [smem:[#allocation3 + $0x63]]
    %v3128 = vstv %s3127
    %v3129 = vmul.f32 %v3128, %v2851
    %v3130 = vmul.f32 %v3128, %v2852
    %v3133 = vrot.slane %v3129, 2
    %v3134 = vrot.slane %v3130, 2
    %v3137 = vadd.f32 %v3125, %v3133
    %v3138 = vadd.f32 %v3126, %v3134
    %s3139 = sld [smem:[#allocation3 + $0x6c]]
    %v3140 = vstv %s3139
    %v3141 = vmul.f32 %v3140, %v2898
    %v3142 = vmul.f32 %v3140, %v2899
    %v3145 = vrot.slane %v3141, 4
    %v3146 = vrot.slane %v3142, 4
    %v3149 = vadd.f32 %v3137, %v3145
    %v3150 = vadd.f32 %v3138, %v3146
    %3151 = vrot.lane.b32.xlu0 %v3149, 113
    %v3152 = vpop.permute.xlu0 %3151
    %3153 = vrot.lane.b32.xlu0 %v3150, 113
    %v3154 = vpop.permute.xlu0 %3153
    %v3155 = vsel %vm399, %v3152, %v3154
    %v3156 = vsel %vm399, %v3154, %v3152
    %v3157 = vmul.f32 %v3155, %v68
    %v3158 = vmul.f32 %v3156, %v69
    %v3159 = vadd.f32 %v3121, %v3157
    %v3160 = vadd.f32 %v3122, %v3158
    %s3161 = sld [smem:[#allocation3 + $0x5b]]
    %v3162 = vstv %s3161
    %v3163 = vmul.f32 %v3162, %v2804
    %v3164 = vmul.f32 %v3162, %v2805
    %s3165 = sld [smem:[#allocation3 + $0x64]]
    %v3166 = vstv %s3165
    %v3167 = vmul.f32 %v3166, %v2851
    %v3168 = vmul.f32 %v3166, %v2852
    %v3171 = vrot.slane %v3167, 2
    %v3172 = vrot.slane %v3168, 2
    %v3175 = vadd.f32 %v3163, %v3171
    %v3176 = vadd.f32 %v3164, %v3172
    %s3177 = sld [smem:[#allocation3 + $0x6d]]
    %v3178 = vstv %s3177
    %v3179 = vmul.f32 %v3178, %v2898
    %v3180 = vmul.f32 %v3178, %v2899
    %v3183 = vrot.slane %v3179, 4
    %v3184 = vrot.slane %v3180, 4
    %v3187 = vadd.f32 %v3175, %v3183
    %v3188 = vadd.f32 %v3176, %v3184
    %3189 = vrot.lane.b32.xlu0 %v3187, 112
    %v3190 = vpop.permute.xlu0 %3189
    %3191 = vrot.lane.b32.xlu0 %v3188, 112
    %v3192 = vpop.permute.xlu0 %3191
    %v3193 = vsel %vm432, %v3190, %v3192
    %v3194 = vsel %vm432, %v3192, %v3190
    %v3195 = vmul.f32 %v3193, %v72
    %v3196 = vmul.f32 %v3194, %v73
    %v3197 = vadd.f32 %v3159, %v3195
    %v3198 = vadd.f32 %v3160, %v3196
    %s3199 = sld [smem:[#allocation3 + $0x5c]]
    %v3200 = vstv %s3199
    %v3201 = vmul.f32 %v3200, %v2804
    %v3202 = vmul.f32 %v3200, %v2805
    %s3203 = sld [smem:[#allocation3 + $0x65]]
    %v3204 = vstv %s3203
    %v3205 = vmul.f32 %v3204, %v2851
    %v3206 = vmul.f32 %v3204, %v2852
    %v3209 = vrot.slane %v3205, 2
    %v3210 = vrot.slane %v3206, 2
    %v3213 = vadd.f32 %v3201, %v3209
    %v3214 = vadd.f32 %v3202, %v3210
    %s3215 = sld [smem:[#allocation3 + $0x6e]]
    %v3216 = vstv %s3215
    %v3217 = vmul.f32 %v3216, %v2898
    %v3218 = vmul.f32 %v3216, %v2899
    %v3221 = vrot.slane %v3217, 4
    %v3222 = vrot.slane %v3218, 4
    %v3225 = vadd.f32 %v3213, %v3221
    %v3226 = vadd.f32 %v3214, %v3222
    %3227 = vrot.lane.b32.xlu0 %v3225, 111
    %v3228 = vpop.permute.xlu0 %3227
    %3229 = vrot.lane.b32.xlu0 %v3226, 111
    %v3230 = vpop.permute.xlu0 %3229
    %v3231 = vsel %vm465, %v3228, %v3230
    %v3232 = vsel %vm465, %v3230, %v3228
    %v3233 = vmul.f32 %v3231, %v78
    %v3234 = vmul.f32 %v3232, %v79
    %v3235 = vadd.f32 %v3197, %v3233
    %v3236 = vadd.f32 %v3198, %v3234
    %v3237 = vmax.f32 %v3235, 0.0
    %v3238 = vmax.f32 %v3236, 0.0
    %v3241 = vcombine.low %v3237, %v3238
    %v3243 = vunpack.c.l.s4 1983009808
    %v3244 = vunpack.c.0.s8 %v3243
    %v3245 = vlaneseq
    %v3246 = vshrl.u32 %v3245, 7
    %v3247 = vsub.s32 %v3244, %v3246
    %v3248 = vrot.slane %v3241, %v3247
    %3250 = vst [vmem:[%s3] sm:$0xf] %v3248
    // Predicated region
    $region18: #{chain_eunet_4_forward.1} parent=1 // pred_check
      _
    $region19: #{chain_eunet_4_forward.1} parent=1 // pred_check_branch
      %3252 = sbr.rel (0) target = $region21
    $region20: #{chain_eunet_4_forward.1} parent=1 // pred_region
      _
    $region21: #{chain_eunet_4_forward.1} parent=1 // pred_fallthru
      _
    // Predicated region
    $region22: #{chain_eunet_4_forward.1} parent=1 // pred_check
      _
    $region23: #{chain_eunet_4_forward.1} parent=1 // pred_check_branch
      %3254 = sbr.rel (0) target = $region25
    $region24: #{chain_eunet_4_forward.1} parent=1 // pred_region
      _
    $region25: #{chain_eunet_4_forward.1} parent=1 // pred_fallthru
      _
    %3255 = vsyncpa [#allocation4], 1

</llo_original>
